<compile_context>
chip_gen: v7x
topology: tpu7x:2x2x1
jax: 0.10.0
libtpu: 0.0.40
codegen_flags: <defaults>
</compile_context>

<pallas_src>
import jax
import jax.numpy as jnp
from jax.experimental import pallas as pl
from jax.experimental.pallas import tpu as pltpu

EPS = 1e-5
LANE = 128


def _round_up(x, m):
    return (x + m - 1) // m * m


def _cparams(step_bytes):
    """parallel row-tile grid + VMEM limit derived from the double-buffered
    per-step footprint (instead of a blanket 48 MiB)."""
    limit = int(min(max(2 * step_bytes + (8 << 20), 32 << 20), 62 << 20))
    return pltpu.CompilerParams(dimension_semantics=("parallel",),
                                vmem_limit_bytes=limit)


def _pick_tn(n, kc_max, out_width, tn_req):
    """Largest row tile (multiple of 256) that keeps the double-buffered conv
    working set under ~24 MiB and does not over-pad tiny inputs."""
    tn = min(max(256, _round_up(tn_req, 256)), _round_up(max(n, 1), 256))
    budget = 24 << 20
    while tn > 256:
        foot = 2 * tn * kc_max * 2 + 4 * tn * out_width * 2 + kc_max * out_width * 2
        if foot <= budget:
            break
        tn //= 2
    return tn


def _lane_dense(a):
    """View (Npad, C) as a lane-dense (Npad*C/128, 128) matrix when 128 % C == 0
    (free contiguous reshape). Returns (view, rep)."""
    npad, c = a.shape
    if c % LANE == 0 or LANE % c != 0:
        return a, 1
    rep = LANE // c
    return a.reshape(npad * c // LANE, LANE), rep


# ----------------------------------------------------------------------------
# Kernels
# ----------------------------------------------------------------------------
def _conv_stats_kernel(xg_ref, w_ref, y_ref, s_ref, ss_ref):
    """One im2col MXU matmul tile (bf16 in, f32 acc) + BN partial sums.
    y is stored bf16; stats come from the f32 accumulator."""
    acc = jnp.dot(xg_ref[...], w_ref[...], preferred_element_type=jnp.float32)
    y_ref[...] = acc.astype(y_ref.dtype)
    s_ref[0] = jnp.sum(acc, axis=0, keepdims=True)
    ss_ref[0] = jnp.sum(acc * acc, axis=0, keepdims=True)


def _conv_ds_stats_kernel(xg_ref, w_ref, y_ref, z_ref, s_ref, ss_ref):
    """conv1 with the downsample 1x1 conv fused into extra weight columns:
    one MXU pass yields [y1 | z] plus partial sums for both halves."""
    acc = jnp.dot(xg_ref[...], w_ref[...], preferred_element_type=jnp.float32)
    cout = y_ref.shape[1]
    y_ref[...] = acc[:, :cout].astype(y_ref.dtype)
    z_ref[...] = acc[:, cout:].astype(z_ref.dtype)
    s_ref[0] = jnp.sum(acc, axis=0, keepdims=True)
    ss_ref[0] = jnp.sum(acc * acc, axis=0, keepdims=True)


def _bn_relu_kernel(y_ref, sc_ref, sh_ref, h_ref):
    """BN (precomputed scale/shift) + ReLU on lane-dense blocks."""
    y = y_ref[...].astype(jnp.float32)
    h_ref[...] = jnp.maximum(y * sc_ref[...] + sh_ref[...], 0.0).astype(h_ref.dtype)


def _bn_res_relu_kernel(y_ref, r_ref, sc_ref, sh_ref, scr_ref, shr_ref, out_ref):
    """BN2 + residual (identity: scr=1, shr=0; downsample: BN_d of z) + ReLU."""
    y = y_ref[...].astype(jnp.float32)
    r = r_ref[...].astype(jnp.float32)
    out = y * sc_ref[...] + sh_ref[...] + r * scr_ref[...] + shr_ref[...]
    out_ref[...] = jnp.maximum(out, 0.0).astype(out_ref.dtype)


# ----------------------------------------------------------------------------
# pallas_call wrappers
# ----------------------------------------------------------------------------
def conv_bn_stats(xg, w_flat, n_valid, tn):
    """xg: (Npad, KC) bf16 im2col; w_flat: (KC, Cout) bf16.
    Returns bf16 conv output (Npad, Cout) and batch mean/var (1, Cout) f32."""
    npad, kc = xg.shape
    cout = w_flat.shape[1]
    ntiles = npad // tn
    step = tn * kc * 2 + kc * cout * 2 + tn * cout * 2 + 2 * cout * 4
    y, s, ss = pl.pallas_call(
        _conv_stats_kernel,
        grid=(ntiles,),
        in_specs=[
            pl.BlockSpec((tn, kc), lambda i: (i, 0)),
            pl.BlockSpec((kc, cout), lambda i: (0, 0)),
        ],
        out_specs=[
            pl.BlockSpec((tn, cout), lambda i: (i, 0)),
            pl.BlockSpec((1, 1, cout), lambda i: (i, 0, 0)),
            pl.BlockSpec((1, 1, cout), lambda i: (i, 0, 0)),
        ],
        out_shape=[
            jax.ShapeDtypeStruct((npad, cout), jnp.bfloat16),
            jax.ShapeDtypeStruct((ntiles, 1, cout), jnp.float32),
            jax.ShapeDtypeStruct((ntiles, 1, cout), jnp.float32),
        ],
        compiler_params=_cparams(step),
    )(xg, w_flat)
    mean = jnp.sum(s, axis=0) / n_valid           # padded rows contribute exactly 0
    var = jnp.sum(ss, axis=0) / n_valid - mean * mean
    return y, mean, var


def conv_ds_stats(xg, w_cat, n_valid, tn):
    """conv1 with fused downsample weight: w_cat (KC, 2*Cout) bf16.
    Returns bf16 y1, bf16 z, and mean/var of shape (1, 2*Cout)."""
    npad, kc = xg.shape
    c2 = w_cat.shape[1]
    cout = c2 // 2
    ntiles = npad // tn
    step = tn * kc * 2 + kc * c2 * 2 + 2 * tn * cout * 2 + 2 * c2 * 4
    y, z, s, ss = pl.pallas_call(
        _conv_ds_stats_kernel,
        grid=(ntiles,),
        in_specs=[
            pl.BlockSpec((tn, kc), lambda i: (i, 0)),
            pl.BlockSpec((kc, c2), lambda i: (0, 0)),
        ],
        out_specs=[
            pl.BlockSpec((tn, cout), lambda i: (i, 0)),
            pl.BlockSpec((tn, cout), lambda i: (i, 0)),
            pl.BlockSpec((1, 1, c2), lambda i: (i, 0, 0)),
            pl.BlockSpec((1, 1, c2), lambda i: (i, 0, 0)),
        ],
        out_shape=[
            jax.ShapeDtypeStruct((npad, cout), jnp.bfloat16),
            jax.ShapeDtypeStruct((npad, cout), jnp.bfloat16),
            jax.ShapeDtypeStruct((ntiles, 1, c2), jnp.float32),
            jax.ShapeDtypeStruct((ntiles, 1, c2), jnp.float32),
        ],
        compiler_params=_cparams(step),
    )(xg, w_cat)
    mean = jnp.sum(s, axis=0) / n_valid
    var = jnp.sum(ss, axis=0) / n_valid - mean * mean
    return y, z, mean, var


def bn_relu(y, scale, shift, tn, out_dtype=jnp.bfloat16):
    """BN + ReLU, lane-dense: (Npad, C) viewed as (Npad*C/128, 128)."""
    npad, c = y.shape
    yd, rep = _lane_dense(y)
    rows, lanes = yd.shape
    ntiles = npad // tn
    tr = rows // ntiles
    sc = jnp.tile(scale, (1, rep))
    sh = jnp.tile(shift, (1, rep))
    step = tr * lanes * (2 + jnp.dtype(out_dtype).itemsize) + 2 * lanes * 4
    hd = pl.pallas_call(
        _bn_relu_kernel,
        grid=(ntiles,),
        in_specs=[
            pl.BlockSpec((tr, lanes), lambda i: (i, 0)),
            pl.BlockSpec((1, lanes), lambda i: (0, 0)),
            pl.BlockSpec((1, lanes), lambda i: (0, 0)),
        ],
        out_specs=pl.BlockSpec((tr, lanes), lambda i: (i, 0)),
        out_shape=jax.ShapeDtypeStruct((rows, lanes), out_dtype),
        compiler_params=_cparams(step),
    )(yd, sc, sh)
    return hd.reshape(npad, c)


def bn_res_relu(y, res, scale, shift, scale_r, shift_r, tn):
    """BN2 + scaled residual + ReLU, lane-dense. identity residual: scale_r=1,
    shift_r=0, res = x; downsample: res = z (bf16), scale_r/shift_r = BN_d."""
    npad, c = y.shape
    yd, rep = _lane_dense(y)
    rd, _ = _lane_dense(res)
    rows, lanes = yd.shape
    ntiles = npad // tn
    tr = rows // ntiles
    sc = jnp.tile(scale, (1, rep))
    sh = jnp.tile(shift, (1, rep))
    scr = jnp.tile(scale_r, (1, rep))
    shr = jnp.tile(shift_r, (1, rep))
    step = tr * lanes * (2 + res.dtype.itemsize + 4) + 4 * lanes * 4
    od = pl.pallas_call(
        _bn_res_relu_kernel,
        grid=(ntiles,),
        in_specs=[
            pl.BlockSpec((tr, lanes), lambda i: (i, 0)),
            pl.BlockSpec((tr, lanes), lambda i: (i, 0)),
            pl.BlockSpec((1, lanes), lambda i: (0, 0)),
            pl.BlockSpec((1, lanes), lambda i: (0, 0)),
            pl.BlockSpec((1, lanes), lambda i: (0, 0)),
            pl.BlockSpec((1, lanes), lambda i: (0, 0)),
        ],
        out_specs=pl.BlockSpec((tr, lanes), lambda i: (i, 0)),
        out_shape=jax.ShapeDtypeStruct((rows, lanes), jnp.float32),
        compiler_params=_cparams(step),
    )(yd, rd, sc, sh, scr, shr)
    return od.reshape(npad, c)


# ----------------------------------------------------------------------------
# Glue: neighbor map, im2col gather, BN scale/shift (index bookkeeping, plain JAX)
# ----------------------------------------------------------------------------
def build_neighbor_map(coords, grid_size, ks=3, dilation=1):
    """coords: (N,3) int32 voxel coords in [0, grid_size). Returns (K, N) int32, -1 = missing."""
    n = coords.shape[0]
    lut = jnp.full((grid_size, grid_size, grid_size), -1, dtype=jnp.int32)
    lut = lut.at[coords[:, 0], coords[:, 1], coords[:, 2]].set(
        jnp.arange(n, dtype=jnp.int32))
    r = ks // 2
    offs = jnp.array(
        [(dx * dilation, dy * dilation, dz * dilation)
         for dx in range(-r, r + 1)
         for dy in range(-r, r + 1)
         for dz in range(-r, r + 1)],
        dtype=jnp.int32)                                   # (K, 3)
    nb = coords[None, :, :] + offs[:, None, :]             # (K, N, 3)
    ok = jnp.all((nb >= 0) & (nb < grid_size), axis=-1)
    nbc = jnp.clip(nb, 0, grid_size - 1)
    idx = lut[nbc[..., 0], nbc[..., 1], nbc[..., 2]]
    return jnp.where(ok, idx, -1)


def im2col_gather(table, nbr_t, kc_pad):
    """table: (Npad, C); nbr_t: (Npad, K) int32, -1 = missing.
    Returns (Npad, kc_pad) im2col matrix in table.dtype (missing neighbors -> 0)."""
    npad, c = table.shape
    tz = jnp.concatenate([table, jnp.zeros((1, c), table.dtype)], axis=0)
    idx = jnp.where(nbr_t >= 0, nbr_t, npad)               # missing -> appended zero row
    g = tz[idx].reshape(nbr_t.shape[0], -1)                # (Npad, K*C), k-major
    if kc_pad > g.shape[1]:
        g = jnp.pad(g, ((0, 0), (0, kc_pad - g.shape[1])))
    return g


def _bn_scale_shift(mean, var, gamma, beta):
    scale = gamma * jax.lax.rsqrt(var + EPS)
    shift = beta - mean * scale
    return scale, shift


def gather_neighbors(feats, nbr):
    """Reference helper: feats (N,C); nbr (K,N) -> (K,N,C), zeros where missing."""
    safe = jnp.maximum(nbr, 0)
    g = feats[safe]
    return jnp.where((nbr >= 0)[..., None], g, 0.0)


# ----------------------------------------------------------------------------
# ResidualBlock forward
# ----------------------------------------------------------------------------
def residual_block_forward(feats, nbr, params, inc, outc, tn=1024):
    """feats: (N, inc) f32; nbr: (K, N) int32. Returns (N, outc) f32."""
    n = feats.shape[0]
    k = nbr.shape[0]
    identity = (inc == outc)

    kc1 = _round_up(k * inc, LANE)
    kc2 = _round_up(k * outc, LANE)
    tn = _pick_tn(n, max(kc1, kc2), 2 * outc, tn)
    npad = _round_up(n, tn)

    x_f32 = jnp.pad(feats, ((0, npad - n), (0, 0)))
    x_bf = x_f32.astype(jnp.bfloat16)
    nbr_t = jnp.pad(nbr.T, ((0, npad - n), (0, 0)), constant_values=-1)

    # ---- conv1 (ks^3, inc -> outc) as one im2col bf16 MXU matmul + batch stats ----
    # TODO(synk): the im2col gather stays XLA-side (no dependable in-kernel
    #             dynamic row-gather lowering on TPU today).
    xg = im2col_gather(x_bf, nbr_t, kc1)
    w1_flat = params["W1"].reshape(k * inc, outc)
    if identity:
        w1 = jnp.pad(w1_flat, ((0, kc1 - k * inc), (0, 0))).astype(jnp.bfloat16)
        y1, m1, v1 = conv_bn_stats(xg, w1, n, tn)
        z = scd = shd = None
    else:
        # Fuse the downsample 1x1 conv into conv1: the center-offset slice of xg
        # IS x, so Wd placed at those rows of `outc` extra columns yields z.
        k_c = k // 2
        w_cat = jnp.zeros((kc1, 2 * outc), jnp.float32)
        w_cat = w_cat.at[:k * inc, :outc].set(w1_flat)
        w_cat = w_cat.at[k_c * inc:(k_c + 1) * inc, outc:].set(params["Wd"][0])
        w_cat = w_cat.astype(jnp.bfloat16)
        y1, z, m, v = conv_ds_stats(xg, w_cat, n, tn)
        m1, v1 = m[:, :outc], v[:, :outc]
        scd, shd = _bn_scale_shift(m[:, outc:], v[:, outc:], params["gd"], params["bd"])
    sc1, sh1 = _bn_scale_shift(m1, v1, params["g1"], params["b1"])

    # ---- BN1 + ReLU (lane-dense elementwise pass) ----
    h = bn_relu(y1, sc1, sh1, tn)                           # (npad, outc) bf16

    # ---- conv2 (ks^3, outc -> outc) ----
    w2 = jnp.pad(params["W2"].reshape(k * outc, outc),
                 ((0, kc2 - k * outc), (0, 0))).astype(jnp.bfloat16)
    hg = im2col_gather(h, nbr_t, kc2)
    y2, m2, v2 = conv_bn_stats(hg, w2, n, tn)
    sc2, sh2 = _bn_scale_shift(m2, v2, params["g2"], params["b2"])

    # ---- BN2 + residual + ReLU (lane-dense) ----
    if identity:
        ones = jnp.ones_like(sc2)
        zeros = jnp.zeros_like(sh2)
        out = bn_res_relu(y2, x_f32, sc2, sh2, ones, zeros, tn)
    else:
        out = bn_res_relu(y2, z, sc2, sh2, scd, shd, tn)
    return out[:n]


# ----------------------------------------------------------------------------
# Pure-JAX reference (mirrors the kernels' dtype staging: bf16 matmul operands,
# f32 accumulation, bf16-stored y1/y2/z/h, f32 BN epilogues)
# ----------------------------------------------------------------------------
def _ref_bn_stats(y):
    m = y.mean(0, keepdims=True)
    v = (y * y).mean(0, keepdims=True) - m * m
    return m, v


def _ref_conv(feats_bf, nbr, w):
    g = gather_neighbors(feats_bf, nbr)
    return jnp.einsum("knc,kcd->nd", g, w.astype(jnp.bfloat16),
                      preferred_element_type=jnp.float32)


def _ref_forward(feats, nbr, p, inc, outc):
    f_bf = feats.astype(jnp.bfloat16)
    y1 = _ref_conv(f_bf, nbr, p["W1"])
    m1, v1 = _ref_bn_stats(y1)
    sc1, sh1 = _bn_scale_shift(m1, v1, p["g1"], p["b1"])
    y1b = y1.astype(jnp.bfloat16).astype(jnp.float32)
    h = jnp.maximum(y1b * sc1 + sh1, 0.0).astype(jnp.bfloat16)

    y2 = _ref_conv(h, nbr, p["W2"])
    m2, v2 = _ref_bn_stats(y2)
    sc2, sh2 = _bn_scale_shift(m2, v2, p["g2"], p["b2"])
    y2b = y2.astype(jnp.bfloat16).astype(jnp.float32)

    if inc == outc:
        res = feats
    else:
        zf = jnp.dot(f_bf, p["Wd"][0].astype(jnp.bfloat16),
                     preferred_element_type=jnp.float32)
        md, vd = _ref_bn_stats(zf)
        scd, shd = _bn_scale_shift(md, vd, p["gd"], p["bd"])
        res = zf.astype(jnp.bfloat16).astype(jnp.float32) * scd + shd
    return jnp.maximum(y2b * sc2 + sh2 + res, 0.0)


# ----------------------------------------------------------------------------
# Demo / correctness check
# ----------------------------------------------------------------------------
if __name__ == "__main__":
    ks, dilation = 3, 1
    grid_size = 8
    n_points = 200                     # not a multiple of the tile -> exercises padding
    k_off = ks ** 3

    key = jax.random.PRNGKey(0)

    def run_case(case_key, inc, outc, label):
        keys = jax.random.split(case_key, 12)
        flat = jax.random.permutation(keys[0], grid_size ** 3)[:n_points]
        coords = jnp.stack(
            [flat // (grid_size * grid_size),
             (flat // grid_size) % grid_size,
             flat % grid_size], axis=-1).astype(jnp.int32)
        feats = jax.random.normal(keys[1], (n_points, inc), jnp.float32)
        params = {
            "W1": 0.1 * jax.random.normal(keys[2], (k_off, inc, outc), jnp.float32),
            "W2": 0.1 * jax.random.normal(keys[3], (k_off, outc, outc), jnp.float32),
            "Wd": 0.1 * jax.random.normal(keys[4], (1, inc, outc), jnp.float32),
            "g1": 1.0 + 0.1 * jax.random.normal(keys[5], (1, outc), jnp.float32),
            "b1": 0.1 * jax.random.normal(keys[6], (1, outc), jnp.float32),
            "g2": 1.0 + 0.1 * jax.random.normal(keys[7], (1, outc), jnp.float32),
            "b2": 0.1 * jax.random.normal(keys[8], (1, outc), jnp.float32),
            "gd": 1.0 + 0.1 * jax.random.normal(keys[9], (1, outc), jnp.float32),
            "bd": 0.1 * jax.random.normal(keys[10], (1, outc), jnp.float32),
        }
        nbr = build_neighbor_map(coords, grid_size, ks=ks, dilation=dilation)

        fwd = jax.jit(lambda f, nb, p: residual_block_forward(f, nb, p, inc, outc))
        out = jax.block_until_ready(fwd(feats, nbr, params))

        ref = _ref_forward(feats, nbr, params, inc, outc)
        assert out.shape == (n_points, outc)
        max_err = float(jnp.max(jnp.abs(out - ref)))
        assert bool(jnp.allclose(out, ref, atol=1e-2, rtol=1e-2)), (
            f"{label}: mismatch vs reference (max abs err {max_err})")

    case_keys = jax.random.split(key, 2)
    run_case(case_keys[0], 16, 32, "downsample")   # inc != outc -> 1x1 conv + BN branch
    run_case(case_keys[1], 32, 32, "identity")     # inc == outc -> identity residual
    print("KERNEL_OK")
</pallas_src>

<mosaic_0001>
module attributes {stable_mosaic.version = 11 : i64} {
  func.func @_conv_ds_stats_kernel(%arg0: i32, %arg1: memref<256x512xbf16, #tpu.memory_space<vmem>>, %arg2: memref<512x64xbf16, #tpu.memory_space<vmem>>, %arg3: memref<256x32xbf16, #tpu.memory_space<vmem>>, %arg4: memref<256x32xbf16, #tpu.memory_space<vmem>>, %arg5: memref<1x1x64xf32, #tpu.memory_space<vmem>>, %arg6: memref<1x1x64xf32, #tpu.memory_space<vmem>>) attributes {dimension_semantics = [#tpu.dimension_semantics<parallel>], iteration_bounds = array<i64: 1>, scalar_prefetch = 0 : i64, scratch_operands = 0 : i64, tpu.core_type = #tpu.core_type<tc>, window_params = [{transform_indices = @transform_0, window_bounds = array<i64: 256, 512>}, {pipeline_mode = #tpu.pipeline_mode<synchronous>, transform_indices = @transform_1, window_bounds = array<i64: 512, 64>}, {transform_indices = @transform_2, window_bounds = array<i64: 256, 32>}, {transform_indices = @transform_3, window_bounds = array<i64: 256, 32>}, {transform_indices = @transform_4, window_bounds = array<i64: 1, 1, 64>}, {transform_indices = @transform_5, window_bounds = array<i64: 1, 1, 64>}]} {
    %c0 = arith.constant 0 : index
    %c0_0 = arith.constant 0 : index
    %0 = vector.load %arg1[%c0, %c0_0] : memref<256x512xbf16, #tpu.memory_space<vmem>>, vector<256x512xbf16>
    %c0_1 = arith.constant 0 : index
    %c0_2 = arith.constant 0 : index
    %1 = vector.load %arg2[%c0_1, %c0_2] : memref<512x64xbf16, #tpu.memory_space<vmem>>, vector<512x64xbf16>
    %cst = arith.constant dense<0.000000e+00> : vector<256x64xf32>
    %2 = tpu.matmul %0, %1, %cst {dimension_numbers = #tpu.dot_dimension_numbers<[1], [0], [0], [1], [0, 0, 1, 1], [], []>} : vector<256x512xbf16>, vector<512x64xbf16>, vector<256x64xf32> -> vector<256x64xf32>
    %3 = vector.extract_strided_slice %2 {offsets = [0, 0], sizes = [256, 32], strides = [1, 1]} : vector<256x64xf32> to vector<256x32xf32>
    %4 = arith.truncf %3 : vector<256x32xf32> to vector<256x32xbf16>
    %c0_3 = arith.constant 0 : index
    %c0_4 = arith.constant 0 : index
    %5 = vector.load %arg3[%c0_3, %c0_4] : memref<256x32xbf16, #tpu.memory_space<vmem>>, vector<256x32xbf16>
    tpu.vector_store %arg3[%c0_3, %c0_4], %4 {strides = array<i32>} : memref<256x32xbf16, #tpu.memory_space<vmem>>, vector<256x32xbf16>,
    %6 = vector.extract_strided_slice %2 {offsets = [0, 32], sizes = [256, 32], strides = [1, 1]} : vector<256x64xf32> to vector<256x32xf32>
    %7 = arith.truncf %6 : vector<256x32xf32> to vector<256x32xbf16>
    %c0_5 = arith.constant 0 : index
    %c0_6 = arith.constant 0 : index
    %8 = vector.load %arg4[%c0_5, %c0_6] : memref<256x32xbf16, #tpu.memory_space<vmem>>, vector<256x32xbf16>
    tpu.vector_store %arg4[%c0_5, %c0_6], %7 {strides = array<i32>} : memref<256x32xbf16, #tpu.memory_space<vmem>>, vector<256x32xbf16>,
    %cst_7 = arith.constant dense<0.000000e+00> : vector<64xf32>
    %9 = vector.multi_reduction <add>, %2, %cst_7 [0] : vector<256x64xf32> to vector<64xf32>
    %10 = vector.shape_cast %9 : vector<64xf32> to vector<1x64xf32>
    %c0_8 = arith.constant 0 : index
    %c0_9 = arith.constant 0 : index
    %c0_10 = arith.constant 0 : index
    %11 = vector.load %arg5[%c0_8, %c0_9, %c0_10] : memref<1x1x64xf32, #tpu.memory_space<vmem>>, vector<1x1x64xf32>
    %12 = vector.shape_cast %11 : vector<1x1x64xf32> to vector<1x64xf32>
    %13 = vector.shape_cast %10 : vector<1x64xf32> to vector<1x1x64xf32>
    tpu.vector_store %arg5[%c0_8, %c0_9, %c0_10], %13 {strides = array<i32>} : memref<1x1x64xf32, #tpu.memory_space<vmem>>, vector<1x1x64xf32>,
    %14 = arith.mulf %2, %2 : vector<256x64xf32>
    %cst_11 = arith.constant dense<0.000000e+00> : vector<64xf32>
    %15 = vector.multi_reduction <add>, %14, %cst_11 [0] : vector<256x64xf32> to vector<64xf32>
    %16 = vector.shape_cast %15 : vector<64xf32> to vector<1x64xf32>
    %c0_12 = arith.constant 0 : index
    %c0_13 = arith.constant 0 : index
    %c0_14 = arith.constant 0 : index
    %17 = vector.load %arg6[%c0_12, %c0_13, %c0_14] : memref<1x1x64xf32, #tpu.memory_space<vmem>>, vector<1x1x64xf32>
    %18 = vector.shape_cast %17 : vector<1x1x64xf32> to vector<1x64xf32>
    %19 = vector.shape_cast %16 : vector<1x64xf32> to vector<1x1x64xf32>
    tpu.vector_store %arg6[%c0_12, %c0_13, %c0_14], %19 {strides = array<i32>} : memref<1x1x64xf32, #tpu.memory_space<vmem>>, vector<1x1x64xf32>,
    return
  }
  func.func @transform_0(%arg0: i32) -> (i32, i32) {
    %c0_i32 = arith.constant 0 : i32
    %c0_i32_0 = arith.constant 0 : i32
    return %arg0, %c0_i32 : i32, i32
  }
  func.func @transform_1(%arg0: i32) -> (i32, i32) {
    %c0_i32 = arith.constant 0 : i32
    %c0_i32_0 = arith.constant 0 : i32
    %c0_i32_1 = arith.constant 0 : i32
    return %c0_i32, %c0_i32_0 : i32, i32
  }
  func.func @transform_2(%arg0: i32) -> (i32, i32) {
    %c0_i32 = arith.constant 0 : i32
    %c0_i32_0 = arith.constant 0 : i32
    return %arg0, %c0_i32 : i32, i32
  }
  func.func @transform_3(%arg0: i32) -> (i32, i32) {
    %c0_i32 = arith.constant 0 : i32
    %c0_i32_0 = arith.constant 0 : i32
    return %arg0, %c0_i32 : i32, i32
  }
  func.func @transform_4(%arg0: i32) -> (i32, i32, i32) {
    %c0_i32 = arith.constant 0 : i32
    %c0_i32_0 = arith.constant 0 : i32
    %c0_i32_1 = arith.constant 0 : i32
    return %arg0, %c0_i32, %c0_i32_0 : i32, i32, i32
  }
  func.func @transform_5(%arg0: i32) -> (i32, i32, i32) {
    %c0_i32 = arith.constant 0 : i32
    %c0_i32_0 = arith.constant 0 : i32
    %c0_i32_1 = arith.constant 0 : i32
    return %arg0, %c0_i32, %c0_i32_0 : i32, i32, i32
  }
}

module attributes {stable_mosaic.version = 11 : i64} {
  func.func @_bn_relu_kernel(%arg0: i32, %arg1: memref<64x128xbf16, #tpu.memory_space<vmem>>, %arg2: memref<1x128xf32, #tpu.memory_space<vmem>>, %arg3: memref<1x128xf32, #tpu.memory_space<vmem>>, %arg4: memref<64x128xbf16, #tpu.memory_space<vmem>>) attributes {dimension_semantics = [#tpu.dimension_semantics<parallel>], iteration_bounds = array<i64: 1>, scalar_prefetch = 0 : i64, scratch_operands = 0 : i64, tpu.core_type = #tpu.core_type<tc>, window_params = [{transform_indices = @transform_0, window_bounds = array<i64: 64, 128>}, {pipeline_mode = #tpu.pipeline_mode<synchronous>, transform_indices = @transform_1, window_bounds = array<i64: 1, 128>}, {pipeline_mode = #tpu.pipeline_mode<synchronous>, transform_indices = @transform_2, window_bounds = array<i64: 1, 128>}, {transform_indices = @transform_3, window_bounds = array<i64: 64, 128>}]} {
    %c0 = arith.constant 0 : index
    %c0_0 = arith.constant 0 : index
    %0 = vector.load %arg1[%c0, %c0_0] : memref<64x128xbf16, #tpu.memory_space<vmem>>, vector<64x128xbf16>
    %1 = arith.extf %0 : vector<64x128xbf16> to vector<64x128xf32>
    %c0_1 = arith.constant 0 : index
    %c0_2 = arith.constant 0 : index
    %2 = vector.load %arg2[%c0_1, %c0_2] : memref<1x128xf32, #tpu.memory_space<vmem>>, vector<1x128xf32>
    %3 = vector.broadcast %2 : vector<1x128xf32> to vector<64x128xf32>
    %4 = arith.mulf %1, %3 : vector<64x128xf32>
    %c0_3 = arith.constant 0 : index
    %c0_4 = arith.constant 0 : index
    %5 = vector.load %arg3[%c0_3, %c0_4] : memref<1x128xf32, #tpu.memory_space<vmem>>, vector<1x128xf32>
    %6 = vector.broadcast %5 : vector<1x128xf32> to vector<64x128xf32>
    %7 = arith.addf %4, %6 : vector<64x128xf32>
    %cst = arith.constant 0.000000e+00 : f32
    %8 = vector.broadcast %cst : f32 to vector<64x128xf32>
    %9 = arith.maximumf %7, %8 : vector<64x128xf32>
    %10 = arith.truncf %9 : vector<64x128xf32> to vector<64x128xbf16>
    %c0_5 = arith.constant 0 : index
    %c0_6 = arith.constant 0 : index
    %11 = vector.load %arg4[%c0_5, %c0_6] : memref<64x128xbf16, #tpu.memory_space<vmem>>, vector<64x128xbf16>
    tpu.vector_store %arg4[%c0_5, %c0_6], %10 {strides = array<i32>} : memref<64x128xbf16, #tpu.memory_space<vmem>>, vector<64x128xbf16>,
    return
  }
  func.func @transform_0(%arg0: i32) -> (i32, i32) {
    %c0_i32 = arith.constant 0 : i32
    %c0_i32_0 = arith.constant 0 : i32
    return %arg0, %c0_i32 : i32, i32
  }
  func.func @transform_1(%arg0: i32) -> (i32, i32) {
    %c0_i32 = arith.constant 0 : i32
    %c0_i32_0 = arith.constant 0 : i32
    %c0_i32_1 = arith.constant 0 : i32
    return %c0_i32, %c0_i32_0 : i32, i32
  }
  func.func @transform_2(%arg0: i32) -> (i32, i32) {
    %c0_i32 = arith.constant 0 : i32
    %c0_i32_0 = arith.constant 0 : i32
    %c0_i32_1 = arith.constant 0 : i32
    return %c0_i32, %c0_i32_0 : i32, i32
  }
  func.func @transform_3(%arg0: i32) -> (i32, i32) {
    %c0_i32 = arith.constant 0 : i32
    %c0_i32_0 = arith.constant 0 : i32
    return %arg0, %c0_i32 : i32, i32
  }
}

module attributes {stable_mosaic.version = 11 : i64} {
  func.func @_conv_stats_kernel(%arg0: i32, %arg1: memref<256x896xbf16, #tpu.memory_space<vmem>>, %arg2: memref<896x32xbf16, #tpu.memory_space<vmem>>, %arg3: memref<256x32xbf16, #tpu.memory_space<vmem>>, %arg4: memref<1x1x32xf32, #tpu.memory_space<vmem>>, %arg5: memref<1x1x32xf32, #tpu.memory_space<vmem>>) attributes {dimension_semantics = [#tpu.dimension_semantics<parallel>], iteration_bounds = array<i64: 1>, scalar_prefetch = 0 : i64, scratch_operands = 0 : i64, tpu.core_type = #tpu.core_type<tc>, window_params = [{transform_indices = @transform_0, window_bounds = array<i64: 256, 896>}, {pipeline_mode = #tpu.pipeline_mode<synchronous>, transform_indices = @transform_1, window_bounds = array<i64: 896, 32>}, {transform_indices = @transform_2, window_bounds = array<i64: 256, 32>}, {transform_indices = @transform_3, window_bounds = array<i64: 1, 1, 32>}, {transform_indices = @transform_4, window_bounds = array<i64: 1, 1, 32>}]} {
    %c0 = arith.constant 0 : index
    %c0_0 = arith.constant 0 : index
    %0 = vector.load %arg1[%c0, %c0_0] : memref<256x896xbf16, #tpu.memory_space<vmem>>, vector<256x896xbf16>
    %c0_1 = arith.constant 0 : index
    %c0_2 = arith.constant 0 : index
    %1 = vector.load %arg2[%c0_1, %c0_2] : memref<896x32xbf16, #tpu.memory_space<vmem>>, vector<896x32xbf16>
    %cst = arith.constant dense<0.000000e+00> : vector<256x32xf32>
    %2 = tpu.matmul %0, %1, %cst {dimension_numbers = #tpu.dot_dimension_numbers<[1], [0], [0], [1], [0, 0, 1, 1], [], []>} : vector<256x896xbf16>, vector<896x32xbf16>, vector<256x32xf32> -> vector<256x32xf32>
    %3 = arith.truncf %2 : vector<256x32xf32> to vector<256x32xbf16>
    %c0_3 = arith.constant 0 : index
    %c0_4 = arith.constant 0 : index
    %4 = vector.load %arg3[%c0_3, %c0_4] : memref<256x32xbf16, #tpu.memory_space<vmem>>, vector<256x32xbf16>
    tpu.vector_store %arg3[%c0_3, %c0_4], %3 {strides = array<i32>} : memref<256x32xbf16, #tpu.memory_space<vmem>>, vector<256x32xbf16>,
    %cst_5 = arith.constant dense<0.000000e+00> : vector<32xf32>
    %5 = vector.multi_reduction <add>, %2, %cst_5 [0] : vector<256x32xf32> to vector<32xf32>
    %6 = vector.shape_cast %5 : vector<32xf32> to vector<1x32xf32>
    %c0_6 = arith.constant 0 : index
    %c0_7 = arith.constant 0 : index
    %c0_8 = arith.constant 0 : index
    %7 = vector.load %arg4[%c0_6, %c0_7, %c0_8] : memref<1x1x32xf32, #tpu.memory_space<vmem>>, vector<1x1x32xf32>
    %8 = vector.shape_cast %7 : vector<1x1x32xf32> to vector<1x32xf32>
    %9 = vector.shape_cast %6 : vector<1x32xf32> to vector<1x1x32xf32>
    tpu.vector_store %arg4[%c0_6, %c0_7, %c0_8], %9 {strides = array<i32>} : memref<1x1x32xf32, #tpu.memory_space<vmem>>, vector<1x1x32xf32>,
    %10 = arith.mulf %2, %2 : vector<256x32xf32>
    %cst_9 = arith.constant dense<0.000000e+00> : vector<32xf32>
    %11 = vector.multi_reduction <add>, %10, %cst_9 [0] : vector<256x32xf32> to vector<32xf32>
    %12 = vector.shape_cast %11 : vector<32xf32> to vector<1x32xf32>
    %c0_10 = arith.constant 0 : index
    %c0_11 = arith.constant 0 : index
    %c0_12 = arith.constant 0 : index
    %13 = vector.load %arg5[%c0_10, %c0_11, %c0_12] : memref<1x1x32xf32, #tpu.memory_space<vmem>>, vector<1x1x32xf32>
    %14 = vector.shape_cast %13 : vector<1x1x32xf32> to vector<1x32xf32>
    %15 = vector.shape_cast %12 : vector<1x32xf32> to vector<1x1x32xf32>
    tpu.vector_store %arg5[%c0_10, %c0_11, %c0_12], %15 {strides = array<i32>} : memref<1x1x32xf32, #tpu.memory_space<vmem>>, vector<1x1x32xf32>,
    return
  }
  func.func @transform_0(%arg0: i32) -> (i32, i32) {
    %c0_i32 = arith.constant 0 : i32
    %c0_i32_0 = arith.constant 0 : i32
    return %arg0, %c0_i32 : i32, i32
  }
  func.func @transform_1(%arg0: i32) -> (i32, i32) {
    %c0_i32 = arith.constant 0 : i32
    %c0_i32_0 = arith.constant 0 : i32
    %c0_i32_1 = arith.constant 0 : i32
    return %c0_i32, %c0_i32_0 : i32, i32
  }
  func.func @transform_2(%arg0: i32) -> (i32, i32) {
    %c0_i32 = arith.constant 0 : i32
    %c0_i32_0 = arith.constant 0 : i32
    return %arg0, %c0_i32 : i32, i32
  }
  func.func @transform_3(%arg0: i32) -> (i32, i32, i32) {
    %c0_i32 = arith.constant 0 : i32
    %c0_i32_0 = arith.constant 0 : i32
    %c0_i32_1 = arith.constant 0 : i32
    return %arg0, %c0_i32, %c0_i32_0 : i32, i32, i32
  }
  func.func @transform_4(%arg0: i32) -> (i32, i32, i32) {
    %c0_i32 = arith.constant 0 : i32
    %c0_i32_0 = arith.constant 0 : i32
    %c0_i32_1 = arith.constant 0 : i32
    return %arg0, %c0_i32, %c0_i32_0 : i32, i32, i32
  }
}

module attributes {stable_mosaic.version = 11 : i64} {
  func.func @_bn_res_relu_kernel(%arg0: i32, %arg1: memref<64x128xbf16, #tpu.memory_space<vmem>>, %arg2: memref<64x128xbf16, #tpu.memory_space<vmem>>, %arg3: memref<1x128xf32, #tpu.memory_space<vmem>>, %arg4: memref<1x128xf32, #tpu.memory_space<vmem>>, %arg5: memref<1x128xf32, #tpu.memory_space<vmem>>, %arg6: memref<1x128xf32, #tpu.memory_space<vmem>>, %arg7: memref<64x128xf32, #tpu.memory_space<vmem>>) attributes {dimension_semantics = [#tpu.dimension_semantics<parallel>], iteration_bounds = array<i64: 1>, scalar_prefetch = 0 : i64, scratch_operands = 0 : i64, tpu.core_type = #tpu.core_type<tc>, window_params = [{transform_indices = @transform_0, window_bounds = array<i64: 64, 128>}, {transform_indices = @transform_1, window_bounds = array<i64: 64, 128>}, {pipeline_mode = #tpu.pipeline_mode<synchronous>, transform_indices = @transform_2, window_bounds = array<i64: 1, 128>}, {pipeline_mode = #tpu.pipeline_mode<synchronous>, transform_indices = @transform_3, window_bounds = array<i64: 1, 128>}, {pipeline_mode = #tpu.pipeline_mode<synchronous>, transform_indices = @transform_4, window_bounds = array<i64: 1, 128>}, {pipeline_mode = #tpu.pipeline_mode<synchronous>, transform_indices = @transform_5, window_bounds = array<i64: 1, 128>}, {transform_indices = @transform_6, window_bounds = array<i64: 64, 128>}]} {
    %c0 = arith.constant 0 : index
    %c0_0 = arith.constant 0 : index
    %0 = vector.load %arg1[%c0, %c0_0] : memref<64x128xbf16, #tpu.memory_space<vmem>>, vector<64x128xbf16>
    %1 = arith.extf %0 : vector<64x128xbf16> to vector<64x128xf32>
    %c0_1 = arith.constant 0 : index
    %c0_2 = arith.constant 0 : index
    %2 = vector.load %arg2[%c0_1, %c0_2] : memref<64x128xbf16, #tpu.memory_space<vmem>>, vector<64x128xbf16>
    %3 = arith.extf %2 : vector<64x128xbf16> to vector<64x128xf32>
    %c0_3 = arith.constant 0 : index
    %c0_4 = arith.constant 0 : index
    %4 = vector.load %arg3[%c0_3, %c0_4] : memref<1x128xf32, #tpu.memory_space<vmem>>, vector<1x128xf32>
    %5 = vector.broadcast %4 : vector<1x128xf32> to vector<64x128xf32>
    %6 = arith.mulf %1, %5 : vector<64x128xf32>
    %c0_5 = arith.constant 0 : index
    %c0_6 = arith.constant 0 : index
    %7 = vector.load %arg4[%c0_5, %c0_6] : memref<1x128xf32, #tpu.memory_space<vmem>>, vector<1x128xf32>
    %8 = vector.broadcast %7 : vector<1x128xf32> to vector<64x128xf32>
    %9 = arith.addf %6, %8 : vector<64x128xf32>
    %c0_7 = arith.constant 0 : index
    %c0_8 = arith.constant 0 : index
    %10 = vector.load %arg5[%c0_7, %c0_8] : memref<1x128xf32, #tpu.memory_space<vmem>>, vector<1x128xf32>
    %11 = vector.broadcast %10 : vector<1x128xf32> to vector<64x128xf32>
    %12 = arith.mulf %3, %11 : vector<64x128xf32>
    %13 = arith.addf %9, %12 : vector<64x128xf32>
    %c0_9 = arith.constant 0 : index
    %c0_10 = arith.constant 0 : index
    %14 = vector.load %arg6[%c0_9, %c0_10] : memref<1x128xf32, #tpu.memory_space<vmem>>, vector<1x128xf32>
    %15 = vector.broadcast %14 : vector<1x128xf32> to vector<64x128xf32>
    %16 = arith.addf %13, %15 : vector<64x128xf32>
    %cst = arith.constant 0.000000e+00 : f32
    %17 = vector.broadcast %cst : f32 to vector<64x128xf32>
    %18 = arith.maximumf %16, %17 : vector<64x128xf32>
    %c0_11 = arith.constant 0 : index
    %c0_12 = arith.constant 0 : index
    %19 = vector.load %arg7[%c0_11, %c0_12] : memref<64x128xf32, #tpu.memory_space<vmem>>, vector<64x128xf32>
    tpu.vector_store %arg7[%c0_11, %c0_12], %18 {strides = array<i32>} : memref<64x128xf32, #tpu.memory_space<vmem>>, vector<64x128xf32>,
    return
  }
  func.func @transform_0(%arg0: i32) -> (i32, i32) {
    %c0_i32 = arith.constant 0 : i32
    %c0_i32_0 = arith.constant 0 : i32
    return %arg0, %c0_i32 : i32, i32
  }
  func.func @transform_1(%arg0: i32) -> (i32, i32) {
    %c0_i32 = arith.constant 0 : i32
    %c0_i32_0 = arith.constant 0 : i32
    return %arg0, %c0_i32 : i32, i32
  }
  func.func @transform_2(%arg0: i32) -> (i32, i32) {
    %c0_i32 = arith.constant 0 : i32
    %c0_i32_0 = arith.constant 0 : i32
    %c0_i32_1 = arith.constant 0 : i32
    return %c0_i32, %c0_i32_0 : i32, i32
  }
  func.func @transform_3(%arg0: i32) -> (i32, i32) {
    %c0_i32 = arith.constant 0 : i32
    %c0_i32_0 = arith.constant 0 : i32
    %c0_i32_1 = arith.constant 0 : i32
    return %c0_i32, %c0_i32_0 : i32, i32
  }
  func.func @transform_4(%arg0: i32) -> (i32, i32) {
    %c0_i32 = arith.constant 0 : i32
    %c0_i32_0 = arith.constant 0 : i32
    %c0_i32_1 = arith.constant 0 : i32
    return %c0_i32, %c0_i32_0 : i32, i32
  }
  func.func @transform_5(%arg0: i32) -> (i32, i32) {
    %c0_i32 = arith.constant 0 : i32
    %c0_i32_0 = arith.constant 0 : i32
    %c0_i32_1 = arith.constant 0 : i32
    return %c0_i32, %c0_i32_0 : i32, i32
  }
  func.func @transform_6(%arg0: i32) -> (i32, i32) {
    %c0_i32 = arith.constant 0 : i32
    %c0_i32_0 = arith.constant 0 : i32
    return %arg0, %c0_i32 : i32, i32
  }
}

</mosaic_0001>

<llo_original>
// kernel: _lambda_.5
$region0: #{_lambda_.5}
  #allocation0 [shape = 'u32[]', space=smem, size = 0x4, offset = 0x4, fixed_abs, tag = 'smem constant byte address 0x4 - core index']
  #allocation1 [shape = 'u32[144,128]{1,0:T(1,128)}', space=vmem, size = 0x12000, scoped, tag = 'internal scratch']
  %s0 = inlined_call_operand.vmem [shape: bf16[64,128], index: 0, kind: input, shape index: {}]
  %s1 = inlined_call_operand.vmem [shape: f32[1,128], index: 1, kind: input, shape index: {}]
  %s2 = inlined_call_operand.vmem [shape: f32[1,128], index: 2, kind: input, shape index: {}]
  %s3 = inlined_call_operand.vmem [shape: bf16[64,128], index: 3, kind: output, shape index: {}]
  %s4 = sld [smem:[#allocation0]]
  $region22: #{_lambda_.5} parent=0
    _
  %s6 = ssub.s32 1, %s4
  %s7 = scalar_select 0, %s6, %s4
  // Predicated region
  $region2: #{_lambda_.5} parent=0 // pred_check
    _
  $region3: #{_lambda_.5} parent=0 // pred_check_branch
    %9 = sbr.rel (0) target = $region5
  $region4: #{_lambda_.5} parent=0 // pred_region
    _
  $region5: #{_lambda_.5} parent=0 // pred_fallthru
    _
  // Predicated region
  $region6: #{_lambda_.5} parent=0 // pred_check
    _
  $region7: #{_lambda_.5} parent=0 // pred_check_branch
    %11 = sbr.rel (0) target = $region9
  $region8: #{_lambda_.5} parent=0 // pred_region
    _
  $region9: #{_lambda_.5} parent=0 // pred_fallthru
    _
  // Predicated region
  $region10: #{_lambda_.5} parent=0 // pred_check
    _
  $region11: #{_lambda_.5} parent=0 // pred_check_branch
    %13 = sbr.rel (0) target = $region13
  $region12: #{_lambda_.5} parent=0 // pred_region
    _
  $region13: #{_lambda_.5} parent=0 // pred_fallthru
    _
  %v14 = vld [vmem:[%s0] sm:$0xf]
  %v15 = vld [vmem:[%s0 + $0x4] sm:$0xf]
  %v16 = vld [vmem:[%s0 + $0x8] sm:$0xf]
  %v17 = vld [vmem:[%s0 + $0xc] sm:$0xf]
  %v18 = vld [vmem:[%s0 + $0x10] sm:$0xf]
  %v19 = vld [vmem:[%s0 + $0x14] sm:$0xf]
  %v20 = vld [vmem:[%s0 + $0x18] sm:$0xf]
  %v21 = vld [vmem:[%s0 + $0x1c] sm:$0xf]
  %v22 = vunpack.c.l.bf16 %v14
  %v23 = vunpack.c.l.bf16 %v15
  %v24 = vunpack.c.l.bf16 %v16
  %v25 = vunpack.c.l.bf16 %v17
  %v26 = vunpack.c.l.bf16 %v18
  %v27 = vunpack.c.l.bf16 %v19
  %v28 = vunpack.c.l.bf16 %v20
  %v29 = vunpack.c.l.bf16 %v21
  %v30 = vld [vmem:[%s1] sm:$0x1]
  %v32 = vlaneseq
  %v33 = vshrl.u32 %v32, 7
  %v34 = vsub.s32 0, %v33
  %v35 = vrot.slane %v30, %v34
  %v37 = vmul.f32 %v22, %v35
  %v38 = vmul.f32 %v23, %v35
  %v39 = vmul.f32 %v24, %v35
  %v40 = vmul.f32 %v25, %v35
  %v41 = vmul.f32 %v26, %v35
  %v42 = vmul.f32 %v27, %v35
  %v43 = vmul.f32 %v28, %v35
  %v44 = vmul.f32 %v29, %v35
  %v45 = vld [vmem:[%s2] sm:$0x1]
  %v47 = vlaneseq
  %v48 = vshrl.u32 %v47, 7
  %v49 = vsub.s32 0, %v48
  %v50 = vrot.slane %v45, %v49
  %v52 = vadd.f32 %v37, %v50
  %v53 = vadd.f32 %v38, %v50
  %v54 = vadd.f32 %v39, %v50
  %v55 = vadd.f32 %v40, %v50
  %v56 = vadd.f32 %v41, %v50
  %v57 = vadd.f32 %v42, %v50
  %v58 = vadd.f32 %v43, %v50
  %v59 = vadd.f32 %v44, %v50
  %v60 = vmax.f32 %v52, 0.0
  %v61 = vmax.f32 %v53, 0.0
  %v62 = vmax.f32 %v54, 0.0
  %v63 = vmax.f32 %v55, 0.0
  %v64 = vmax.f32 %v56, 0.0
  %v65 = vmax.f32 %v57, 0.0
  %v66 = vmax.f32 %v58, 0.0
  %v67 = vmax.f32 %v59, 0.0
  %v68 = vpack.c.bf16 %v61, %v60
  %v69 = vpack.c.bf16 %v63, %v62
  %v70 = vpack.c.bf16 %v65, %v64
  %v71 = vpack.c.bf16 %v67, %v66
  %v76 = vunpack.c.l.b16 %v68
  %v77 = vunpack.c.h.b16 %v68
  %v78 = vunpack.c.l.b16 %v69
  %v79 = vunpack.c.h.b16 %v69
  %v80 = vunpack.c.l.b16 %v70
  %v81 = vunpack.c.h.b16 %v70
  %v82 = vunpack.c.l.b16 %v71
  %v83 = vunpack.c.h.b16 %v71
  %v84 = vpack.c.b16 %v76, %v76
  %v85 = vpack.c.b16 %v77, %v77
  %v86 = vpack.c.b16 %v78, %v78
  %v87 = vpack.c.b16 %v79, %v79
  %v88 = vpack.c.b16 %v80, %v80
  %v89 = vpack.c.b16 %v81, %v81
  %v90 = vpack.c.b16 %v82, %v82
  %v91 = vpack.c.b16 %v83, %v83
  %100 = vst [vmem:[%s3] sm:$0xf] %v84
  %101 = vst [vmem:[%s3 + $0x4] sm:$0xf] %v85
  %102 = vst [vmem:[%s3 + $0x8] sm:$0xf] %v86
  %103 = vst [vmem:[%s3 + $0xc] sm:$0xf] %v87
  %104 = vst [vmem:[%s3 + $0x10] sm:$0xf] %v88
  %105 = vst [vmem:[%s3 + $0x14] sm:$0xf] %v89
  %106 = vst [vmem:[%s3 + $0x18] sm:$0xf] %v90
  %107 = vst [vmem:[%s3 + $0x1c] sm:$0xf] %v91
  // Predicated region
  $region14: #{_lambda_.5} parent=0 // pred_check
    _
  $region15: #{_lambda_.5} parent=0 // pred_check_branch
    %109 = sbr.rel (0) target = $region17
  $region16: #{_lambda_.5} parent=0 // pred_region
    _
  $region17: #{_lambda_.5} parent=0 // pred_fallthru
    _
  // Predicated region
  $region18: #{_lambda_.5} parent=0 // pred_check
    _
  $region19: #{_lambda_.5} parent=0 // pred_check_branch
    %111 = sbr.rel (0) target = $region21
  $region20: #{_lambda_.5} parent=0 // pred_region
    _
  $region21: #{_lambda_.5} parent=0 // pred_fallthru
    _

// kernel: _lambda_.4
$region0: #{_lambda_.4}
  #allocation0 [shape = 'u32[]', space=smem, size = 0x4, offset = 0x4, fixed_abs, tag = 'smem constant byte address 0x4 - core index']
  #allocation1 [shape = 'u32[144,128]{1,0:T(1,128)}', space=vmem, size = 0x12000, scoped, tag = 'internal scratch']
  %s0 = inlined_call_operand.vmem [shape: bf16[256,512], index: 0, kind: input, shape index: {}]
  %s1 = inlined_call_operand.vmem [shape: bf16[512,64], index: 1, kind: input, shape index: {}]
  %s2 = inlined_call_operand.vmem [shape: bf16[256,32], index: 2, kind: output, shape index: {0}]
  %s3 = inlined_call_operand.vmem [shape: bf16[256,32], index: 3, kind: output, shape index: {1}]
  %s4 = inlined_call_operand.vmem [shape: f32[1,1,64], index: 4, kind: output, shape index: {2}]
  %s5 = inlined_call_operand.vmem [shape: f32[1,1,64], index: 5, kind: output, shape index: {3}]
  %6 = xla_tuple %s2, %s3, %s4, %s5
  %s7 = sld [smem:[#allocation0]]
  $region42: #{_lambda_.4} parent=0
    _
  %s9 = ssub.s32 1, %s7
  %s10 = scalar_select 0, %s9, %s7
  // Predicated region
  $region2: #{_lambda_.4} parent=0 // pred_check
    _
  $region3: #{_lambda_.4} parent=0 // pred_check_branch
    %12 = sbr.rel (0) target = $region5
  $region4: #{_lambda_.4} parent=0 // pred_region
    _
  $region5: #{_lambda_.4} parent=0 // pred_fallthru
    _
  // Predicated region
  $region6: #{_lambda_.4} parent=0 // pred_check
    _
  $region7: #{_lambda_.4} parent=0 // pred_check_branch
    %14 = sbr.rel (0) target = $region9
  $region8: #{_lambda_.4} parent=0 // pred_region
    _
  $region9: #{_lambda_.4} parent=0 // pred_fallthru
    _
  %v16 = vld [vmem:[%s0] sm:$0xff]
  %v17 = vld [vmem:[%s0 + $0x8] sm:$0xff]
  %v18 = vld [vmem:[%s0 + $0x10] sm:$0xff]
  %v19 = vld [vmem:[%s0 + $0x18] sm:$0xff]
  %v20 = vld [vmem:[%s0 + $0x20] sm:$0xff]
  %v21 = vld [vmem:[%s0 + $0x28] sm:$0xff]
  %v22 = vld [vmem:[%s0 + $0x30] sm:$0xff]
  %v23 = vld [vmem:[%s0 + $0x38] sm:$0xff]
  %v24 = vld [vmem:[%s0 + $0x40] sm:$0xff]
  %v25 = vld [vmem:[%s0 + $0x48] sm:$0xff]
  %v26 = vld [vmem:[%s0 + $0x50] sm:$0xff]
  %v27 = vld [vmem:[%s0 + $0x58] sm:$0xff]
  %v28 = vld [vmem:[%s0 + $0x60] sm:$0xff]
  %v29 = vld [vmem:[%s0 + $0x68] sm:$0xff]
  %v30 = vld [vmem:[%s0 + $0x70] sm:$0xff]
  %v31 = vld [vmem:[%s0 + $0x78] sm:$0xff]
  %v32 = vld [vmem:[%s0 + $0x80] sm:$0xff]
  %v33 = vld [vmem:[%s0 + $0x88] sm:$0xff]
  %v34 = vld [vmem:[%s0 + $0x90] sm:$0xff]
  %v35 = vld [vmem:[%s0 + $0x98] sm:$0xff]
  %v36 = vld [vmem:[%s0 + $0xa0] sm:$0xff]
  %v37 = vld [vmem:[%s0 + $0xa8] sm:$0xff]
  %v38 = vld [vmem:[%s0 + $0xb0] sm:$0xff]
  %v39 = vld [vmem:[%s0 + $0xb8] sm:$0xff]
  %v40 = vld [vmem:[%s0 + $0xc0] sm:$0xff]
  %v41 = vld [vmem:[%s0 + $0xc8] sm:$0xff]
  %v42 = vld [vmem:[%s0 + $0xd0] sm:$0xff]
  %v43 = vld [vmem:[%s0 + $0xd8] sm:$0xff]
  %v44 = vld [vmem:[%s0 + $0xe0] sm:$0xff]
  %v45 = vld [vmem:[%s0 + $0xe8] sm:$0xff]
  %v46 = vld [vmem:[%s0 + $0xf0] sm:$0xff]
  %v47 = vld [vmem:[%s0 + $0xf8] sm:$0xff]
  %v48 = vld [vmem:[%s0 + $0x100] sm:$0xff]
  %v49 = vld [vmem:[%s0 + $0x108] sm:$0xff]
  %v50 = vld [vmem:[%s0 + $0x110] sm:$0xff]
  %v51 = vld [vmem:[%s0 + $0x118] sm:$0xff]
  %v52 = vld [vmem:[%s0 + $0x120] sm:$0xff]
  %v53 = vld [vmem:[%s0 + $0x128] sm:$0xff]
  %v54 = vld [vmem:[%s0 + $0x130] sm:$0xff]
  %v55 = vld [vmem:[%s0 + $0x138] sm:$0xff]
  %v56 = vld [vmem:[%s0 + $0x140] sm:$0xff]
  %v57 = vld [vmem:[%s0 + $0x148] sm:$0xff]
  %v58 = vld [vmem:[%s0 + $0x150] sm:$0xff]
  %v59 = vld [vmem:[%s0 + $0x158] sm:$0xff]
  %v60 = vld [vmem:[%s0 + $0x160] sm:$0xff]
  %v61 = vld [vmem:[%s0 + $0x168] sm:$0xff]
  %v62 = vld [vmem:[%s0 + $0x170] sm:$0xff]
  %v63 = vld [vmem:[%s0 + $0x178] sm:$0xff]
  %v64 = vld [vmem:[%s0 + $0x180] sm:$0xff]
  %v65 = vld [vmem:[%s0 + $0x188] sm:$0xff]
  %v66 = vld [vmem:[%s0 + $0x190] sm:$0xff]
  %v67 = vld [vmem:[%s0 + $0x198] sm:$0xff]
  %v68 = vld [vmem:[%s0 + $0x1a0] sm:$0xff]
  %v69 = vld [vmem:[%s0 + $0x1a8] sm:$0xff]
  %v70 = vld [vmem:[%s0 + $0x1b0] sm:$0xff]
  %v71 = vld [vmem:[%s0 + $0x1b8] sm:$0xff]
  %v72 = vld [vmem:[%s0 + $0x1c0] sm:$0xff]
  %v73 = vld [vmem:[%s0 + $0x1c8] sm:$0xff]
  %v74 = vld [vmem:[%s0 + $0x1d0] sm:$0xff]
  %v75 = vld [vmem:[%s0 + $0x1d8] sm:$0xff]
  %v76 = vld [vmem:[%s0 + $0x1e0] sm:$0xff]
  %v77 = vld [vmem:[%s0 + $0x1e8] sm:$0xff]
  %v78 = vld [vmem:[%s0 + $0x1f0] sm:$0xff]
  %v79 = vld [vmem:[%s0 + $0x1f8] sm:$0xff]
  %v80 = vld [vmem:[%s1] sm:$0xf]
  %v81 = vld [vmem:[%s1 + $0x4] sm:$0xf]
  %v82 = vld [vmem:[%s1 + $0x8] sm:$0xf]
  %v83 = vld [vmem:[%s1 + $0xc] sm:$0xf]
  %v84 = vld [vmem:[%s1 + $0x10] sm:$0xf]
  %v85 = vld [vmem:[%s1 + $0x14] sm:$0xf]
  %v86 = vld [vmem:[%s1 + $0x18] sm:$0xf]
  %v87 = vld [vmem:[%s1 + $0x1c] sm:$0xf]
  %v88 = vld [vmem:[%s1 + $0x20] sm:$0xf]
  %v89 = vld [vmem:[%s1 + $0x24] sm:$0xf]
  %v90 = vld [vmem:[%s1 + $0x28] sm:$0xf]
  %v91 = vld [vmem:[%s1 + $0x2c] sm:$0xf]
  %v92 = vld [vmem:[%s1 + $0x30] sm:$0xf]
  %v93 = vld [vmem:[%s1 + $0x34] sm:$0xf]
  %v94 = vld [vmem:[%s1 + $0x38] sm:$0xf]
  %v95 = vld [vmem:[%s1 + $0x3c] sm:$0xf]
  %v96 = vld [vmem:[%s1 + $0x40] sm:$0xf]
  %v97 = vld [vmem:[%s1 + $0x44] sm:$0xf]
  %v98 = vld [vmem:[%s1 + $0x48] sm:$0xf]
  %v99 = vld [vmem:[%s1 + $0x4c] sm:$0xf]
  %v100 = vld [vmem:[%s1 + $0x50] sm:$0xf]
  %v101 = vld [vmem:[%s1 + $0x54] sm:$0xf]
  %v102 = vld [vmem:[%s1 + $0x58] sm:$0xf]
  %v103 = vld [vmem:[%s1 + $0x5c] sm:$0xf]
  %v104 = vld [vmem:[%s1 + $0x60] sm:$0xf]
  %v105 = vld [vmem:[%s1 + $0x64] sm:$0xf]
  %v106 = vld [vmem:[%s1 + $0x68] sm:$0xf]
  %v107 = vld [vmem:[%s1 + $0x6c] sm:$0xf]
  %v108 = vld [vmem:[%s1 + $0x70] sm:$0xf]
  %v109 = vld [vmem:[%s1 + $0x74] sm:$0xf]
  %v110 = vld [vmem:[%s1 + $0x78] sm:$0xf]
  %v111 = vld [vmem:[%s1 + $0x7c] sm:$0xf]
  %v112 = vld [vmem:[%s1 + $0x80] sm:$0xf]
  %v113 = vld [vmem:[%s1 + $0x84] sm:$0xf]
  %v114 = vld [vmem:[%s1 + $0x88] sm:$0xf]
  %v115 = vld [vmem:[%s1 + $0x8c] sm:$0xf]
  %v116 = vld [vmem:[%s1 + $0x90] sm:$0xf]
  %v117 = vld [vmem:[%s1 + $0x94] sm:$0xf]
  %v118 = vld [vmem:[%s1 + $0x98] sm:$0xf]
  %v119 = vld [vmem:[%s1 + $0x9c] sm:$0xf]
  %v120 = vld [vmem:[%s1 + $0xa0] sm:$0xf]
  %v121 = vld [vmem:[%s1 + $0xa4] sm:$0xf]
  %v122 = vld [vmem:[%s1 + $0xa8] sm:$0xf]
  %v123 = vld [vmem:[%s1 + $0xac] sm:$0xf]
  %v124 = vld [vmem:[%s1 + $0xb0] sm:$0xf]
  %v125 = vld [vmem:[%s1 + $0xb4] sm:$0xf]
  %v126 = vld [vmem:[%s1 + $0xb8] sm:$0xf]
  %v127 = vld [vmem:[%s1 + $0xbc] sm:$0xf]
  %v128 = vld [vmem:[%s1 + $0xc0] sm:$0xf]
  %v129 = vld [vmem:[%s1 + $0xc4] sm:$0xf]
  %v130 = vld [vmem:[%s1 + $0xc8] sm:$0xf]
  %v131 = vld [vmem:[%s1 + $0xcc] sm:$0xf]
  %v132 = vld [vmem:[%s1 + $0xd0] sm:$0xf]
  %v133 = vld [vmem:[%s1 + $0xd4] sm:$0xf]
  %v134 = vld [vmem:[%s1 + $0xd8] sm:$0xf]
  %v135 = vld [vmem:[%s1 + $0xdc] sm:$0xf]
  %v136 = vld [vmem:[%s1 + $0xe0] sm:$0xf]
  %v137 = vld [vmem:[%s1 + $0xe4] sm:$0xf]
  %v138 = vld [vmem:[%s1 + $0xe8] sm:$0xf]
  %v139 = vld [vmem:[%s1 + $0xec] sm:$0xf]
  %v140 = vld [vmem:[%s1 + $0xf0] sm:$0xf]
  %v141 = vld [vmem:[%s1 + $0xf4] sm:$0xf]
  %v142 = vld [vmem:[%s1 + $0xf8] sm:$0xf]
  %v143 = vld [vmem:[%s1 + $0xfc] sm:$0xf]
  %v208 = vunpack.c.l.b16 %v16
  %v209 = vunpack.c.h.b16 %v16
  %v210 = vunpack.c.l.b16 %v17
  %v211 = vunpack.c.h.b16 %v17
  %v212 = vunpack.c.l.b16 %v18
  %v213 = vunpack.c.h.b16 %v18
  %v214 = vunpack.c.l.b16 %v19
  %v215 = vunpack.c.h.b16 %v19
  %v216 = vunpack.c.l.b16 %v20
  %v217 = vunpack.c.h.b16 %v20
  %v218 = vunpack.c.l.b16 %v21
  %v219 = vunpack.c.h.b16 %v21
  %v220 = vunpack.c.l.b16 %v22
  %v221 = vunpack.c.h.b16 %v22
  %v222 = vunpack.c.l.b16 %v23
  %v223 = vunpack.c.h.b16 %v23
  %v224 = vunpack.c.l.b16 %v24
  %v225 = vunpack.c.h.b16 %v24
  %v226 = vunpack.c.l.b16 %v25
  %v227 = vunpack.c.h.b16 %v25
  %v228 = vunpack.c.l.b16 %v26
  %v229 = vunpack.c.h.b16 %v26
  %v230 = vunpack.c.l.b16 %v27
  %v231 = vunpack.c.h.b16 %v27
  %v232 = vunpack.c.l.b16 %v28
  %v233 = vunpack.c.h.b16 %v28
  %v234 = vunpack.c.l.b16 %v29
  %v235 = vunpack.c.h.b16 %v29
  %v236 = vunpack.c.l.b16 %v30
  %v237 = vunpack.c.h.b16 %v30
  %v238 = vunpack.c.l.b16 %v31
  %v239 = vunpack.c.h.b16 %v31
  %v240 = vunpack.c.l.b16 %v32
  %v241 = vunpack.c.h.b16 %v32
  %v242 = vunpack.c.l.b16 %v33
  %v243 = vunpack.c.h.b16 %v33
  %v244 = vunpack.c.l.b16 %v34
  %v245 = vunpack.c.h.b16 %v34
  %v246 = vunpack.c.l.b16 %v35
  %v247 = vunpack.c.h.b16 %v35
  %v248 = vunpack.c.l.b16 %v36
  %v249 = vunpack.c.h.b16 %v36
  %v250 = vunpack.c.l.b16 %v37
  %v251 = vunpack.c.h.b16 %v37
  %v252 = vunpack.c.l.b16 %v38
  %v253 = vunpack.c.h.b16 %v38
  %v254 = vunpack.c.l.b16 %v39
  %v255 = vunpack.c.h.b16 %v39
  %v256 = vunpack.c.l.b16 %v40
  %v257 = vunpack.c.h.b16 %v40
  %v258 = vunpack.c.l.b16 %v41
  %v259 = vunpack.c.h.b16 %v41
  %v260 = vunpack.c.l.b16 %v42
  %v261 = vunpack.c.h.b16 %v42
  %v262 = vunpack.c.l.b16 %v43
  %v263 = vunpack.c.h.b16 %v43
  %v264 = vunpack.c.l.b16 %v44
  %v265 = vunpack.c.h.b16 %v44
  %v266 = vunpack.c.l.b16 %v45
  %v267 = vunpack.c.h.b16 %v45
  %v268 = vunpack.c.l.b16 %v46
  %v269 = vunpack.c.h.b16 %v46
  %v270 = vunpack.c.l.b16 %v47
  %v271 = vunpack.c.h.b16 %v47
  %v272 = vunpack.c.l.b16 %v48
  %v273 = vunpack.c.h.b16 %v48
  %v274 = vunpack.c.l.b16 %v49
  %v275 = vunpack.c.h.b16 %v49
  %v276 = vunpack.c.l.b16 %v50
  %v277 = vunpack.c.h.b16 %v50
  %v278 = vunpack.c.l.b16 %v51
  %v279 = vunpack.c.h.b16 %v51
  %v280 = vunpack.c.l.b16 %v52
  %v281 = vunpack.c.h.b16 %v52
  %v282 = vunpack.c.l.b16 %v53
  %v283 = vunpack.c.h.b16 %v53
  %v284 = vunpack.c.l.b16 %v54
  %v285 = vunpack.c.h.b16 %v54
  %v286 = vunpack.c.l.b16 %v55
  %v287 = vunpack.c.h.b16 %v55
  %v288 = vunpack.c.l.b16 %v56
  %v289 = vunpack.c.h.b16 %v56
  %v290 = vunpack.c.l.b16 %v57
  %v291 = vunpack.c.h.b16 %v57
  %v292 = vunpack.c.l.b16 %v58
  %v293 = vunpack.c.h.b16 %v58
  %v294 = vunpack.c.l.b16 %v59
  %v295 = vunpack.c.h.b16 %v59
  %v296 = vunpack.c.l.b16 %v60
  %v297 = vunpack.c.h.b16 %v60
  %v298 = vunpack.c.l.b16 %v61
  %v299 = vunpack.c.h.b16 %v61
  %v300 = vunpack.c.l.b16 %v62
  %v301 = vunpack.c.h.b16 %v62
  %v302 = vunpack.c.l.b16 %v63
  %v303 = vunpack.c.h.b16 %v63
  %v304 = vunpack.c.l.b16 %v64
  %v305 = vunpack.c.h.b16 %v64
  %v306 = vunpack.c.l.b16 %v65
  %v307 = vunpack.c.h.b16 %v65
  %v308 = vunpack.c.l.b16 %v66
  %v309 = vunpack.c.h.b16 %v66
  %v310 = vunpack.c.l.b16 %v67
  %v311 = vunpack.c.h.b16 %v67
  %v312 = vunpack.c.l.b16 %v68
  %v313 = vunpack.c.h.b16 %v68
  %v314 = vunpack.c.l.b16 %v69
  %v315 = vunpack.c.h.b16 %v69
  %v316 = vunpack.c.l.b16 %v70
  %v317 = vunpack.c.h.b16 %v70
  %v318 = vunpack.c.l.b16 %v71
  %v319 = vunpack.c.h.b16 %v71
  %v320 = vunpack.c.l.b16 %v72
  %v321 = vunpack.c.h.b16 %v72
  %v322 = vunpack.c.l.b16 %v73
  %v323 = vunpack.c.h.b16 %v73
  %v324 = vunpack.c.l.b16 %v74
  %v325 = vunpack.c.h.b16 %v74
  %v326 = vunpack.c.l.b16 %v75
  %v327 = vunpack.c.h.b16 %v75
  %v328 = vunpack.c.l.b16 %v76
  %v329 = vunpack.c.h.b16 %v76
  %v330 = vunpack.c.l.b16 %v77
  %v331 = vunpack.c.h.b16 %v77
  %v332 = vunpack.c.l.b16 %v78
  %v333 = vunpack.c.h.b16 %v78
  %v334 = vunpack.c.l.b16 %v79
  %v335 = vunpack.c.h.b16 %v79
  %v336 = vpack.c.b16 %v212, %v208
  %v337 = vpack.c.b16 %v213, %v209
  %v338 = vpack.c.b16 %v214, %v210
  %v339 = vpack.c.b16 %v215, %v211
  %v340 = vpack.c.b16 %v220, %v216
  %v341 = vpack.c.b16 %v221, %v217
  %v342 = vpack.c.b16 %v222, %v218
  %v343 = vpack.c.b16 %v223, %v219
  %v344 = vpack.c.b16 %v228, %v224
  %v345 = vpack.c.b16 %v229, %v225
  %v346 = vpack.c.b16 %v230, %v226
  %v347 = vpack.c.b16 %v231, %v227
  %v348 = vpack.c.b16 %v236, %v232
  %v349 = vpack.c.b16 %v237, %v233
  %v350 = vpack.c.b16 %v238, %v234
  %v351 = vpack.c.b16 %v239, %v235
  %v352 = vpack.c.b16 %v244, %v240
  %v353 = vpack.c.b16 %v245, %v241
  %v354 = vpack.c.b16 %v246, %v242
  %v355 = vpack.c.b16 %v247, %v243
  %v356 = vpack.c.b16 %v252, %v248
  %v357 = vpack.c.b16 %v253, %v249
  %v358 = vpack.c.b16 %v254, %v250
  %v359 = vpack.c.b16 %v255, %v251
  %v360 = vpack.c.b16 %v260, %v256
  %v361 = vpack.c.b16 %v261, %v257
  %v362 = vpack.c.b16 %v262, %v258
  %v363 = vpack.c.b16 %v263, %v259
  %v364 = vpack.c.b16 %v268, %v264
  %v365 = vpack.c.b16 %v269, %v265
  %v366 = vpack.c.b16 %v270, %v266
  %v367 = vpack.c.b16 %v271, %v267
  %v368 = vpack.c.b16 %v276, %v272
  %v369 = vpack.c.b16 %v277, %v273
  %v370 = vpack.c.b16 %v278, %v274
  %v371 = vpack.c.b16 %v279, %v275
  %v372 = vpack.c.b16 %v284, %v280
  %v373 = vpack.c.b16 %v285, %v281
  %v374 = vpack.c.b16 %v286, %v282
  %v375 = vpack.c.b16 %v287, %v283
  %v376 = vpack.c.b16 %v292, %v288
  %v377 = vpack.c.b16 %v293, %v289
  %v378 = vpack.c.b16 %v294, %v290
  %v379 = vpack.c.b16 %v295, %v291
  %v380 = vpack.c.b16 %v300, %v296
  %v381 = vpack.c.b16 %v301, %v297
  %v382 = vpack.c.b16 %v302, %v298
  %v383 = vpack.c.b16 %v303, %v299
  %v384 = vpack.c.b16 %v308, %v304
  %v385 = vpack.c.b16 %v309, %v305
  %v386 = vpack.c.b16 %v310, %v306
  %v387 = vpack.c.b16 %v311, %v307
  %v388 = vpack.c.b16 %v316, %v312
  %v389 = vpack.c.b16 %v317, %v313
  %v390 = vpack.c.b16 %v318, %v314
  %v391 = vpack.c.b16 %v319, %v315
  %v392 = vpack.c.b16 %v324, %v320
  %v393 = vpack.c.b16 %v325, %v321
  %v394 = vpack.c.b16 %v326, %v322
  %v395 = vpack.c.b16 %v327, %v323
  %v396 = vpack.c.b16 %v332, %v328
  %v397 = vpack.c.b16 %v333, %v329
  %v398 = vpack.c.b16 %v334, %v330
  %v399 = vpack.c.b16 %v335, %v331
  %v528 = vunpack.c.l.b16 %v80
  %v529 = vunpack.c.l.b16 %v81
  %v530 = vunpack.c.l.b16 %v82
  %v531 = vunpack.c.l.b16 %v83
  %v532 = vunpack.c.l.b16 %v84
  %v533 = vunpack.c.l.b16 %v85
  %v534 = vunpack.c.l.b16 %v86
  %v535 = vunpack.c.l.b16 %v87
  %v536 = vunpack.c.l.b16 %v88
  %v537 = vunpack.c.l.b16 %v89
  %v538 = vunpack.c.l.b16 %v90
  %v539 = vunpack.c.l.b16 %v91
  %v540 = vunpack.c.l.b16 %v92
  %v541 = vunpack.c.l.b16 %v93
  %v542 = vunpack.c.l.b16 %v94
  %v543 = vunpack.c.l.b16 %v95
  %v544 = vunpack.c.l.b16 %v96
  %v545 = vunpack.c.l.b16 %v97
  %v546 = vunpack.c.l.b16 %v98
  %v547 = vunpack.c.l.b16 %v99
  %v548 = vunpack.c.l.b16 %v100
  %v549 = vunpack.c.l.b16 %v101
  %v550 = vunpack.c.l.b16 %v102
  %v551 = vunpack.c.l.b16 %v103
  %v552 = vunpack.c.l.b16 %v104
  %v553 = vunpack.c.l.b16 %v105
  %v554 = vunpack.c.l.b16 %v106
  %v555 = vunpack.c.l.b16 %v107
  %v556 = vunpack.c.l.b16 %v108
  %v557 = vunpack.c.l.b16 %v109
  %v558 = vunpack.c.l.b16 %v110
  %v559 = vunpack.c.l.b16 %v111
  %v560 = vunpack.c.l.b16 %v112
  %v561 = vunpack.c.l.b16 %v113
  %v562 = vunpack.c.l.b16 %v114
  %v563 = vunpack.c.l.b16 %v115
  %v564 = vunpack.c.l.b16 %v116
  %v565 = vunpack.c.l.b16 %v117
  %v566 = vunpack.c.l.b16 %v118
  %v567 = vunpack.c.l.b16 %v119
  %v568 = vunpack.c.l.b16 %v120
  %v569 = vunpack.c.l.b16 %v121
  %v570 = vunpack.c.l.b16 %v122
  %v571 = vunpack.c.l.b16 %v123
  %v572 = vunpack.c.l.b16 %v124
  %v573 = vunpack.c.l.b16 %v125
  %v574 = vunpack.c.l.b16 %v126
  %v575 = vunpack.c.l.b16 %v127
  %v576 = vunpack.c.l.b16 %v128
  %v577 = vunpack.c.l.b16 %v129
  %v578 = vunpack.c.l.b16 %v130
  %v579 = vunpack.c.l.b16 %v131
  %v580 = vunpack.c.l.b16 %v132
  %v581 = vunpack.c.l.b16 %v133
  %v582 = vunpack.c.l.b16 %v134
  %v583 = vunpack.c.l.b16 %v135
  %v584 = vunpack.c.l.b16 %v136
  %v585 = vunpack.c.l.b16 %v137
  %v586 = vunpack.c.l.b16 %v138
  %v587 = vunpack.c.l.b16 %v139
  %v588 = vunpack.c.l.b16 %v140
  %v589 = vunpack.c.l.b16 %v141
  %v590 = vunpack.c.l.b16 %v142
  %v591 = vunpack.c.l.b16 %v143
  %v592 = vpack.c.b16 %v529, %v528
  %v593 = vpack.c.b16 %v531, %v530
  %v594 = vpack.c.b16 %v533, %v532
  %v595 = vpack.c.b16 %v535, %v534
  %v596 = vpack.c.b16 %v537, %v536
  %v597 = vpack.c.b16 %v539, %v538
  %v598 = vpack.c.b16 %v541, %v540
  %v599 = vpack.c.b16 %v543, %v542
  %v600 = vpack.c.b16 %v545, %v544
  %v601 = vpack.c.b16 %v547, %v546
  %v602 = vpack.c.b16 %v549, %v548
  %v603 = vpack.c.b16 %v551, %v550
  %v604 = vpack.c.b16 %v553, %v552
  %v605 = vpack.c.b16 %v555, %v554
  %v606 = vpack.c.b16 %v557, %v556
  %v607 = vpack.c.b16 %v559, %v558
  %v608 = vpack.c.b16 %v561, %v560
  %v609 = vpack.c.b16 %v563, %v562
  %v610 = vpack.c.b16 %v565, %v564
  %v611 = vpack.c.b16 %v567, %v566
  %v612 = vpack.c.b16 %v569, %v568
  %v613 = vpack.c.b16 %v571, %v570
  %v614 = vpack.c.b16 %v573, %v572
  %v615 = vpack.c.b16 %v575, %v574
  %v616 = vpack.c.b16 %v577, %v576
  %v617 = vpack.c.b16 %v579, %v578
  %v618 = vpack.c.b16 %v581, %v580
  %v619 = vpack.c.b16 %v583, %v582
  %v620 = vpack.c.b16 %v585, %v584
  %v621 = vpack.c.b16 %v587, %v586
  %v622 = vpack.c.b16 %v589, %v588
  %v623 = vpack.c.b16 %v591, %v590
  %656 = vmatprep.subr.bf16.mxu0 0
  %657 = vmatpush1.bf16.msra.mxu0 %v592
  %658 = vmatprep.subr.bf16.mxu0 0
  %659 = vmatpush1.bf16.msra.mxu0 %v593
  %660 = vmatprep.subr.bf16.mxu0 0
  %661 = vmatpush1.bf16.msra.mxu0 %v594
  %662 = vmatprep.subr.bf16.mxu0 0
  %663 = vmatpush1.bf16.msra.mxu0 %v595
  %664 = vmatprep.subr.bf16.mxu0 0
  %665 = vmatpush1.bf16.msra.mxu0 %v596
  %666 = vmatprep.subr.bf16.mxu0 0
  %667 = vmatpush1.bf16.msra.mxu0 %v597
  %668 = vmatprep.subr.bf16.mxu0 0
  %669 = vmatpush1.bf16.msra.mxu0 %v598
  %670 = vmatprep.subr.bf16.mxu0 0
  %671 = vmatpush1.bf16.msra.mxu0 %v599
  %672 = vmatprep.subr.bf16.mxu0 0
  %673 = vmatpush1.bf16.msra.mxu0 %v600
  %674 = vmatprep.subr.bf16.mxu0 0
  %675 = vmatpush1.bf16.msra.mxu0 %v601
  %676 = vmatprep.subr.bf16.mxu0 0
  %677 = vmatpush1.bf16.msra.mxu0 %v602
  %678 = vmatprep.subr.bf16.mxu0 0
  %679 = vmatpush1.bf16.msra.mxu0 %v603
  %680 = vmatprep.subr.bf16.mxu0 0
  %681 = vmatpush1.bf16.msra.mxu0 %v604
  %682 = vmatprep.subr.bf16.mxu0 0
  %683 = vmatpush1.bf16.msra.mxu0 %v605
  %684 = vmatprep.subr.bf16.mxu0 0
  %685 = vmatpush1.bf16.msra.mxu0 %v606
  %686 = vmatprep.subr.bf16.mxu0 0
  %687 = vmatpush1.bf16.msra.mxu0 %v607
  %688 = vmatprep.mubr.bf16.mxu0 %v337
  %689 = vmatmul.mubr.bf16.gmra.mrb[0].mxu0 %v336
  %v690 = vpop.f32.mrb[0].mxu0
  %v691 = vadd.f32 0.0, %v690
  %v692 = vpop.f32.mrb[0].mxu0
  %v693 = vpop.f32.mrb[0].mxu0
  %v694 = vadd.f32 0.0, %v693
  %v695 = vpop.f32.mrb[0].mxu0
  %696 = vmatprep.mubr.bf16.mxu0 %v341
  %697 = vmatmul.mubr.bf16.gmra.mrb[0].mxu0 %v340
  %v698 = vpop.f32.mrb[0].mxu0
  %v699 = vadd.f32 0.0, %v698
  %v700 = vpop.f32.mrb[0].mxu0
  %v701 = vpop.f32.mrb[0].mxu0
  %v702 = vadd.f32 0.0, %v701
  %v703 = vpop.f32.mrb[0].mxu0
  %704 = vmatprep.mubr.bf16.mxu0 %v345
  %705 = vmatmul.mubr.bf16.gmra.mrb[0].mxu0 %v344
  %v706 = vpop.f32.mrb[0].mxu0
  %v707 = vadd.f32 0.0, %v706
  %v708 = vpop.f32.mrb[0].mxu0
  %v709 = vpop.f32.mrb[0].mxu0
  %v710 = vadd.f32 0.0, %v709
  %v711 = vpop.f32.mrb[0].mxu0
  %712 = vmatprep.mubr.bf16.mxu0 %v349
  %713 = vmatmul.mubr.bf16.gmra.mrb[0].mxu0 %v348
  %v714 = vpop.f32.mrb[0].mxu0
  %v715 = vadd.f32 0.0, %v714
  %v716 = vpop.f32.mrb[0].mxu0
  %v717 = vpop.f32.mrb[0].mxu0
  %v718 = vadd.f32 0.0, %v717
  %v719 = vpop.f32.mrb[0].mxu0
  %720 = vmatprep.mubr.bf16.mxu0 %v353
  %721 = vmatmul.mubr.bf16.gmra.mrb[0].mxu0 %v352
  %v722 = vpop.f32.mrb[0].mxu0
  %v723 = vadd.f32 0.0, %v722
  %v724 = vpop.f32.mrb[0].mxu0
  %v725 = vpop.f32.mrb[0].mxu0
  %v726 = vadd.f32 0.0, %v725
  %v727 = vpop.f32.mrb[0].mxu0
  %728 = vmatprep.mubr.bf16.mxu0 %v357
  %729 = vmatmul.mubr.bf16.gmra.mrb[0].mxu0 %v356
  %v730 = vpop.f32.mrb[0].mxu0
  %v731 = vadd.f32 0.0, %v730
  %v732 = vpop.f32.mrb[0].mxu0
  %v733 = vpop.f32.mrb[0].mxu0
  %v734 = vadd.f32 0.0, %v733
  %v735 = vpop.f32.mrb[0].mxu0
  %736 = vmatprep.mubr.bf16.mxu0 %v361
  %737 = vmatmul.mubr.bf16.gmra.mrb[0].mxu0 %v360
  %v738 = vpop.f32.mrb[0].mxu0
  %v739 = vadd.f32 0.0, %v738
  %v740 = vpop.f32.mrb[0].mxu0
  %v741 = vpop.f32.mrb[0].mxu0
  %v742 = vadd.f32 0.0, %v741
  %v743 = vpop.f32.mrb[0].mxu0
  %744 = vmatprep.mubr.bf16.mxu0 %v365
  %745 = vmatmul.mubr.bf16.gmra.mrb[0].mxu0 %v364
  %v746 = vpop.f32.mrb[0].mxu0
  %v747 = vadd.f32 0.0, %v746
  %v748 = vpop.f32.mrb[0].mxu0
  %v749 = vpop.f32.mrb[0].mxu0
  %v750 = vadd.f32 0.0, %v749
  %v751 = vpop.f32.mrb[0].mxu0
  %752 = vmatprep.mubr.bf16.mxu0 %v369
  %753 = vmatmul.mubr.bf16.gmra.mrb[0].mxu0 %v368
  %v754 = vpop.f32.mrb[0].mxu0
  %v755 = vadd.f32 0.0, %v754
  %v756 = vpop.f32.mrb[0].mxu0
  %v757 = vpop.f32.mrb[0].mxu0
  %v758 = vadd.f32 0.0, %v757
  %v759 = vpop.f32.mrb[0].mxu0
  %760 = vmatprep.mubr.bf16.mxu0 %v373
  %761 = vmatmul.mubr.bf16.gmra.mrb[0].mxu0 %v372
  %v762 = vpop.f32.mrb[0].mxu0
  %v763 = vadd.f32 0.0, %v762
  %v764 = vpop.f32.mrb[0].mxu0
  %v765 = vpop.f32.mrb[0].mxu0
  %v766 = vadd.f32 0.0, %v765
  %v767 = vpop.f32.mrb[0].mxu0
  %768 = vmatprep.mubr.bf16.mxu0 %v377
  %769 = vmatmul.mubr.bf16.gmra.mrb[0].mxu0 %v376
  %v770 = vpop.f32.mrb[0].mxu0
  %v771 = vadd.f32 0.0, %v770
  %v772 = vpop.f32.mrb[0].mxu0
  %v773 = vpop.f32.mrb[0].mxu0
  %v774 = vadd.f32 0.0, %v773
  %v775 = vpop.f32.mrb[0].mxu0
  %776 = vmatprep.mubr.bf16.mxu0 %v381
  %777 = vmatmul.mubr.bf16.gmra.mrb[0].mxu0 %v380
  %v778 = vpop.f32.mrb[0].mxu0
  %v779 = vadd.f32 0.0, %v778
  %v780 = vpop.f32.mrb[0].mxu0
  %v781 = vpop.f32.mrb[0].mxu0
  %v782 = vadd.f32 0.0, %v781
  %v783 = vpop.f32.mrb[0].mxu0
  %784 = vmatprep.mubr.bf16.mxu0 %v385
  %785 = vmatmul.mubr.bf16.gmra.mrb[0].mxu0 %v384
  %v786 = vpop.f32.mrb[0].mxu0
  %v787 = vadd.f32 0.0, %v786
  %v788 = vpop.f32.mrb[0].mxu0
  %v789 = vpop.f32.mrb[0].mxu0
  %v790 = vadd.f32 0.0, %v789
  %v791 = vpop.f32.mrb[0].mxu0
  %792 = vmatprep.mubr.bf16.mxu0 %v389
  %793 = vmatmul.mubr.bf16.gmra.mrb[0].mxu0 %v388
  %v794 = vpop.f32.mrb[0].mxu0
  %v795 = vadd.f32 0.0, %v794
  %v796 = vpop.f32.mrb[0].mxu0
  %v797 = vpop.f32.mrb[0].mxu0
  %v798 = vadd.f32 0.0, %v797
  %v799 = vpop.f32.mrb[0].mxu0
  %800 = vmatprep.mubr.bf16.mxu0 %v393
  %801 = vmatmul.mubr.bf16.gmra.mrb[0].mxu0 %v392
  %v802 = vpop.f32.mrb[0].mxu0
  %v803 = vadd.f32 0.0, %v802
  %v804 = vpop.f32.mrb[0].mxu0
  %v805 = vpop.f32.mrb[0].mxu0
  %v806 = vadd.f32 0.0, %v805
  %v807 = vpop.f32.mrb[0].mxu0
  %808 = vmatprep.mubr.bf16.mxu0 %v397
  %809 = vmatmul.mubr.bf16.gmra.mrb[0].mxu0 %v396
  %v810 = vpop.f32.mrb[0].mxu0
  %v811 = vadd.f32 0.0, %v810
  %v812 = vpop.f32.mrb[0].mxu0
  %v813 = vpop.f32.mrb[0].mxu0
  %v814 = vadd.f32 0.0, %v813
  %v815 = vpop.f32.mrb[0].mxu0
  %816 = vdwg.mxu0
  %817 = vmatprep.subr.bf16.mxu0 0
  %818 = vmatpush1.bf16.msra.mxu0 %v608
  %819 = vmatprep.subr.bf16.mxu0 0
  %820 = vmatpush1.bf16.msra.mxu0 %v609
  %821 = vmatprep.subr.bf16.mxu0 0
  %822 = vmatpush1.bf16.msra.mxu0 %v610
  %823 = vmatprep.subr.bf16.mxu0 0
  %824 = vmatpush1.bf16.msra.mxu0 %v611
  %825 = vmatprep.subr.bf16.mxu0 0
  %826 = vmatpush1.bf16.msra.mxu0 %v612
  %827 = vmatprep.subr.bf16.mxu0 0
  %828 = vmatpush1.bf16.msra.mxu0 %v613
  %829 = vmatprep.subr.bf16.mxu0 0
  %830 = vmatpush1.bf16.msra.mxu0 %v614
  %831 = vmatprep.subr.bf16.mxu0 0
  %832 = vmatpush1.bf16.msra.mxu0 %v615
  %833 = vmatprep.subr.bf16.mxu0 0
  %834 = vmatpush1.bf16.msra.mxu0 %v616
  %835 = vmatprep.subr.bf16.mxu0 0
  %836 = vmatpush1.bf16.msra.mxu0 %v617
  %837 = vmatprep.subr.bf16.mxu0 0
  %838 = vmatpush1.bf16.msra.mxu0 %v618
  %839 = vmatprep.subr.bf16.mxu0 0
  %840 = vmatpush1.bf16.msra.mxu0 %v619
  %841 = vmatprep.subr.bf16.mxu0 0
  %842 = vmatpush1.bf16.msra.mxu0 %v620
  %843 = vmatprep.subr.bf16.mxu0 0
  %844 = vmatpush1.bf16.msra.mxu0 %v621
  %845 = vmatprep.subr.bf16.mxu0 0
  %846 = vmatpush1.bf16.msra.mxu0 %v622
  %847 = vmatprep.subr.bf16.mxu0 0
  %848 = vmatpush1.bf16.msra.mxu0 %v623
  %849 = vmatprep.mubr.bf16.mxu0 %v339
  %850 = vmatmul.mubr.bf16.gmra.mrb[0].mxu0 %v338
  %v851 = vpop.f32.mrb[0].mxu0
  %v852 = vadd.f32 %v691, %v851
  %v853 = vpop.f32.mrb[0].mxu0
  %v854 = vpop.f32.mrb[0].mxu0
  %v855 = vadd.f32 %v694, %v854
  %v856 = vpop.f32.mrb[0].mxu0
  %857 = vmatprep.mubr.bf16.mxu0 %v343
  %858 = vmatmul.mubr.bf16.gmra.mrb[0].mxu0 %v342
  %v859 = vpop.f32.mrb[0].mxu0
  %v860 = vadd.f32 %v699, %v859
  %v861 = vpop.f32.mrb[0].mxu0
  %v862 = vpop.f32.mrb[0].mxu0
  %v863 = vadd.f32 %v702, %v862
  %v864 = vpop.f32.mrb[0].mxu0
  %865 = vmatprep.mubr.bf16.mxu0 %v347
  %866 = vmatmul.mubr.bf16.gmra.mrb[0].mxu0 %v346
  %v867 = vpop.f32.mrb[0].mxu0
  %v868 = vadd.f32 %v707, %v867
  %v869 = vpop.f32.mrb[0].mxu0
  %v870 = vpop.f32.mrb[0].mxu0
  %v871 = vadd.f32 %v710, %v870
  %v872 = vpop.f32.mrb[0].mxu0
  %873 = vmatprep.mubr.bf16.mxu0 %v351
  %874 = vmatmul.mubr.bf16.gmra.mrb[0].mxu0 %v350
  %v875 = vpop.f32.mrb[0].mxu0
  %v876 = vadd.f32 %v715, %v875
  %v877 = vpop.f32.mrb[0].mxu0
  %v878 = vpop.f32.mrb[0].mxu0
  %v879 = vadd.f32 %v718, %v878
  %v880 = vpop.f32.mrb[0].mxu0
  %881 = vmatprep.mubr.bf16.mxu0 %v355
  %882 = vmatmul.mubr.bf16.gmra.mrb[0].mxu0 %v354
  %v883 = vpop.f32.mrb[0].mxu0
  %v884 = vadd.f32 %v723, %v883
  %v885 = vpop.f32.mrb[0].mxu0
  %v886 = vpop.f32.mrb[0].mxu0
  %v887 = vadd.f32 %v726, %v886
  %v888 = vpop.f32.mrb[0].mxu0
  %889 = vmatprep.mubr.bf16.mxu0 %v359
  %890 = vmatmul.mubr.bf16.gmra.mrb[0].mxu0 %v358
  %v891 = vpop.f32.mrb[0].mxu0
  %v892 = vadd.f32 %v731, %v891
  %v893 = vpop.f32.mrb[0].mxu0
  %v894 = vpop.f32.mrb[0].mxu0
  %v895 = vadd.f32 %v734, %v894
  %v896 = vpop.f32.mrb[0].mxu0
  %897 = vmatprep.mubr.bf16.mxu0 %v363
  %898 = vmatmul.mubr.bf16.gmra.mrb[0].mxu0 %v362
  %v899 = vpop.f32.mrb[0].mxu0
  %v900 = vadd.f32 %v739, %v899
  %v901 = vpop.f32.mrb[0].mxu0
  %v902 = vpop.f32.mrb[0].mxu0
  %v903 = vadd.f32 %v742, %v902
  %v904 = vpop.f32.mrb[0].mxu0
  %905 = vmatprep.mubr.bf16.mxu0 %v367
  %906 = vmatmul.mubr.bf16.gmra.mrb[0].mxu0 %v366
  %v907 = vpop.f32.mrb[0].mxu0
  %v908 = vadd.f32 %v747, %v907
  %v909 = vpop.f32.mrb[0].mxu0
  %v910 = vpop.f32.mrb[0].mxu0
  %v911 = vadd.f32 %v750, %v910
  %v912 = vpop.f32.mrb[0].mxu0
  %913 = vmatprep.mubr.bf16.mxu0 %v371
  %914 = vmatmul.mubr.bf16.gmra.mrb[0].mxu0 %v370
  %v915 = vpop.f32.mrb[0].mxu0
  %v916 = vadd.f32 %v755, %v915
  %v917 = vpop.f32.mrb[0].mxu0
  %v918 = vpop.f32.mrb[0].mxu0
  %v919 = vadd.f32 %v758, %v918
  %v920 = vpop.f32.mrb[0].mxu0
  %921 = vmatprep.mubr.bf16.mxu0 %v375
  %922 = vmatmul.mubr.bf16.gmra.mrb[0].mxu0 %v374
  %v923 = vpop.f32.mrb[0].mxu0
  %v924 = vadd.f32 %v763, %v923
  %v925 = vpop.f32.mrb[0].mxu0
  %v926 = vpop.f32.mrb[0].mxu0
  %v927 = vadd.f32 %v766, %v926
  %v928 = vpop.f32.mrb[0].mxu0
  %929 = vmatprep.mubr.bf16.mxu0 %v379
  %930 = vmatmul.mubr.bf16.gmra.mrb[0].mxu0 %v378
  %v931 = vpop.f32.mrb[0].mxu0
  %v932 = vadd.f32 %v771, %v931
  %v933 = vpop.f32.mrb[0].mxu0
  %v934 = vpop.f32.mrb[0].mxu0
  %v935 = vadd.f32 %v774, %v934
  %v936 = vpop.f32.mrb[0].mxu0
  %937 = vmatprep.mubr.bf16.mxu0 %v383
  %938 = vmatmul.mubr.bf16.gmra.mrb[0].mxu0 %v382
  %v939 = vpop.f32.mrb[0].mxu0
  %v940 = vadd.f32 %v779, %v939
  %v941 = vpop.f32.mrb[0].mxu0
  %v942 = vpop.f32.mrb[0].mxu0
  %v943 = vadd.f32 %v782, %v942
  %v944 = vpop.f32.mrb[0].mxu0
  %945 = vmatprep.mubr.bf16.mxu0 %v387
  %946 = vmatmul.mubr.bf16.gmra.mrb[0].mxu0 %v386
  %v947 = vpop.f32.mrb[0].mxu0
  %v948 = vadd.f32 %v787, %v947
  %v949 = vpop.f32.mrb[0].mxu0
  %v950 = vpop.f32.mrb[0].mxu0
  %v951 = vadd.f32 %v790, %v950
  %v952 = vpop.f32.mrb[0].mxu0
  %953 = vmatprep.mubr.bf16.mxu0 %v391
  %954 = vmatmul.mubr.bf16.gmra.mrb[0].mxu0 %v390
  %v955 = vpop.f32.mrb[0].mxu0
  %v956 = vadd.f32 %v795, %v955
  %v957 = vpop.f32.mrb[0].mxu0
  %v958 = vpop.f32.mrb[0].mxu0
  %v959 = vadd.f32 %v798, %v958
  %v960 = vpop.f32.mrb[0].mxu0
  %961 = vmatprep.mubr.bf16.mxu0 %v395
  %962 = vmatmul.mubr.bf16.gmra.mrb[0].mxu0 %v394
  %v963 = vpop.f32.mrb[0].mxu0
  %v964 = vadd.f32 %v803, %v963
  %v965 = vpop.f32.mrb[0].mxu0
  %v966 = vpop.f32.mrb[0].mxu0
  %v967 = vadd.f32 %v806, %v966
  %v968 = vpop.f32.mrb[0].mxu0
  %969 = vmatprep.mubr.bf16.mxu0 %v399
  %970 = vmatmul.mubr.bf16.gmra.mrb[0].mxu0 %v398
  %v971 = vpop.f32.mrb[0].mxu0
  %v972 = vadd.f32 %v811, %v971
  %v973 = vpop.f32.mrb[0].mxu0
  %v974 = vpop.f32.mrb[0].mxu0
  %v975 = vadd.f32 %v814, %v974
  %v976 = vpop.f32.mrb[0].mxu0
  %977 = vdwg.mxu0
  %v978 = vpack.c.bf16 %v855, %v852
  %v979 = vpack.c.bf16 %v863, %v860
  %v980 = vpack.c.bf16 %v871, %v868
  %v981 = vpack.c.bf16 %v879, %v876
  %v982 = vpack.c.bf16 %v887, %v884
  %v983 = vpack.c.bf16 %v895, %v892
  %v984 = vpack.c.bf16 %v903, %v900
  %v985 = vpack.c.bf16 %v911, %v908
  %v986 = vpack.c.bf16 %v919, %v916
  %v987 = vpack.c.bf16 %v927, %v924
  %v988 = vpack.c.bf16 %v935, %v932
  %v989 = vpack.c.bf16 %v943, %v940
  %v990 = vpack.c.bf16 %v951, %v948
  %v991 = vpack.c.bf16 %v959, %v956
  %v992 = vpack.c.bf16 %v967, %v964
  %v993 = vpack.c.bf16 %v975, %v972
  %v1010 = vunpack.c.l.b16 %v978
  %v1011 = vunpack.c.h.b16 %v978
  %v1012 = vunpack.c.l.b16 %v979
  %v1013 = vunpack.c.h.b16 %v979
  %v1014 = vunpack.c.l.b16 %v980
  %v1015 = vunpack.c.h.b16 %v980
  %v1016 = vunpack.c.l.b16 %v981
  %v1017 = vunpack.c.h.b16 %v981
  %v1018 = vunpack.c.l.b16 %v982
  %v1019 = vunpack.c.h.b16 %v982
  %v1020 = vunpack.c.l.b16 %v983
  %v1021 = vunpack.c.h.b16 %v983
  %v1022 = vunpack.c.l.b16 %v984
  %v1023 = vunpack.c.h.b16 %v984
  %v1024 = vunpack.c.l.b16 %v985
  %v1025 = vunpack.c.h.b16 %v985
  %v1026 = vunpack.c.l.b16 %v986
  %v1027 = vunpack.c.h.b16 %v986
  %v1028 = vunpack.c.l.b16 %v987
  %v1029 = vunpack.c.h.b16 %v987
  %v1030 = vunpack.c.l.b16 %v988
  %v1031 = vunpack.c.h.b16 %v988
  %v1032 = vunpack.c.l.b16 %v989
  %v1033 = vunpack.c.h.b16 %v989
  %v1034 = vunpack.c.l.b16 %v990
  %v1035 = vunpack.c.h.b16 %v990
  %v1036 = vunpack.c.l.b16 %v991
  %v1037 = vunpack.c.h.b16 %v991
  %v1038 = vunpack.c.l.b16 %v992
  %v1039 = vunpack.c.h.b16 %v992
  %v1040 = vunpack.c.l.b16 %v993
  %v1041 = vunpack.c.h.b16 %v993
  %v1042 = vpack.c.b16 %v1010, %v1010
  %v1043 = vpack.c.b16 %v1011, %v1011
  %v1044 = vpack.c.b16 %v1012, %v1012
  %v1045 = vpack.c.b16 %v1013, %v1013
  %v1046 = vpack.c.b16 %v1014, %v1014
  %v1047 = vpack.c.b16 %v1015, %v1015
  %v1048 = vpack.c.b16 %v1016, %v1016
  %v1049 = vpack.c.b16 %v1017, %v1017
  %v1050 = vpack.c.b16 %v1018, %v1018
  %v1051 = vpack.c.b16 %v1019, %v1019
  %v1052 = vpack.c.b16 %v1020, %v1020
  %v1053 = vpack.c.b16 %v1021, %v1021
  %v1054 = vpack.c.b16 %v1022, %v1022
  %v1055 = vpack.c.b16 %v1023, %v1023
  %v1056 = vpack.c.b16 %v1024, %v1024
  %v1057 = vpack.c.b16 %v1025, %v1025
  %v1058 = vpack.c.b16 %v1026, %v1026
  %v1059 = vpack.c.b16 %v1027, %v1027
  %v1060 = vpack.c.b16 %v1028, %v1028
  %v1061 = vpack.c.b16 %v1029, %v1029
  %v1062 = vpack.c.b16 %v1030, %v1030
  %v1063 = vpack.c.b16 %v1031, %v1031
  %v1064 = vpack.c.b16 %v1032, %v1032
  %v1065 = vpack.c.b16 %v1033, %v1033
  %v1066 = vpack.c.b16 %v1034, %v1034
  %v1067 = vpack.c.b16 %v1035, %v1035
  %v1068 = vpack.c.b16 %v1036, %v1036
  %v1069 = vpack.c.b16 %v1037, %v1037
  %v1070 = vpack.c.b16 %v1038, %v1038
  %v1071 = vpack.c.b16 %v1039, %v1039
  %v1072 = vpack.c.b16 %v1040, %v1040
  %v1073 = vpack.c.b16 %v1041, %v1041
  %vm1106 = vcmask 257024
  %1107 = vst.msk [vmem:[%s2] sm:$0xf] %vm1106, %v1042
  %1108 = vst.msk [vmem:[%s2 + $0x4] sm:$0xf] %vm1106, %v1043
  %1109 = vst.msk [vmem:[%s2 + $0x8] sm:$0xf] %vm1106, %v1044
  %1110 = vst.msk [vmem:[%s2 + $0xc] sm:$0xf] %vm1106, %v1045
  %1111 = vst.msk [vmem:[%s2 + $0x10] sm:$0xf] %vm1106, %v1046
  %1112 = vst.msk [vmem:[%s2 + $0x14] sm:$0xf] %vm1106, %v1047
  %1113 = vst.msk [vmem:[%s2 + $0x18] sm:$0xf] %vm1106, %v1048
  %1114 = vst.msk [vmem:[%s2 + $0x1c] sm:$0xf] %vm1106, %v1049
  %1115 = vst.msk [vmem:[%s2 + $0x20] sm:$0xf] %vm1106, %v1050
  %1116 = vst.msk [vmem:[%s2 + $0x24] sm:$0xf] %vm1106, %v1051
  %1117 = vst.msk [vmem:[%s2 + $0x28] sm:$0xf] %vm1106, %v1052
  %1118 = vst.msk [vmem:[%s2 + $0x2c] sm:$0xf] %vm1106, %v1053
  %1119 = vst.msk [vmem:[%s2 + $0x30] sm:$0xf] %vm1106, %v1054
  %1120 = vst.msk [vmem:[%s2 + $0x34] sm:$0xf] %vm1106, %v1055
  %1121 = vst.msk [vmem:[%s2 + $0x38] sm:$0xf] %vm1106, %v1056
  %1122 = vst.msk [vmem:[%s2 + $0x3c] sm:$0xf] %vm1106, %v1057
  %1123 = vst.msk [vmem:[%s2 + $0x40] sm:$0xf] %vm1106, %v1058
  %1124 = vst.msk [vmem:[%s2 + $0x44] sm:$0xf] %vm1106, %v1059
  %1125 = vst.msk [vmem:[%s2 + $0x48] sm:$0xf] %vm1106, %v1060
  %1126 = vst.msk [vmem:[%s2 + $0x4c] sm:$0xf] %vm1106, %v1061
  %1127 = vst.msk [vmem:[%s2 + $0x50] sm:$0xf] %vm1106, %v1062
  %1128 = vst.msk [vmem:[%s2 + $0x54] sm:$0xf] %vm1106, %v1063
  %1129 = vst.msk [vmem:[%s2 + $0x58] sm:$0xf] %vm1106, %v1064
  %1130 = vst.msk [vmem:[%s2 + $0x5c] sm:$0xf] %vm1106, %v1065
  %1131 = vst.msk [vmem:[%s2 + $0x60] sm:$0xf] %vm1106, %v1066
  %1132 = vst.msk [vmem:[%s2 + $0x64] sm:$0xf] %vm1106, %v1067
  %1133 = vst.msk [vmem:[%s2 + $0x68] sm:$0xf] %vm1106, %v1068
  %1134 = vst.msk [vmem:[%s2 + $0x6c] sm:$0xf] %vm1106, %v1069
  %1135 = vst.msk [vmem:[%s2 + $0x70] sm:$0xf] %vm1106, %v1070
  %1136 = vst.msk [vmem:[%s2 + $0x74] sm:$0xf] %vm1106, %v1071
  %1137 = vst.msk [vmem:[%s2 + $0x78] sm:$0xf] %vm1106, %v1072
  %1138 = vst.msk [vmem:[%s2 + $0x7c] sm:$0xf] %vm1106, %v1073
  %1139 = vrot.lane.b32.xlu0 %v1042, 96
  %v1140 = vpop.permute.xlu0 %1139
  %1141 = vrot.lane.b32.xlu0 %v1043, 96
  %v1142 = vpop.permute.xlu0 %1141
  %1143 = vrot.lane.b32.xlu0 %v1044, 96
  %v1144 = vpop.permute.xlu0 %1143
  %1145 = vrot.lane.b32.xlu0 %v1045, 96
  %v1146 = vpop.permute.xlu0 %1145
  %1147 = vrot.lane.b32.xlu0 %v1046, 96
  %v1148 = vpop.permute.xlu0 %1147
  %1149 = vrot.lane.b32.xlu0 %v1047, 96
  %v1150 = vpop.permute.xlu0 %1149
  %1151 = vrot.lane.b32.xlu0 %v1048, 96
  %v1152 = vpop.permute.xlu0 %1151
  %1153 = vrot.lane.b32.xlu0 %v1049, 96
  %v1154 = vpop.permute.xlu0 %1153
  %1155 = vrot.lane.b32.xlu0 %v1050, 96
  %v1156 = vpop.permute.xlu0 %1155
  %1157 = vrot.lane.b32.xlu0 %v1051, 96
  %v1158 = vpop.permute.xlu0 %1157
  %1159 = vrot.lane.b32.xlu0 %v1052, 96
  %v1160 = vpop.permute.xlu0 %1159
  %1161 = vrot.lane.b32.xlu0 %v1053, 96
  %v1162 = vpop.permute.xlu0 %1161
  %1163 = vrot.lane.b32.xlu0 %v1054, 96
  %v1164 = vpop.permute.xlu0 %1163
  %1165 = vrot.lane.b32.xlu0 %v1055, 96
  %v1166 = vpop.permute.xlu0 %1165
  %1167 = vrot.lane.b32.xlu0 %v1056, 96
  %v1168 = vpop.permute.xlu0 %1167
  %1169 = vrot.lane.b32.xlu0 %v1057, 96
  %v1170 = vpop.permute.xlu0 %1169
  %1171 = vrot.lane.b32.xlu0 %v1058, 96
  %v1172 = vpop.permute.xlu0 %1171
  %1173 = vrot.lane.b32.xlu0 %v1059, 96
  %v1174 = vpop.permute.xlu0 %1173
  %1175 = vrot.lane.b32.xlu0 %v1060, 96
  %v1176 = vpop.permute.xlu0 %1175
  %1177 = vrot.lane.b32.xlu0 %v1061, 96
  %v1178 = vpop.permute.xlu0 %1177
  %1179 = vrot.lane.b32.xlu0 %v1062, 96
  %v1180 = vpop.permute.xlu0 %1179
  %1181 = vrot.lane.b32.xlu0 %v1063, 96
  %v1182 = vpop.permute.xlu0 %1181
  %1183 = vrot.lane.b32.xlu0 %v1064, 96
  %v1184 = vpop.permute.xlu0 %1183
  %1185 = vrot.lane.b32.xlu0 %v1065, 96
  %v1186 = vpop.permute.xlu0 %1185
  %1187 = vrot.lane.b32.xlu0 %v1066, 96
  %v1188 = vpop.permute.xlu0 %1187
  %1189 = vrot.lane.b32.xlu0 %v1067, 96
  %v1190 = vpop.permute.xlu0 %1189
  %1191 = vrot.lane.b32.xlu0 %v1068, 96
  %v1192 = vpop.permute.xlu0 %1191
  %1193 = vrot.lane.b32.xlu0 %v1069, 96
  %v1194 = vpop.permute.xlu0 %1193
  %1195 = vrot.lane.b32.xlu0 %v1070, 96
  %v1196 = vpop.permute.xlu0 %1195
  %1197 = vrot.lane.b32.xlu0 %v1071, 96
  %v1198 = vpop.permute.xlu0 %1197
  %1199 = vrot.lane.b32.xlu0 %v1072, 96
  %v1200 = vpop.permute.xlu0 %1199
  %1201 = vrot.lane.b32.xlu0 %v1073, 96
  %v1202 = vpop.permute.xlu0 %1201
  %1235 = vst.msk [vmem:[%s3] sm:$0xf] %vm1106, %v1140
  %1236 = vst.msk [vmem:[%s3 + $0x4] sm:$0xf] %vm1106, %v1142
  %1237 = vst.msk [vmem:[%s3 + $0x8] sm:$0xf] %vm1106, %v1144
  %1238 = vst.msk [vmem:[%s3 + $0xc] sm:$0xf] %vm1106, %v1146
  %1239 = vst.msk [vmem:[%s3 + $0x10] sm:$0xf] %vm1106, %v1148
  %1240 = vst.msk [vmem:[%s3 + $0x14] sm:$0xf] %vm1106, %v1150
  %1241 = vst.msk [vmem:[%s3 + $0x18] sm:$0xf] %vm1106, %v1152
  %1242 = vst.msk [vmem:[%s3 + $0x1c] sm:$0xf] %vm1106, %v1154
  %1243 = vst.msk [vmem:[%s3 + $0x20] sm:$0xf] %vm1106, %v1156
  %1244 = vst.msk [vmem:[%s3 + $0x24] sm:$0xf] %vm1106, %v1158
  %1245 = vst.msk [vmem:[%s3 + $0x28] sm:$0xf] %vm1106, %v1160
  %1246 = vst.msk [vmem:[%s3 + $0x2c] sm:$0xf] %vm1106, %v1162
  %1247 = vst.msk [vmem:[%s3 + $0x30] sm:$0xf] %vm1106, %v1164
  %1248 = vst.msk [vmem:[%s3 + $0x34] sm:$0xf] %vm1106, %v1166
  %1249 = vst.msk [vmem:[%s3 + $0x38] sm:$0xf] %vm1106, %v1168
  %1250 = vst.msk [vmem:[%s3 + $0x3c] sm:$0xf] %vm1106, %v1170
  %1251 = vst.msk [vmem:[%s3 + $0x40] sm:$0xf] %vm1106, %v1172
  %1252 = vst.msk [vmem:[%s3 + $0x44] sm:$0xf] %vm1106, %v1174
  %1253 = vst.msk [vmem:[%s3 + $0x48] sm:$0xf] %vm1106, %v1176
  %1254 = vst.msk [vmem:[%s3 + $0x4c] sm:$0xf] %vm1106, %v1178
  %1255 = vst.msk [vmem:[%s3 + $0x50] sm:$0xf] %vm1106, %v1180
  %1256 = vst.msk [vmem:[%s3 + $0x54] sm:$0xf] %vm1106, %v1182
  %1257 = vst.msk [vmem:[%s3 + $0x58] sm:$0xf] %vm1106, %v1184
  %1258 = vst.msk [vmem:[%s3 + $0x5c] sm:$0xf] %vm1106, %v1186
  %1259 = vst.msk [vmem:[%s3 + $0x60] sm:$0xf] %vm1106, %v1188
  %1260 = vst.msk [vmem:[%s3 + $0x64] sm:$0xf] %vm1106, %v1190
  %1261 = vst.msk [vmem:[%s3 + $0x68] sm:$0xf] %vm1106, %v1192
  %1262 = vst.msk [vmem:[%s3 + $0x6c] sm:$0xf] %vm1106, %v1194
  %1263 = vst.msk [vmem:[%s3 + $0x70] sm:$0xf] %vm1106, %v1196
  %1264 = vst.msk [vmem:[%s3 + $0x74] sm:$0xf] %vm1106, %v1198
  %1265 = vst.msk [vmem:[%s3 + $0x78] sm:$0xf] %vm1106, %v1200
  %1266 = vst.msk [vmem:[%s3 + $0x7c] sm:$0xf] %vm1106, %v1202
  %vm1267 = vcmask 523264
  %v1268 = vsel %vm1267, %v852, 0.0
  %v1269 = vsel %vm1267, %v855, 0.0
  %v1270 = vadd.f32 %v1268, %v1269
  %v1271 = vsel %vm1267, %v860, 0.0
  %v1272 = vadd.f32 %v1270, %v1271
  %v1273 = vsel %vm1267, %v863, 0.0
  %v1274 = vadd.f32 %v1272, %v1273
  %v1275 = vsel %vm1267, %v868, 0.0
  %v1276 = vadd.f32 %v1274, %v1275
  %v1277 = vsel %vm1267, %v871, 0.0
  %v1278 = vadd.f32 %v1276, %v1277
  %v1279 = vsel %vm1267, %v876, 0.0
  %v1280 = vadd.f32 %v1278, %v1279
  %v1281 = vsel %vm1267, %v879, 0.0
  %v1282 = vadd.f32 %v1280, %v1281
  %v1283 = vsel %vm1267, %v884, 0.0
  %v1284 = vadd.f32 %v1282, %v1283
  %v1285 = vsel %vm1267, %v887, 0.0
  %v1286 = vadd.f32 %v1284, %v1285
  %v1287 = vsel %vm1267, %v892, 0.0
  %v1288 = vadd.f32 %v1286, %v1287
  %v1289 = vsel %vm1267, %v895, 0.0
  %v1290 = vadd.f32 %v1288, %v1289
  %v1291 = vsel %vm1267, %v900, 0.0
  %v1292 = vadd.f32 %v1290, %v1291
  %v1293 = vsel %vm1267, %v903, 0.0
  %v1294 = vadd.f32 %v1292, %v1293
  %v1295 = vsel %vm1267, %v908, 0.0
  %v1296 = vadd.f32 %v1294, %v1295
  %v1297 = vsel %vm1267, %v911, 0.0
  %v1298 = vadd.f32 %v1296, %v1297
  %v1299 = vsel %vm1267, %v916, 0.0
  %v1300 = vadd.f32 %v1298, %v1299
  %v1301 = vsel %vm1267, %v919, 0.0
  %v1302 = vadd.f32 %v1300, %v1301
  %v1303 = vsel %vm1267, %v924, 0.0
  %v1304 = vadd.f32 %v1302, %v1303
  %v1305 = vsel %vm1267, %v927, 0.0
  %v1306 = vadd.f32 %v1304, %v1305
  %v1307 = vsel %vm1267, %v932, 0.0
  %v1308 = vadd.f32 %v1306, %v1307
  %v1309 = vsel %vm1267, %v935, 0.0
  %v1310 = vadd.f32 %v1308, %v1309
  %v1311 = vsel %vm1267, %v940, 0.0
  %v1312 = vadd.f32 %v1310, %v1311
  %v1313 = vsel %vm1267, %v943, 0.0
  %v1314 = vadd.f32 %v1312, %v1313
  %v1315 = vsel %vm1267, %v948, 0.0
  %v1316 = vadd.f32 %v1314, %v1315
  %v1317 = vsel %vm1267, %v951, 0.0
  %v1318 = vadd.f32 %v1316, %v1317
  %v1319 = vsel %vm1267, %v956, 0.0
  %v1320 = vadd.f32 %v1318, %v1319
  %v1321 = vsel %vm1267, %v959, 0.0
  %v1322 = vadd.f32 %v1320, %v1321
  %v1323 = vsel %vm1267, %v964, 0.0
  %v1324 = vadd.f32 %v1322, %v1323
  %v1325 = vsel %vm1267, %v967, 0.0
  %v1326 = vadd.f32 %v1324, %v1325
  %v1327 = vsel %vm1267, %v972, 0.0
  %v1328 = vadd.f32 %v1326, %v1327
  %v1329 = vsel %vm1267, %v975, 0.0
  %v1330 = vadd.f32 %v1328, %v1329
  %v1331 = vrot.slane %v1330, 4
  %v1332 = vadd.f32 %v1330, %v1331
  %v1333 = vrot.slane %v1332, 2
  %v1334 = vadd.f32 %v1332, %v1333
  %v1335 = vrot.slane %v1334, 1
  %v1336 = vadd.f32 %v1334, %v1335
  %vm1337 = vcmask 516096
  %1338 = vst.msk [vmem:[%s4] sm:$0x1] %vm1337, %v1336
  %v1339 = vmul.f32 %v852, %v852
  %v1340 = vmul.f32 %v855, %v855
  %v1341 = vmul.f32 %v860, %v860
  %v1342 = vmul.f32 %v863, %v863
  %v1343 = vmul.f32 %v868, %v868
  %v1344 = vmul.f32 %v871, %v871
  %v1345 = vmul.f32 %v876, %v876
  %v1346 = vmul.f32 %v879, %v879
  %v1347 = vmul.f32 %v884, %v884
  %v1348 = vmul.f32 %v887, %v887
  %v1349 = vmul.f32 %v892, %v892
  %v1350 = vmul.f32 %v895, %v895
  %v1351 = vmul.f32 %v900, %v900
  %v1352 = vmul.f32 %v903, %v903
  %v1353 = vmul.f32 %v908, %v908
  %v1354 = vmul.f32 %v911, %v911
  %v1355 = vmul.f32 %v916, %v916
  %v1356 = vmul.f32 %v919, %v919
  %v1357 = vmul.f32 %v924, %v924
  %v1358 = vmul.f32 %v927, %v927
  %v1359 = vmul.f32 %v932, %v932
  %v1360 = vmul.f32 %v935, %v935
  %v1361 = vmul.f32 %v940, %v940
  %v1362 = vmul.f32 %v943, %v943
  %v1363 = vmul.f32 %v948, %v948
  %v1364 = vmul.f32 %v951, %v951
  %v1365 = vmul.f32 %v956, %v956
  %v1366 = vmul.f32 %v959, %v959
  %v1367 = vmul.f32 %v964, %v964
  %v1368 = vmul.f32 %v967, %v967
  %v1369 = vmul.f32 %v972, %v972
  %v1370 = vmul.f32 %v975, %v975
  %v1371 = vsel %vm1267, %v1339, 0.0
  %v1372 = vsel %vm1267, %v1340, 0.0
  %v1373 = vadd.f32 %v1371, %v1372
  %v1374 = vsel %vm1267, %v1341, 0.0
  %v1375 = vadd.f32 %v1373, %v1374
  %v1376 = vsel %vm1267, %v1342, 0.0
  %v1377 = vadd.f32 %v1375, %v1376
  %v1378 = vsel %vm1267, %v1343, 0.0
  %v1379 = vadd.f32 %v1377, %v1378
  %v1380 = vsel %vm1267, %v1344, 0.0
  %v1381 = vadd.f32 %v1379, %v1380
  %v1382 = vsel %vm1267, %v1345, 0.0
  %v1383 = vadd.f32 %v1381, %v1382
  %v1384 = vsel %vm1267, %v1346, 0.0
  %v1385 = vadd.f32 %v1383, %v1384
  %v1386 = vsel %vm1267, %v1347, 0.0
  %v1387 = vadd.f32 %v1385, %v1386
  %v1388 = vsel %vm1267, %v1348, 0.0
  %v1389 = vadd.f32 %v1387, %v1388
  %v1390 = vsel %vm1267, %v1349, 0.0
  %v1391 = vadd.f32 %v1389, %v1390
  %v1392 = vsel %vm1267, %v1350, 0.0
  %v1393 = vadd.f32 %v1391, %v1392
  %v1394 = vsel %vm1267, %v1351, 0.0
  %v1395 = vadd.f32 %v1393, %v1394
  %v1396 = vsel %vm1267, %v1352, 0.0
  %v1397 = vadd.f32 %v1395, %v1396
  %v1398 = vsel %vm1267, %v1353, 0.0
  %v1399 = vadd.f32 %v1397, %v1398
  %v1400 = vsel %vm1267, %v1354, 0.0
  %v1401 = vadd.f32 %v1399, %v1400
  %v1402 = vsel %vm1267, %v1355, 0.0
  %v1403 = vadd.f32 %v1401, %v1402
  %v1404 = vsel %vm1267, %v1356, 0.0
  %v1405 = vadd.f32 %v1403, %v1404
  %v1406 = vsel %vm1267, %v1357, 0.0
  %v1407 = vadd.f32 %v1405, %v1406
  %v1408 = vsel %vm1267, %v1358, 0.0
  %v1409 = vadd.f32 %v1407, %v1408
  %v1410 = vsel %vm1267, %v1359, 0.0
  %v1411 = vadd.f32 %v1409, %v1410
  %v1412 = vsel %vm1267, %v1360, 0.0
  %v1413 = vadd.f32 %v1411, %v1412
  %v1414 = vsel %vm1267, %v1361, 0.0
  %v1415 = vadd.f32 %v1413, %v1414
  %v1416 = vsel %vm1267, %v1362, 0.0
  %v1417 = vadd.f32 %v1415, %v1416
  %v1418 = vsel %vm1267, %v1363, 0.0
  %v1419 = vadd.f32 %v1417, %v1418
  %v1420 = vsel %vm1267, %v1364, 0.0
  %v1421 = vadd.f32 %v1419, %v1420
  %v1422 = vsel %vm1267, %v1365, 0.0
  %v1423 = vadd.f32 %v1421, %v1422
  %v1424 = vsel %vm1267, %v1366, 0.0
  %v1425 = vadd.f32 %v1423, %v1424
  %v1426 = vsel %vm1267, %v1367, 0.0
  %v1427 = vadd.f32 %v1425, %v1426
  %v1428 = vsel %vm1267, %v1368, 0.0
  %v1429 = vadd.f32 %v1427, %v1428
  %v1430 = vsel %vm1267, %v1369, 0.0
  %v1431 = vadd.f32 %v1429, %v1430
  %v1432 = vsel %vm1267, %v1370, 0.0
  %v1433 = vadd.f32 %v1431, %v1432
  %v1434 = vrot.slane %v1433, 4
  %v1435 = vadd.f32 %v1433, %v1434
  %v1436 = vrot.slane %v1435, 2
  %v1437 = vadd.f32 %v1435, %v1436
  %v1438 = vrot.slane %v1437, 1
  %v1439 = vadd.f32 %v1437, %v1438
  %1440 = vst.msk [vmem:[%s5] sm:$0x1] %vm1337, %v1439
  // Predicated region
  $region10: #{_lambda_.4} parent=0 // pred_check
    _
  $region11: #{_lambda_.4} parent=0 // pred_check_branch
    %1442 = sbr.rel (0) target = $region13
  $region12: #{_lambda_.4} parent=0 // pred_region
    _
  $region13: #{_lambda_.4} parent=0 // pred_fallthru
    _
  // Predicated region
  $region14: #{_lambda_.4} parent=0 // pred_check
    _
  $region15: #{_lambda_.4} parent=0 // pred_check_branch
    %1444 = sbr.rel (0) target = $region17
  $region16: #{_lambda_.4} parent=0 // pred_region
    _
  $region17: #{_lambda_.4} parent=0 // pred_fallthru
    _
  // Predicated region
  $region18: #{_lambda_.4} parent=0 // pred_check
    _
  $region19: #{_lambda_.4} parent=0 // pred_check_branch
    %1446 = sbr.rel (0) target = $region21
  $region20: #{_lambda_.4} parent=0 // pred_region
    _
  $region21: #{_lambda_.4} parent=0 // pred_fallthru
    _
  // Predicated region
  $region22: #{_lambda_.4} parent=0 // pred_check
    _
  $region23: #{_lambda_.4} parent=0 // pred_check_branch
    %1448 = sbr.rel (0) target = $region25
  $region24: #{_lambda_.4} parent=0 // pred_region
    _
  $region25: #{_lambda_.4} parent=0 // pred_fallthru
    _
  // Predicated region
  $region26: #{_lambda_.4} parent=0 // pred_check
    _
  $region27: #{_lambda_.4} parent=0 // pred_check_branch
    %1450 = sbr.rel (0) target = $region29
  $region28: #{_lambda_.4} parent=0 // pred_region
    _
  $region29: #{_lambda_.4} parent=0 // pred_fallthru
    _
  // Predicated region
  $region30: #{_lambda_.4} parent=0 // pred_check
    _
  $region31: #{_lambda_.4} parent=0 // pred_check_branch
    %1452 = sbr.rel (0) target = $region33
  $region32: #{_lambda_.4} parent=0 // pred_region
    _
  $region33: #{_lambda_.4} parent=0 // pred_fallthru
    _
  // Predicated region
  $region34: #{_lambda_.4} parent=0 // pred_check
    _
  $region35: #{_lambda_.4} parent=0 // pred_check_branch
    %1454 = sbr.rel (0) target = $region37
  $region36: #{_lambda_.4} parent=0 // pred_region
    _
  $region37: #{_lambda_.4} parent=0 // pred_fallthru
    _
  // Predicated region
  $region38: #{_lambda_.4} parent=0 // pred_check
    _
  $region39: #{_lambda_.4} parent=0 // pred_check_branch
    %1456 = sbr.rel (0) target = $region41
  $region40: #{_lambda_.4} parent=0 // pred_region
    _
  $region41: #{_lambda_.4} parent=0 // pred_fallthru
    _

// kernel: _lambda_.7
$region0: #{_lambda_.7}
  #allocation0 [shape = 'u32[]', space=smem, size = 0x4, offset = 0x4, fixed_abs, tag = 'smem constant byte address 0x4 - core index']
  #allocation1 [shape = 'u32[144,128]{1,0:T(1,128)}', space=vmem, size = 0x12000, scoped, tag = 'internal scratch']
  %s0 = inlined_call_operand.vmem [shape: bf16[64,128], index: 0, kind: input, shape index: {}]
  %s1 = inlined_call_operand.vmem [shape: bf16[64,128], index: 1, kind: input, shape index: {}]
  %s2 = inlined_call_operand.vmem [shape: f32[1,128], index: 2, kind: input, shape index: {}]
  %s3 = inlined_call_operand.vmem [shape: f32[1,128], index: 3, kind: input, shape index: {}]
  %s4 = inlined_call_operand.vmem [shape: f32[1,128], index: 4, kind: input, shape index: {}]
  %s5 = inlined_call_operand.vmem [shape: f32[1,128], index: 5, kind: input, shape index: {}]
  %s6 = inlined_call_operand.vmem [shape: f32[64,128], index: 6, kind: output, shape index: {}]
  %s7 = sld [smem:[#allocation0]]
  $region34: #{_lambda_.7} parent=0
    _
  %s9 = ssub.s32 1, %s7
  %s10 = scalar_select 0, %s9, %s7
  // Predicated region
  $region2: #{_lambda_.7} parent=0 // pred_check
    _
  $region3: #{_lambda_.7} parent=0 // pred_check_branch
    %12 = sbr.rel (0) target = $region5
  $region4: #{_lambda_.7} parent=0 // pred_region
    _
  $region5: #{_lambda_.7} parent=0 // pred_fallthru
    _
  // Predicated region
  $region6: #{_lambda_.7} parent=0 // pred_check
    _
  $region7: #{_lambda_.7} parent=0 // pred_check_branch
    %14 = sbr.rel (0) target = $region9
  $region8: #{_lambda_.7} parent=0 // pred_region
    _
  $region9: #{_lambda_.7} parent=0 // pred_fallthru
    _
  // Predicated region
  $region10: #{_lambda_.7} parent=0 // pred_check
    _
  $region11: #{_lambda_.7} parent=0 // pred_check_branch
    %16 = sbr.rel (0) target = $region13
  $region12: #{_lambda_.7} parent=0 // pred_region
    _
  $region13: #{_lambda_.7} parent=0 // pred_fallthru
    _
  // Predicated region
  $region14: #{_lambda_.7} parent=0 // pred_check
    _
  $region15: #{_lambda_.7} parent=0 // pred_check_branch
    %18 = sbr.rel (0) target = $region17
  $region16: #{_lambda_.7} parent=0 // pred_region
    _
  $region17: #{_lambda_.7} parent=0 // pred_fallthru
    _
  // Predicated region
  $region18: #{_lambda_.7} parent=0 // pred_check
    _
  $region19: #{_lambda_.7} parent=0 // pred_check_branch
    %20 = sbr.rel (0) target = $region21
  $region20: #{_lambda_.7} parent=0 // pred_region
    _
  $region21: #{_lambda_.7} parent=0 // pred_fallthru
    _
  // Predicated region
  $region22: #{_lambda_.7} parent=0 // pred_check
    _
  $region23: #{_lambda_.7} parent=0 // pred_check_branch
    %22 = sbr.rel (0) target = $region25
  $region24: #{_lambda_.7} parent=0 // pred_region
    _
  $region25: #{_lambda_.7} parent=0 // pred_fallthru
    _
  %v23 = vld [vmem:[%s0] sm:$0xf]
  %v24 = vld [vmem:[%s0 + $0x4] sm:$0xf]
  %v25 = vld [vmem:[%s0 + $0x8] sm:$0xf]
  %v26 = vld [vmem:[%s0 + $0xc] sm:$0xf]
  %v27 = vld [vmem:[%s0 + $0x10] sm:$0xf]
  %v28 = vld [vmem:[%s0 + $0x14] sm:$0xf]
  %v29 = vld [vmem:[%s0 + $0x18] sm:$0xf]
  %v30 = vld [vmem:[%s0 + $0x1c] sm:$0xf]
  %v31 = vunpack.c.l.bf16 %v23
  %v32 = vunpack.c.l.bf16 %v24
  %v33 = vunpack.c.l.bf16 %v25
  %v34 = vunpack.c.l.bf16 %v26
  %v35 = vunpack.c.l.bf16 %v27
  %v36 = vunpack.c.l.bf16 %v28
  %v37 = vunpack.c.l.bf16 %v29
  %v38 = vunpack.c.l.bf16 %v30
  %v39 = vld [vmem:[%s1] sm:$0xf]
  %v40 = vld [vmem:[%s1 + $0x4] sm:$0xf]
  %v41 = vld [vmem:[%s1 + $0x8] sm:$0xf]
  %v42 = vld [vmem:[%s1 + $0xc] sm:$0xf]
  %v43 = vld [vmem:[%s1 + $0x10] sm:$0xf]
  %v44 = vld [vmem:[%s1 + $0x14] sm:$0xf]
  %v45 = vld [vmem:[%s1 + $0x18] sm:$0xf]
  %v46 = vld [vmem:[%s1 + $0x1c] sm:$0xf]
  %v47 = vunpack.c.l.bf16 %v39
  %v48 = vunpack.c.l.bf16 %v40
  %v49 = vunpack.c.l.bf16 %v41
  %v50 = vunpack.c.l.bf16 %v42
  %v51 = vunpack.c.l.bf16 %v43
  %v52 = vunpack.c.l.bf16 %v44
  %v53 = vunpack.c.l.bf16 %v45
  %v54 = vunpack.c.l.bf16 %v46
  %v55 = vld [vmem:[%s2] sm:$0x1]
  %v57 = vlaneseq
  %v58 = vshrl.u32 %v57, 7
  %v59 = vsub.s32 0, %v58
  %v60 = vrot.slane %v55, %v59
  %v62 = vmul.f32 %v31, %v60
  %v63 = vmul.f32 %v32, %v60
  %v64 = vmul.f32 %v33, %v60
  %v65 = vmul.f32 %v34, %v60
  %v66 = vmul.f32 %v35, %v60
  %v67 = vmul.f32 %v36, %v60
  %v68 = vmul.f32 %v37, %v60
  %v69 = vmul.f32 %v38, %v60
  %v70 = vld [vmem:[%s3] sm:$0x1]
  %v72 = vlaneseq
  %v73 = vshrl.u32 %v72, 7
  %v74 = vsub.s32 0, %v73
  %v75 = vrot.slane %v70, %v74
  %v77 = vadd.f32 %v62, %v75
  %v78 = vadd.f32 %v63, %v75
  %v79 = vadd.f32 %v64, %v75
  %v80 = vadd.f32 %v65, %v75
  %v81 = vadd.f32 %v66, %v75
  %v82 = vadd.f32 %v67, %v75
  %v83 = vadd.f32 %v68, %v75
  %v84 = vadd.f32 %v69, %v75
  %v85 = vld [vmem:[%s4] sm:$0x1]
  %v87 = vlaneseq
  %v88 = vshrl.u32 %v87, 7
  %v89 = vsub.s32 0, %v88
  %v90 = vrot.slane %v85, %v89
  %v92 = vmul.f32 %v47, %v90
  %v93 = vmul.f32 %v48, %v90
  %v94 = vmul.f32 %v49, %v90
  %v95 = vmul.f32 %v50, %v90
  %v96 = vmul.f32 %v51, %v90
  %v97 = vmul.f32 %v52, %v90
  %v98 = vmul.f32 %v53, %v90
  %v99 = vmul.f32 %v54, %v90
  %v100 = vadd.f32 %v77, %v92
  %v101 = vadd.f32 %v78, %v93
  %v102 = vadd.f32 %v79, %v94
  %v103 = vadd.f32 %v80, %v95
  %v104 = vadd.f32 %v81, %v96
  %v105 = vadd.f32 %v82, %v97
  %v106 = vadd.f32 %v83, %v98
  %v107 = vadd.f32 %v84, %v99
  %v108 = vld [vmem:[%s5] sm:$0x1]
  %v110 = vlaneseq
  %v111 = vshrl.u32 %v110, 7
  %v112 = vsub.s32 0, %v111
  %v113 = vrot.slane %v108, %v112
  %v115 = vadd.f32 %v100, %v113
  %v116 = vadd.f32 %v101, %v113
  %v117 = vadd.f32 %v102, %v113
  %v118 = vadd.f32 %v103, %v113
  %v119 = vadd.f32 %v104, %v113
  %v120 = vadd.f32 %v105, %v113
  %v121 = vadd.f32 %v106, %v113
  %v122 = vadd.f32 %v107, %v113
  %v123 = vmax.f32 %v115, 0.0
  %v124 = vmax.f32 %v116, 0.0
  %v125 = vmax.f32 %v117, 0.0
  %v126 = vmax.f32 %v118, 0.0
  %v127 = vmax.f32 %v119, 0.0
  %v128 = vmax.f32 %v120, 0.0
  %v129 = vmax.f32 %v121, 0.0
  %v130 = vmax.f32 %v122, 0.0
  %131 = vst [vmem:[%s6] sm:$0xff] %v123
  %132 = vst [vmem:[%s6 + $0x8] sm:$0xff] %v124
  %133 = vst [vmem:[%s6 + $0x10] sm:$0xff] %v125
  %134 = vst [vmem:[%s6 + $0x18] sm:$0xff] %v126
  %135 = vst [vmem:[%s6 + $0x20] sm:$0xff] %v127
  %136 = vst [vmem:[%s6 + $0x28] sm:$0xff] %v128
  %137 = vst [vmem:[%s6 + $0x30] sm:$0xff] %v129
  %138 = vst [vmem:[%s6 + $0x38] sm:$0xff] %v130
  // Predicated region
  $region26: #{_lambda_.7} parent=0 // pred_check
    _
  $region27: #{_lambda_.7} parent=0 // pred_check_branch
    %140 = sbr.rel (0) target = $region29
  $region28: #{_lambda_.7} parent=0 // pred_region
    _
  $region29: #{_lambda_.7} parent=0 // pred_fallthru
    _
  // Predicated region
  $region30: #{_lambda_.7} parent=0 // pred_check
    _
  $region31: #{_lambda_.7} parent=0 // pred_check_branch
    %142 = sbr.rel (0) target = $region33
  $region32: #{_lambda_.7} parent=0 // pred_region
    _
  $region33: #{_lambda_.7} parent=0 // pred_fallthru
    _

// kernel: _lambda_.6
$region0: #{_lambda_.6}
  #allocation0 [shape = 'u32[]', space=smem, size = 0x4, offset = 0x4, fixed_abs, tag = 'smem constant byte address 0x4 - core index']
  #allocation1 [shape = 'u32[144,128]{1,0:T(1,128)}', space=vmem, size = 0x12000, scoped, tag = 'internal scratch']
  %s0 = inlined_call_operand.vmem [shape: bf16[256,896], index: 0, kind: input, shape index: {}]
  %s1 = inlined_call_operand.vmem [shape: bf16[896,32], index: 1, kind: input, shape index: {}]
  %s2 = inlined_call_operand.vmem [shape: bf16[256,32], index: 2, kind: output, shape index: {0}]
  %s3 = inlined_call_operand.vmem [shape: f32[1,1,32], index: 3, kind: output, shape index: {1}]
  %s4 = inlined_call_operand.vmem [shape: f32[1,1,32], index: 4, kind: output, shape index: {2}]
  %5 = xla_tuple %s2, %s3, %s4
  %s6 = sld [smem:[#allocation0]]
  $region34: #{_lambda_.6} parent=0
    _
  %s8 = ssub.s32 1, %s6
  %s9 = scalar_select 0, %s8, %s6
  // Predicated region
  $region2: #{_lambda_.6} parent=0 // pred_check
    _
  $region3: #{_lambda_.6} parent=0 // pred_check_branch
    %11 = sbr.rel (0) target = $region5
  $region4: #{_lambda_.6} parent=0 // pred_region
    _
  $region5: #{_lambda_.6} parent=0 // pred_fallthru
    _
  // Predicated region
  $region6: #{_lambda_.6} parent=0 // pred_check
    _
  $region7: #{_lambda_.6} parent=0 // pred_check_branch
    %13 = sbr.rel (0) target = $region9
  $region8: #{_lambda_.6} parent=0 // pred_region
    _
  $region9: #{_lambda_.6} parent=0 // pred_fallthru
    _
  %v15 = vld [vmem:[%s0] sm:$0xff]
  %v16 = vld [vmem:[%s0 + $0x8] sm:$0xff]
  %v17 = vld [vmem:[%s0 + $0x10] sm:$0xff]
  %v18 = vld [vmem:[%s0 + $0x18] sm:$0xf]
  %v19 = vld [vmem:[%s0 + $0x1c] sm:$0xff]
  %v20 = vld [vmem:[%s0 + $0x24] sm:$0xff]
  %v21 = vld [vmem:[%s0 + $0x2c] sm:$0xff]
  %v22 = vld [vmem:[%s0 + $0x34] sm:$0xf]
  %v23 = vld [vmem:[%s0 + $0x38] sm:$0xff]
  %v24 = vld [vmem:[%s0 + $0x40] sm:$0xff]
  %v25 = vld [vmem:[%s0 + $0x48] sm:$0xff]
  %v26 = vld [vmem:[%s0 + $0x50] sm:$0xf]
  %v27 = vld [vmem:[%s0 + $0x54] sm:$0xff]
  %v28 = vld [vmem:[%s0 + $0x5c] sm:$0xff]
  %v29 = vld [vmem:[%s0 + $0x64] sm:$0xff]
  %v30 = vld [vmem:[%s0 + $0x6c] sm:$0xf]
  %v31 = vld [vmem:[%s0 + $0x70] sm:$0xff]
  %v32 = vld [vmem:[%s0 + $0x78] sm:$0xff]
  %v33 = vld [vmem:[%s0 + $0x80] sm:$0xff]
  %v34 = vld [vmem:[%s0 + $0x88] sm:$0xf]
  %v35 = vld [vmem:[%s0 + $0x8c] sm:$0xff]
  %v36 = vld [vmem:[%s0 + $0x94] sm:$0xff]
  %v37 = vld [vmem:[%s0 + $0x9c] sm:$0xff]
  %v38 = vld [vmem:[%s0 + $0xa4] sm:$0xf]
  %v39 = vld [vmem:[%s0 + $0xa8] sm:$0xff]
  %v40 = vld [vmem:[%s0 + $0xb0] sm:$0xff]
  %v41 = vld [vmem:[%s0 + $0xb8] sm:$0xff]
  %v42 = vld [vmem:[%s0 + $0xc0] sm:$0xf]
  %v43 = vld [vmem:[%s0 + $0xc4] sm:$0xff]
  %v44 = vld [vmem:[%s0 + $0xcc] sm:$0xff]
  %v45 = vld [vmem:[%s0 + $0xd4] sm:$0xff]
  %v46 = vld [vmem:[%s0 + $0xdc] sm:$0xf]
  %v47 = vld [vmem:[%s0 + $0xe0] sm:$0xff]
  %v48 = vld [vmem:[%s0 + $0xe8] sm:$0xff]
  %v49 = vld [vmem:[%s0 + $0xf0] sm:$0xff]
  %v50 = vld [vmem:[%s0 + $0xf8] sm:$0xf]
  %v51 = vld [vmem:[%s0 + $0xfc] sm:$0xff]
  %v52 = vld [vmem:[%s0 + $0x104] sm:$0xff]
  %v53 = vld [vmem:[%s0 + $0x10c] sm:$0xff]
  %v54 = vld [vmem:[%s0 + $0x114] sm:$0xf]
  %v55 = vld [vmem:[%s0 + $0x118] sm:$0xff]
  %v56 = vld [vmem:[%s0 + $0x120] sm:$0xff]
  %v57 = vld [vmem:[%s0 + $0x128] sm:$0xff]
  %v58 = vld [vmem:[%s0 + $0x130] sm:$0xf]
  %v59 = vld [vmem:[%s0 + $0x134] sm:$0xff]
  %v60 = vld [vmem:[%s0 + $0x13c] sm:$0xff]
  %v61 = vld [vmem:[%s0 + $0x144] sm:$0xff]
  %v62 = vld [vmem:[%s0 + $0x14c] sm:$0xf]
  %v63 = vld [vmem:[%s0 + $0x150] sm:$0xff]
  %v64 = vld [vmem:[%s0 + $0x158] sm:$0xff]
  %v65 = vld [vmem:[%s0 + $0x160] sm:$0xff]
  %v66 = vld [vmem:[%s0 + $0x168] sm:$0xf]
  %v67 = vld [vmem:[%s0 + $0x16c] sm:$0xff]
  %v68 = vld [vmem:[%s0 + $0x174] sm:$0xff]
  %v69 = vld [vmem:[%s0 + $0x17c] sm:$0xff]
  %v70 = vld [vmem:[%s0 + $0x184] sm:$0xf]
  %v71 = vld [vmem:[%s0 + $0x188] sm:$0xff]
  %v72 = vld [vmem:[%s0 + $0x190] sm:$0xff]
  %v73 = vld [vmem:[%s0 + $0x198] sm:$0xff]
  %v74 = vld [vmem:[%s0 + $0x1a0] sm:$0xf]
  %v75 = vld [vmem:[%s0 + $0x1a4] sm:$0xff]
  %v76 = vld [vmem:[%s0 + $0x1ac] sm:$0xff]
  %v77 = vld [vmem:[%s0 + $0x1b4] sm:$0xff]
  %v78 = vld [vmem:[%s0 + $0x1bc] sm:$0xf]
  %v79 = vld [vmem:[%s0 + $0x1c0] sm:$0xff]
  %v80 = vld [vmem:[%s0 + $0x1c8] sm:$0xff]
  %v81 = vld [vmem:[%s0 + $0x1d0] sm:$0xff]
  %v82 = vld [vmem:[%s0 + $0x1d8] sm:$0xf]
  %v83 = vld [vmem:[%s0 + $0x1dc] sm:$0xff]
  %v84 = vld [vmem:[%s0 + $0x1e4] sm:$0xff]
  %v85 = vld [vmem:[%s0 + $0x1ec] sm:$0xff]
  %v86 = vld [vmem:[%s0 + $0x1f4] sm:$0xf]
  %v87 = vld [vmem:[%s0 + $0x1f8] sm:$0xff]
  %v88 = vld [vmem:[%s0 + $0x200] sm:$0xff]
  %v89 = vld [vmem:[%s0 + $0x208] sm:$0xff]
  %v90 = vld [vmem:[%s0 + $0x210] sm:$0xf]
  %v91 = vld [vmem:[%s0 + $0x214] sm:$0xff]
  %v92 = vld [vmem:[%s0 + $0x21c] sm:$0xff]
  %v93 = vld [vmem:[%s0 + $0x224] sm:$0xff]
  %v94 = vld [vmem:[%s0 + $0x22c] sm:$0xf]
  %v95 = vld [vmem:[%s0 + $0x230] sm:$0xff]
  %v96 = vld [vmem:[%s0 + $0x238] sm:$0xff]
  %v97 = vld [vmem:[%s0 + $0x240] sm:$0xff]
  %v98 = vld [vmem:[%s0 + $0x248] sm:$0xf]
  %v99 = vld [vmem:[%s0 + $0x24c] sm:$0xff]
  %v100 = vld [vmem:[%s0 + $0x254] sm:$0xff]
  %v101 = vld [vmem:[%s0 + $0x25c] sm:$0xff]
  %v102 = vld [vmem:[%s0 + $0x264] sm:$0xf]
  %v103 = vld [vmem:[%s0 + $0x268] sm:$0xff]
  %v104 = vld [vmem:[%s0 + $0x270] sm:$0xff]
  %v105 = vld [vmem:[%s0 + $0x278] sm:$0xff]
  %v106 = vld [vmem:[%s0 + $0x280] sm:$0xf]
  %v107 = vld [vmem:[%s0 + $0x284] sm:$0xff]
  %v108 = vld [vmem:[%s0 + $0x28c] sm:$0xff]
  %v109 = vld [vmem:[%s0 + $0x294] sm:$0xff]
  %v110 = vld [vmem:[%s0 + $0x29c] sm:$0xf]
  %v111 = vld [vmem:[%s0 + $0x2a0] sm:$0xff]
  %v112 = vld [vmem:[%s0 + $0x2a8] sm:$0xff]
  %v113 = vld [vmem:[%s0 + $0x2b0] sm:$0xff]
  %v114 = vld [vmem:[%s0 + $0x2b8] sm:$0xf]
  %v115 = vld [vmem:[%s0 + $0x2bc] sm:$0xff]
  %v116 = vld [vmem:[%s0 + $0x2c4] sm:$0xff]
  %v117 = vld [vmem:[%s0 + $0x2cc] sm:$0xff]
  %v118 = vld [vmem:[%s0 + $0x2d4] sm:$0xf]
  %v119 = vld [vmem:[%s0 + $0x2d8] sm:$0xff]
  %v120 = vld [vmem:[%s0 + $0x2e0] sm:$0xff]
  %v121 = vld [vmem:[%s0 + $0x2e8] sm:$0xff]
  %v122 = vld [vmem:[%s0 + $0x2f0] sm:$0xf]
  %v123 = vld [vmem:[%s0 + $0x2f4] sm:$0xff]
  %v124 = vld [vmem:[%s0 + $0x2fc] sm:$0xff]
  %v125 = vld [vmem:[%s0 + $0x304] sm:$0xff]
  %v126 = vld [vmem:[%s0 + $0x30c] sm:$0xf]
  %v127 = vld [vmem:[%s0 + $0x310] sm:$0xff]
  %v128 = vld [vmem:[%s0 + $0x318] sm:$0xff]
  %v129 = vld [vmem:[%s0 + $0x320] sm:$0xff]
  %v130 = vld [vmem:[%s0 + $0x328] sm:$0xf]
  %v131 = vld [vmem:[%s0 + $0x32c] sm:$0xff]
  %v132 = vld [vmem:[%s0 + $0x334] sm:$0xff]
  %v133 = vld [vmem:[%s0 + $0x33c] sm:$0xff]
  %v134 = vld [vmem:[%s0 + $0x344] sm:$0xf]
  %v135 = vld [vmem:[%s0 + $0x348] sm:$0xff]
  %v136 = vld [vmem:[%s0 + $0x350] sm:$0xff]
  %v137 = vld [vmem:[%s0 + $0x358] sm:$0xff]
  %v138 = vld [vmem:[%s0 + $0x360] sm:$0xf]
  %v139 = vld [vmem:[%s0 + $0x364] sm:$0xff]
  %v140 = vld [vmem:[%s0 + $0x36c] sm:$0xff]
  %v141 = vld [vmem:[%s0 + $0x374] sm:$0xff]
  %v142 = vld [vmem:[%s0 + $0x37c] sm:$0xf]
  %v143 = vld [vmem:[%s1] sm:$0xf]
  %v144 = vld [vmem:[%s1 + $0x4] sm:$0xf]
  %v145 = vld [vmem:[%s1 + $0x8] sm:$0xf]
  %v146 = vld [vmem:[%s1 + $0xc] sm:$0xf]
  %v147 = vld [vmem:[%s1 + $0x10] sm:$0xf]
  %v148 = vld [vmem:[%s1 + $0x14] sm:$0xf]
  %v149 = vld [vmem:[%s1 + $0x18] sm:$0xf]
  %v150 = vld [vmem:[%s1 + $0x1c] sm:$0xf]
  %v151 = vld [vmem:[%s1 + $0x20] sm:$0xf]
  %v152 = vld [vmem:[%s1 + $0x24] sm:$0xf]
  %v153 = vld [vmem:[%s1 + $0x28] sm:$0xf]
  %v154 = vld [vmem:[%s1 + $0x2c] sm:$0xf]
  %v155 = vld [vmem:[%s1 + $0x30] sm:$0xf]
  %v156 = vld [vmem:[%s1 + $0x34] sm:$0xf]
  %v157 = vld [vmem:[%s1 + $0x38] sm:$0xf]
  %v158 = vld [vmem:[%s1 + $0x3c] sm:$0xf]
  %v159 = vld [vmem:[%s1 + $0x40] sm:$0xf]
  %v160 = vld [vmem:[%s1 + $0x44] sm:$0xf]
  %v161 = vld [vmem:[%s1 + $0x48] sm:$0xf]
  %v162 = vld [vmem:[%s1 + $0x4c] sm:$0xf]
  %v163 = vld [vmem:[%s1 + $0x50] sm:$0xf]
  %v164 = vld [vmem:[%s1 + $0x54] sm:$0xf]
  %v165 = vld [vmem:[%s1 + $0x58] sm:$0xf]
  %v166 = vld [vmem:[%s1 + $0x5c] sm:$0xf]
  %v167 = vld [vmem:[%s1 + $0x60] sm:$0xf]
  %v168 = vld [vmem:[%s1 + $0x64] sm:$0xf]
  %v169 = vld [vmem:[%s1 + $0x68] sm:$0xf]
  %v170 = vld [vmem:[%s1 + $0x6c] sm:$0xf]
  %v171 = vld [vmem:[%s1 + $0x70] sm:$0xf]
  %v172 = vld [vmem:[%s1 + $0x74] sm:$0xf]
  %v173 = vld [vmem:[%s1 + $0x78] sm:$0xf]
  %v174 = vld [vmem:[%s1 + $0x7c] sm:$0xf]
  %v175 = vld [vmem:[%s1 + $0x80] sm:$0xf]
  %v176 = vld [vmem:[%s1 + $0x84] sm:$0xf]
  %v177 = vld [vmem:[%s1 + $0x88] sm:$0xf]
  %v178 = vld [vmem:[%s1 + $0x8c] sm:$0xf]
  %v179 = vld [vmem:[%s1 + $0x90] sm:$0xf]
  %v180 = vld [vmem:[%s1 + $0x94] sm:$0xf]
  %v181 = vld [vmem:[%s1 + $0x98] sm:$0xf]
  %v182 = vld [vmem:[%s1 + $0x9c] sm:$0xf]
  %v183 = vld [vmem:[%s1 + $0xa0] sm:$0xf]
  %v184 = vld [vmem:[%s1 + $0xa4] sm:$0xf]
  %v185 = vld [vmem:[%s1 + $0xa8] sm:$0xf]
  %v186 = vld [vmem:[%s1 + $0xac] sm:$0xf]
  %v187 = vld [vmem:[%s1 + $0xb0] sm:$0xf]
  %v188 = vld [vmem:[%s1 + $0xb4] sm:$0xf]
  %v189 = vld [vmem:[%s1 + $0xb8] sm:$0xf]
  %v190 = vld [vmem:[%s1 + $0xbc] sm:$0xf]
  %v191 = vld [vmem:[%s1 + $0xc0] sm:$0xf]
  %v192 = vld [vmem:[%s1 + $0xc4] sm:$0xf]
  %v193 = vld [vmem:[%s1 + $0xc8] sm:$0xf]
  %v194 = vld [vmem:[%s1 + $0xcc] sm:$0xf]
  %v195 = vld [vmem:[%s1 + $0xd0] sm:$0xf]
  %v196 = vld [vmem:[%s1 + $0xd4] sm:$0xf]
  %v197 = vld [vmem:[%s1 + $0xd8] sm:$0xf]
  %v198 = vld [vmem:[%s1 + $0xdc] sm:$0xf]
  %v199 = vld [vmem:[%s1 + $0xe0] sm:$0xf]
  %v200 = vld [vmem:[%s1 + $0xe4] sm:$0xf]
  %v201 = vld [vmem:[%s1 + $0xe8] sm:$0xf]
  %v202 = vld [vmem:[%s1 + $0xec] sm:$0xf]
  %v203 = vld [vmem:[%s1 + $0xf0] sm:$0xf]
  %v204 = vld [vmem:[%s1 + $0xf4] sm:$0xf]
  %v205 = vld [vmem:[%s1 + $0xf8] sm:$0xf]
  %v206 = vld [vmem:[%s1 + $0xfc] sm:$0xf]
  %v207 = vld [vmem:[%s1 + $0x100] sm:$0xf]
  %v208 = vld [vmem:[%s1 + $0x104] sm:$0xf]
  %v209 = vld [vmem:[%s1 + $0x108] sm:$0xf]
  %v210 = vld [vmem:[%s1 + $0x10c] sm:$0xf]
  %v211 = vld [vmem:[%s1 + $0x110] sm:$0xf]
  %v212 = vld [vmem:[%s1 + $0x114] sm:$0xf]
  %v213 = vld [vmem:[%s1 + $0x118] sm:$0xf]
  %v214 = vld [vmem:[%s1 + $0x11c] sm:$0xf]
  %v215 = vld [vmem:[%s1 + $0x120] sm:$0xf]
  %v216 = vld [vmem:[%s1 + $0x124] sm:$0xf]
  %v217 = vld [vmem:[%s1 + $0x128] sm:$0xf]
  %v218 = vld [vmem:[%s1 + $0x12c] sm:$0xf]
  %v219 = vld [vmem:[%s1 + $0x130] sm:$0xf]
  %v220 = vld [vmem:[%s1 + $0x134] sm:$0xf]
  %v221 = vld [vmem:[%s1 + $0x138] sm:$0xf]
  %v222 = vld [vmem:[%s1 + $0x13c] sm:$0xf]
  %v223 = vld [vmem:[%s1 + $0x140] sm:$0xf]
  %v224 = vld [vmem:[%s1 + $0x144] sm:$0xf]
  %v225 = vld [vmem:[%s1 + $0x148] sm:$0xf]
  %v226 = vld [vmem:[%s1 + $0x14c] sm:$0xf]
  %v227 = vld [vmem:[%s1 + $0x150] sm:$0xf]
  %v228 = vld [vmem:[%s1 + $0x154] sm:$0xf]
  %v229 = vld [vmem:[%s1 + $0x158] sm:$0xf]
  %v230 = vld [vmem:[%s1 + $0x15c] sm:$0xf]
  %v231 = vld [vmem:[%s1 + $0x160] sm:$0xf]
  %v232 = vld [vmem:[%s1 + $0x164] sm:$0xf]
  %v233 = vld [vmem:[%s1 + $0x168] sm:$0xf]
  %v234 = vld [vmem:[%s1 + $0x16c] sm:$0xf]
  %v235 = vld [vmem:[%s1 + $0x170] sm:$0xf]
  %v236 = vld [vmem:[%s1 + $0x174] sm:$0xf]
  %v237 = vld [vmem:[%s1 + $0x178] sm:$0xf]
  %v238 = vld [vmem:[%s1 + $0x17c] sm:$0xf]
  %v239 = vld [vmem:[%s1 + $0x180] sm:$0xf]
  %v240 = vld [vmem:[%s1 + $0x184] sm:$0xf]
  %v241 = vld [vmem:[%s1 + $0x188] sm:$0xf]
  %v242 = vld [vmem:[%s1 + $0x18c] sm:$0xf]
  %v243 = vld [vmem:[%s1 + $0x190] sm:$0xf]
  %v244 = vld [vmem:[%s1 + $0x194] sm:$0xf]
  %v245 = vld [vmem:[%s1 + $0x198] sm:$0xf]
  %v246 = vld [vmem:[%s1 + $0x19c] sm:$0xf]
  %v247 = vld [vmem:[%s1 + $0x1a0] sm:$0xf]
  %v248 = vld [vmem:[%s1 + $0x1a4] sm:$0xf]
  %v249 = vld [vmem:[%s1 + $0x1a8] sm:$0xf]
  %v250 = vld [vmem:[%s1 + $0x1ac] sm:$0xf]
  %v251 = vld [vmem:[%s1 + $0x1b0] sm:$0xf]
  %v252 = vld [vmem:[%s1 + $0x1b4] sm:$0xf]
  %v253 = vld [vmem:[%s1 + $0x1b8] sm:$0xf]
  %v254 = vld [vmem:[%s1 + $0x1bc] sm:$0xf]
  %v383 = vunpack.c.l.b16 %v15
  %v384 = vunpack.c.h.b16 %v15
  %v385 = vunpack.c.l.b16 %v16
  %v386 = vunpack.c.h.b16 %v16
  %v387 = vunpack.c.l.b16 %v17
  %v388 = vunpack.c.h.b16 %v17
  %v389 = vunpack.c.l.b16 %v18
  %v390 = vunpack.c.l.b16 %v19
  %v391 = vunpack.c.h.b16 %v19
  %v392 = vunpack.c.l.b16 %v20
  %v393 = vunpack.c.h.b16 %v20
  %v394 = vunpack.c.l.b16 %v21
  %v395 = vunpack.c.h.b16 %v21
  %v396 = vunpack.c.l.b16 %v22
  %v397 = vunpack.c.l.b16 %v23
  %v398 = vunpack.c.h.b16 %v23
  %v399 = vunpack.c.l.b16 %v24
  %v400 = vunpack.c.h.b16 %v24
  %v401 = vunpack.c.l.b16 %v25
  %v402 = vunpack.c.h.b16 %v25
  %v403 = vunpack.c.l.b16 %v26
  %v404 = vunpack.c.l.b16 %v27
  %v405 = vunpack.c.h.b16 %v27
  %v406 = vunpack.c.l.b16 %v28
  %v407 = vunpack.c.h.b16 %v28
  %v408 = vunpack.c.l.b16 %v29
  %v409 = vunpack.c.h.b16 %v29
  %v410 = vunpack.c.l.b16 %v30
  %v411 = vunpack.c.l.b16 %v31
  %v412 = vunpack.c.h.b16 %v31
  %v413 = vunpack.c.l.b16 %v32
  %v414 = vunpack.c.h.b16 %v32
  %v415 = vunpack.c.l.b16 %v33
  %v416 = vunpack.c.h.b16 %v33
  %v417 = vunpack.c.l.b16 %v34
  %v418 = vunpack.c.l.b16 %v35
  %v419 = vunpack.c.h.b16 %v35
  %v420 = vunpack.c.l.b16 %v36
  %v421 = vunpack.c.h.b16 %v36
  %v422 = vunpack.c.l.b16 %v37
  %v423 = vunpack.c.h.b16 %v37
  %v424 = vunpack.c.l.b16 %v38
  %v425 = vunpack.c.l.b16 %v39
  %v426 = vunpack.c.h.b16 %v39
  %v427 = vunpack.c.l.b16 %v40
  %v428 = vunpack.c.h.b16 %v40
  %v429 = vunpack.c.l.b16 %v41
  %v430 = vunpack.c.h.b16 %v41
  %v431 = vunpack.c.l.b16 %v42
  %v432 = vunpack.c.l.b16 %v43
  %v433 = vunpack.c.h.b16 %v43
  %v434 = vunpack.c.l.b16 %v44
  %v435 = vunpack.c.h.b16 %v44
  %v436 = vunpack.c.l.b16 %v45
  %v437 = vunpack.c.h.b16 %v45
  %v438 = vunpack.c.l.b16 %v46
  %v439 = vunpack.c.l.b16 %v47
  %v440 = vunpack.c.h.b16 %v47
  %v441 = vunpack.c.l.b16 %v48
  %v442 = vunpack.c.h.b16 %v48
  %v443 = vunpack.c.l.b16 %v49
  %v444 = vunpack.c.h.b16 %v49
  %v445 = vunpack.c.l.b16 %v50
  %v446 = vunpack.c.l.b16 %v51
  %v447 = vunpack.c.h.b16 %v51
  %v448 = vunpack.c.l.b16 %v52
  %v449 = vunpack.c.h.b16 %v52
  %v450 = vunpack.c.l.b16 %v53
  %v451 = vunpack.c.h.b16 %v53
  %v452 = vunpack.c.l.b16 %v54
  %v453 = vunpack.c.l.b16 %v55
  %v454 = vunpack.c.h.b16 %v55
  %v455 = vunpack.c.l.b16 %v56
  %v456 = vunpack.c.h.b16 %v56
  %v457 = vunpack.c.l.b16 %v57
  %v458 = vunpack.c.h.b16 %v57
  %v459 = vunpack.c.l.b16 %v58
  %v460 = vunpack.c.l.b16 %v59
  %v461 = vunpack.c.h.b16 %v59
  %v462 = vunpack.c.l.b16 %v60
  %v463 = vunpack.c.h.b16 %v60
  %v464 = vunpack.c.l.b16 %v61
  %v465 = vunpack.c.h.b16 %v61
  %v466 = vunpack.c.l.b16 %v62
  %v467 = vunpack.c.l.b16 %v63
  %v468 = vunpack.c.h.b16 %v63
  %v469 = vunpack.c.l.b16 %v64
  %v470 = vunpack.c.h.b16 %v64
  %v471 = vunpack.c.l.b16 %v65
  %v472 = vunpack.c.h.b16 %v65
  %v473 = vunpack.c.l.b16 %v66
  %v474 = vunpack.c.l.b16 %v67
  %v475 = vunpack.c.h.b16 %v67
  %v476 = vunpack.c.l.b16 %v68
  %v477 = vunpack.c.h.b16 %v68
  %v478 = vunpack.c.l.b16 %v69
  %v479 = vunpack.c.h.b16 %v69
  %v480 = vunpack.c.l.b16 %v70
  %v481 = vunpack.c.l.b16 %v71
  %v482 = vunpack.c.h.b16 %v71
  %v483 = vunpack.c.l.b16 %v72
  %v484 = vunpack.c.h.b16 %v72
  %v485 = vunpack.c.l.b16 %v73
  %v486 = vunpack.c.h.b16 %v73
  %v487 = vunpack.c.l.b16 %v74
  %v488 = vunpack.c.l.b16 %v75
  %v489 = vunpack.c.h.b16 %v75
  %v490 = vunpack.c.l.b16 %v76
  %v491 = vunpack.c.h.b16 %v76
  %v492 = vunpack.c.l.b16 %v77
  %v493 = vunpack.c.h.b16 %v77
  %v494 = vunpack.c.l.b16 %v78
  %v495 = vunpack.c.l.b16 %v79
  %v496 = vunpack.c.h.b16 %v79
  %v497 = vunpack.c.l.b16 %v80
  %v498 = vunpack.c.h.b16 %v80
  %v499 = vunpack.c.l.b16 %v81
  %v500 = vunpack.c.h.b16 %v81
  %v501 = vunpack.c.l.b16 %v82
  %v502 = vunpack.c.l.b16 %v83
  %v503 = vunpack.c.h.b16 %v83
  %v504 = vunpack.c.l.b16 %v84
  %v505 = vunpack.c.h.b16 %v84
  %v506 = vunpack.c.l.b16 %v85
  %v507 = vunpack.c.h.b16 %v85
  %v508 = vunpack.c.l.b16 %v86
  %v509 = vunpack.c.l.b16 %v87
  %v510 = vunpack.c.h.b16 %v87
  %v511 = vunpack.c.l.b16 %v88
  %v512 = vunpack.c.h.b16 %v88
  %v513 = vunpack.c.l.b16 %v89
  %v514 = vunpack.c.h.b16 %v89
  %v515 = vunpack.c.l.b16 %v90
  %v516 = vunpack.c.l.b16 %v91
  %v517 = vunpack.c.h.b16 %v91
  %v518 = vunpack.c.l.b16 %v92
  %v519 = vunpack.c.h.b16 %v92
  %v520 = vunpack.c.l.b16 %v93
  %v521 = vunpack.c.h.b16 %v93
  %v522 = vunpack.c.l.b16 %v94
  %v523 = vunpack.c.l.b16 %v95
  %v524 = vunpack.c.h.b16 %v95
  %v525 = vunpack.c.l.b16 %v96
  %v526 = vunpack.c.h.b16 %v96
  %v527 = vunpack.c.l.b16 %v97
  %v528 = vunpack.c.h.b16 %v97
  %v529 = vunpack.c.l.b16 %v98
  %v530 = vunpack.c.l.b16 %v99
  %v531 = vunpack.c.h.b16 %v99
  %v532 = vunpack.c.l.b16 %v100
  %v533 = vunpack.c.h.b16 %v100
  %v534 = vunpack.c.l.b16 %v101
  %v535 = vunpack.c.h.b16 %v101
  %v536 = vunpack.c.l.b16 %v102
  %v537 = vunpack.c.l.b16 %v103
  %v538 = vunpack.c.h.b16 %v103
  %v539 = vunpack.c.l.b16 %v104
  %v540 = vunpack.c.h.b16 %v104
  %v541 = vunpack.c.l.b16 %v105
  %v542 = vunpack.c.h.b16 %v105
  %v543 = vunpack.c.l.b16 %v106
  %v544 = vunpack.c.l.b16 %v107
  %v545 = vunpack.c.h.b16 %v107
  %v546 = vunpack.c.l.b16 %v108
  %v547 = vunpack.c.h.b16 %v108
  %v548 = vunpack.c.l.b16 %v109
  %v549 = vunpack.c.h.b16 %v109
  %v550 = vunpack.c.l.b16 %v110
  %v551 = vunpack.c.l.b16 %v111
  %v552 = vunpack.c.h.b16 %v111
  %v553 = vunpack.c.l.b16 %v112
  %v554 = vunpack.c.h.b16 %v112
  %v555 = vunpack.c.l.b16 %v113
  %v556 = vunpack.c.h.b16 %v113
  %v557 = vunpack.c.l.b16 %v114
  %v558 = vunpack.c.l.b16 %v115
  %v559 = vunpack.c.h.b16 %v115
  %v560 = vunpack.c.l.b16 %v116
  %v561 = vunpack.c.h.b16 %v116
  %v562 = vunpack.c.l.b16 %v117
  %v563 = vunpack.c.h.b16 %v117
  %v564 = vunpack.c.l.b16 %v118
  %v565 = vunpack.c.l.b16 %v119
  %v566 = vunpack.c.h.b16 %v119
  %v567 = vunpack.c.l.b16 %v120
  %v568 = vunpack.c.h.b16 %v120
  %v569 = vunpack.c.l.b16 %v121
  %v570 = vunpack.c.h.b16 %v121
  %v571 = vunpack.c.l.b16 %v122
  %v572 = vunpack.c.l.b16 %v123
  %v573 = vunpack.c.h.b16 %v123
  %v574 = vunpack.c.l.b16 %v124
  %v575 = vunpack.c.h.b16 %v124
  %v576 = vunpack.c.l.b16 %v125
  %v577 = vunpack.c.h.b16 %v125
  %v578 = vunpack.c.l.b16 %v126
  %v579 = vunpack.c.l.b16 %v127
  %v580 = vunpack.c.h.b16 %v127
  %v581 = vunpack.c.l.b16 %v128
  %v582 = vunpack.c.h.b16 %v128
  %v583 = vunpack.c.l.b16 %v129
  %v584 = vunpack.c.h.b16 %v129
  %v585 = vunpack.c.l.b16 %v130
  %v586 = vunpack.c.l.b16 %v131
  %v587 = vunpack.c.h.b16 %v131
  %v588 = vunpack.c.l.b16 %v132
  %v589 = vunpack.c.h.b16 %v132
  %v590 = vunpack.c.l.b16 %v133
  %v591 = vunpack.c.h.b16 %v133
  %v592 = vunpack.c.l.b16 %v134
  %v593 = vunpack.c.l.b16 %v135
  %v594 = vunpack.c.h.b16 %v135
  %v595 = vunpack.c.l.b16 %v136
  %v596 = vunpack.c.h.b16 %v136
  %v597 = vunpack.c.l.b16 %v137
  %v598 = vunpack.c.h.b16 %v137
  %v599 = vunpack.c.l.b16 %v138
  %v600 = vunpack.c.l.b16 %v139
  %v601 = vunpack.c.h.b16 %v139
  %v602 = vunpack.c.l.b16 %v140
  %v603 = vunpack.c.h.b16 %v140
  %v604 = vunpack.c.l.b16 %v141
  %v605 = vunpack.c.h.b16 %v141
  %v606 = vunpack.c.l.b16 %v142
  %v607 = vpack.c.b16 %v390, %v383
  %v608 = vpack.c.b16 %v391, %v384
  %v609 = vpack.c.b16 %v392, %v385
  %v610 = vpack.c.b16 %v393, %v386
  %v611 = vpack.c.b16 %v394, %v387
  %v612 = vpack.c.b16 %v395, %v388
  %v613 = vpack.c.b16 %v396, %v389
  %v614 = vpack.c.b16 %v404, %v397
  %v615 = vpack.c.b16 %v405, %v398
  %v616 = vpack.c.b16 %v406, %v399
  %v617 = vpack.c.b16 %v407, %v400
  %v618 = vpack.c.b16 %v408, %v401
  %v619 = vpack.c.b16 %v409, %v402
  %v620 = vpack.c.b16 %v410, %v403
  %v621 = vpack.c.b16 %v418, %v411
  %v622 = vpack.c.b16 %v419, %v412
  %v623 = vpack.c.b16 %v420, %v413
  %v624 = vpack.c.b16 %v421, %v414
  %v625 = vpack.c.b16 %v422, %v415
  %v626 = vpack.c.b16 %v423, %v416
  %v627 = vpack.c.b16 %v424, %v417
  %v628 = vpack.c.b16 %v432, %v425
  %v629 = vpack.c.b16 %v433, %v426
  %v630 = vpack.c.b16 %v434, %v427
  %v631 = vpack.c.b16 %v435, %v428
  %v632 = vpack.c.b16 %v436, %v429
  %v633 = vpack.c.b16 %v437, %v430
  %v634 = vpack.c.b16 %v438, %v431
  %v635 = vpack.c.b16 %v446, %v439
  %v636 = vpack.c.b16 %v447, %v440
  %v637 = vpack.c.b16 %v448, %v441
  %v638 = vpack.c.b16 %v449, %v442
  %v639 = vpack.c.b16 %v450, %v443
  %v640 = vpack.c.b16 %v451, %v444
  %v641 = vpack.c.b16 %v452, %v445
  %v642 = vpack.c.b16 %v460, %v453
  %v643 = vpack.c.b16 %v461, %v454
  %v644 = vpack.c.b16 %v462, %v455
  %v645 = vpack.c.b16 %v463, %v456
  %v646 = vpack.c.b16 %v464, %v457
  %v647 = vpack.c.b16 %v465, %v458
  %v648 = vpack.c.b16 %v466, %v459
  %v649 = vpack.c.b16 %v474, %v467
  %v650 = vpack.c.b16 %v475, %v468
  %v651 = vpack.c.b16 %v476, %v469
  %v652 = vpack.c.b16 %v477, %v470
  %v653 = vpack.c.b16 %v478, %v471
  %v654 = vpack.c.b16 %v479, %v472
  %v655 = vpack.c.b16 %v480, %v473
  %v656 = vpack.c.b16 %v488, %v481
  %v657 = vpack.c.b16 %v489, %v482
  %v658 = vpack.c.b16 %v490, %v483
  %v659 = vpack.c.b16 %v491, %v484
  %v660 = vpack.c.b16 %v492, %v485
  %v661 = vpack.c.b16 %v493, %v486
  %v662 = vpack.c.b16 %v494, %v487
  %v663 = vpack.c.b16 %v502, %v495
  %v664 = vpack.c.b16 %v503, %v496
  %v665 = vpack.c.b16 %v504, %v497
  %v666 = vpack.c.b16 %v505, %v498
  %v667 = vpack.c.b16 %v506, %v499
  %v668 = vpack.c.b16 %v507, %v500
  %v669 = vpack.c.b16 %v508, %v501
  %v670 = vpack.c.b16 %v516, %v509
  %v671 = vpack.c.b16 %v517, %v510
  %v672 = vpack.c.b16 %v518, %v511
  %v673 = vpack.c.b16 %v519, %v512
  %v674 = vpack.c.b16 %v520, %v513
  %v675 = vpack.c.b16 %v521, %v514
  %v676 = vpack.c.b16 %v522, %v515
  %v677 = vpack.c.b16 %v530, %v523
  %v678 = vpack.c.b16 %v531, %v524
  %v679 = vpack.c.b16 %v532, %v525
  %v680 = vpack.c.b16 %v533, %v526
  %v681 = vpack.c.b16 %v534, %v527
  %v682 = vpack.c.b16 %v535, %v528
  %v683 = vpack.c.b16 %v536, %v529
  %v684 = vpack.c.b16 %v544, %v537
  %v685 = vpack.c.b16 %v545, %v538
  %v686 = vpack.c.b16 %v546, %v539
  %v687 = vpack.c.b16 %v547, %v540
  %v688 = vpack.c.b16 %v548, %v541
  %v689 = vpack.c.b16 %v549, %v542
  %v690 = vpack.c.b16 %v550, %v543
  %v691 = vpack.c.b16 %v558, %v551
  %v692 = vpack.c.b16 %v559, %v552
  %v693 = vpack.c.b16 %v560, %v553
  %v694 = vpack.c.b16 %v561, %v554
  %v695 = vpack.c.b16 %v562, %v555
  %v696 = vpack.c.b16 %v563, %v556
  %v697 = vpack.c.b16 %v564, %v557
  %v698 = vpack.c.b16 %v572, %v565
  %v699 = vpack.c.b16 %v573, %v566
  %v700 = vpack.c.b16 %v574, %v567
  %v701 = vpack.c.b16 %v575, %v568
  %v702 = vpack.c.b16 %v576, %v569
  %v703 = vpack.c.b16 %v577, %v570
  %v704 = vpack.c.b16 %v578, %v571
  %v705 = vpack.c.b16 %v586, %v579
  %v706 = vpack.c.b16 %v587, %v580
  %v707 = vpack.c.b16 %v588, %v581
  %v708 = vpack.c.b16 %v589, %v582
  %v709 = vpack.c.b16 %v590, %v583
  %v710 = vpack.c.b16 %v591, %v584
  %v711 = vpack.c.b16 %v592, %v585
  %v712 = vpack.c.b16 %v600, %v593
  %v713 = vpack.c.b16 %v601, %v594
  %v714 = vpack.c.b16 %v602, %v595
  %v715 = vpack.c.b16 %v603, %v596
  %v716 = vpack.c.b16 %v604, %v597
  %v717 = vpack.c.b16 %v605, %v598
  %v718 = vpack.c.b16 %v606, %v599
  %v943 = vunpack.c.l.b16 %v143
  %v944 = vunpack.c.l.b16 %v144
  %v945 = vunpack.c.l.b16 %v145
  %v946 = vunpack.c.l.b16 %v146
  %v947 = vunpack.c.l.b16 %v147
  %v948 = vunpack.c.l.b16 %v148
  %v949 = vunpack.c.l.b16 %v149
  %v950 = vunpack.c.l.b16 %v150
  %v951 = vunpack.c.l.b16 %v151
  %v952 = vunpack.c.l.b16 %v152
  %v953 = vunpack.c.l.b16 %v153
  %v954 = vunpack.c.l.b16 %v154
  %v955 = vunpack.c.l.b16 %v155
  %v956 = vunpack.c.l.b16 %v156
  %v957 = vunpack.c.l.b16 %v157
  %v958 = vunpack.c.l.b16 %v158
  %v959 = vunpack.c.l.b16 %v159
  %v960 = vunpack.c.l.b16 %v160
  %v961 = vunpack.c.l.b16 %v161
  %v962 = vunpack.c.l.b16 %v162
  %v963 = vunpack.c.l.b16 %v163
  %v964 = vunpack.c.l.b16 %v164
  %v965 = vunpack.c.l.b16 %v165
  %v966 = vunpack.c.l.b16 %v166
  %v967 = vunpack.c.l.b16 %v167
  %v968 = vunpack.c.l.b16 %v168
  %v969 = vunpack.c.l.b16 %v169
  %v970 = vunpack.c.l.b16 %v170
  %v971 = vunpack.c.l.b16 %v171
  %v972 = vunpack.c.l.b16 %v172
  %v973 = vunpack.c.l.b16 %v173
  %v974 = vunpack.c.l.b16 %v174
  %v975 = vunpack.c.l.b16 %v175
  %v976 = vunpack.c.l.b16 %v176
  %v977 = vunpack.c.l.b16 %v177
  %v978 = vunpack.c.l.b16 %v178
  %v979 = vunpack.c.l.b16 %v179
  %v980 = vunpack.c.l.b16 %v180
  %v981 = vunpack.c.l.b16 %v181
  %v982 = vunpack.c.l.b16 %v182
  %v983 = vunpack.c.l.b16 %v183
  %v984 = vunpack.c.l.b16 %v184
  %v985 = vunpack.c.l.b16 %v185
  %v986 = vunpack.c.l.b16 %v186
  %v987 = vunpack.c.l.b16 %v187
  %v988 = vunpack.c.l.b16 %v188
  %v989 = vunpack.c.l.b16 %v189
  %v990 = vunpack.c.l.b16 %v190
  %v991 = vunpack.c.l.b16 %v191
  %v992 = vunpack.c.l.b16 %v192
  %v993 = vunpack.c.l.b16 %v193
  %v994 = vunpack.c.l.b16 %v194
  %v995 = vunpack.c.l.b16 %v195
  %v996 = vunpack.c.l.b16 %v196
  %v997 = vunpack.c.l.b16 %v197
  %v998 = vunpack.c.l.b16 %v198
  %v999 = vunpack.c.l.b16 %v199
  %v1000 = vunpack.c.l.b16 %v200
  %v1001 = vunpack.c.l.b16 %v201
  %v1002 = vunpack.c.l.b16 %v202
  %v1003 = vunpack.c.l.b16 %v203
  %v1004 = vunpack.c.l.b16 %v204
  %v1005 = vunpack.c.l.b16 %v205
  %v1006 = vunpack.c.l.b16 %v206
  %v1007 = vunpack.c.l.b16 %v207
  %v1008 = vunpack.c.l.b16 %v208
  %v1009 = vunpack.c.l.b16 %v209
  %v1010 = vunpack.c.l.b16 %v210
  %v1011 = vunpack.c.l.b16 %v211
  %v1012 = vunpack.c.l.b16 %v212
  %v1013 = vunpack.c.l.b16 %v213
  %v1014 = vunpack.c.l.b16 %v214
  %v1015 = vunpack.c.l.b16 %v215
  %v1016 = vunpack.c.l.b16 %v216
  %v1017 = vunpack.c.l.b16 %v217
  %v1018 = vunpack.c.l.b16 %v218
  %v1019 = vunpack.c.l.b16 %v219
  %v1020 = vunpack.c.l.b16 %v220
  %v1021 = vunpack.c.l.b16 %v221
  %v1022 = vunpack.c.l.b16 %v222
  %v1023 = vunpack.c.l.b16 %v223
  %v1024 = vunpack.c.l.b16 %v224
  %v1025 = vunpack.c.l.b16 %v225
  %v1026 = vunpack.c.l.b16 %v226
  %v1027 = vunpack.c.l.b16 %v227
  %v1028 = vunpack.c.l.b16 %v228
  %v1029 = vunpack.c.l.b16 %v229
  %v1030 = vunpack.c.l.b16 %v230
  %v1031 = vunpack.c.l.b16 %v231
  %v1032 = vunpack.c.l.b16 %v232
  %v1033 = vunpack.c.l.b16 %v233
  %v1034 = vunpack.c.l.b16 %v234
  %v1035 = vunpack.c.l.b16 %v235
  %v1036 = vunpack.c.l.b16 %v236
  %v1037 = vunpack.c.l.b16 %v237
  %v1038 = vunpack.c.l.b16 %v238
  %v1039 = vunpack.c.l.b16 %v239
  %v1040 = vunpack.c.l.b16 %v240
  %v1041 = vunpack.c.l.b16 %v241
  %v1042 = vunpack.c.l.b16 %v242
  %v1043 = vunpack.c.l.b16 %v243
  %v1044 = vunpack.c.l.b16 %v244
  %v1045 = vunpack.c.l.b16 %v245
  %v1046 = vunpack.c.l.b16 %v246
  %v1047 = vunpack.c.l.b16 %v247
  %v1048 = vunpack.c.l.b16 %v248
  %v1049 = vunpack.c.l.b16 %v249
  %v1050 = vunpack.c.l.b16 %v250
  %v1051 = vunpack.c.l.b16 %v251
  %v1052 = vunpack.c.l.b16 %v252
  %v1053 = vunpack.c.l.b16 %v253
  %v1054 = vunpack.c.l.b16 %v254
  %v1055 = vpack.c.b16 %v944, %v943
  %v1056 = vpack.c.b16 %v946, %v945
  %v1057 = vpack.c.b16 %v948, %v947
  %v1058 = vpack.c.b16 %v950, %v949
  %v1059 = vpack.c.b16 %v952, %v951
  %v1060 = vpack.c.b16 %v954, %v953
  %v1061 = vpack.c.b16 %v956, %v955
  %v1062 = vpack.c.b16 %v958, %v957
  %v1063 = vpack.c.b16 %v960, %v959
  %v1064 = vpack.c.b16 %v962, %v961
  %v1065 = vpack.c.b16 %v964, %v963
  %v1066 = vpack.c.b16 %v966, %v965
  %v1067 = vpack.c.b16 %v968, %v967
  %v1068 = vpack.c.b16 %v970, %v969
  %v1069 = vpack.c.b16 %v972, %v971
  %v1070 = vpack.c.b16 %v974, %v973
  %v1071 = vpack.c.b16 %v976, %v975
  %v1072 = vpack.c.b16 %v978, %v977
  %v1073 = vpack.c.b16 %v980, %v979
  %v1074 = vpack.c.b16 %v982, %v981
  %v1075 = vpack.c.b16 %v984, %v983
  %v1076 = vpack.c.b16 %v986, %v985
  %v1077 = vpack.c.b16 %v988, %v987
  %v1078 = vpack.c.b16 %v990, %v989
  %v1079 = vpack.c.b16 %v992, %v991
  %v1080 = vpack.c.b16 %v994, %v993
  %v1081 = vpack.c.b16 %v996, %v995
  %v1082 = vpack.c.b16 %v998, %v997
  %v1083 = vpack.c.b16 %v1000, %v999
  %v1084 = vpack.c.b16 %v1002, %v1001
  %v1085 = vpack.c.b16 %v1004, %v1003
  %v1086 = vpack.c.b16 %v1006, %v1005
  %v1087 = vpack.c.b16 %v1008, %v1007
  %v1088 = vpack.c.b16 %v1010, %v1009
  %v1089 = vpack.c.b16 %v1012, %v1011
  %v1090 = vpack.c.b16 %v1014, %v1013
  %v1091 = vpack.c.b16 %v1016, %v1015
  %v1092 = vpack.c.b16 %v1018, %v1017
  %v1093 = vpack.c.b16 %v1020, %v1019
  %v1094 = vpack.c.b16 %v1022, %v1021
  %v1095 = vpack.c.b16 %v1024, %v1023
  %v1096 = vpack.c.b16 %v1026, %v1025
  %v1097 = vpack.c.b16 %v1028, %v1027
  %v1098 = vpack.c.b16 %v1030, %v1029
  %v1099 = vpack.c.b16 %v1032, %v1031
  %v1100 = vpack.c.b16 %v1034, %v1033
  %v1101 = vpack.c.b16 %v1036, %v1035
  %v1102 = vpack.c.b16 %v1038, %v1037
  %v1103 = vpack.c.b16 %v1040, %v1039
  %v1104 = vpack.c.b16 %v1042, %v1041
  %v1105 = vpack.c.b16 %v1044, %v1043
  %v1106 = vpack.c.b16 %v1046, %v1045
  %v1107 = vpack.c.b16 %v1048, %v1047
  %v1108 = vpack.c.b16 %v1050, %v1049
  %v1109 = vpack.c.b16 %v1052, %v1051
  %v1110 = vpack.c.b16 %v1054, %v1053
  %1167 = vmatprep.subr.bf16.mxu0 0
  %1168 = vmatpush1.bf16.msra.mxu0 %v1055
  %1169 = vmatprep.subr.bf16.mxu0 0
  %1170 = vmatpush1.bf16.msra.mxu0 %v1056
  %1171 = vmatprep.subr.bf16.mxu0 0
  %1172 = vmatpush1.bf16.msra.mxu0 %v1057
  %1173 = vmatprep.subr.bf16.mxu0 0
  %1174 = vmatpush1.bf16.msra.mxu0 %v1058
  %1175 = vmatprep.subr.bf16.mxu0 0
  %1176 = vmatpush1.bf16.msra.mxu0 %v1059
  %1177 = vmatprep.subr.bf16.mxu0 0
  %1178 = vmatpush1.bf16.msra.mxu0 %v1060
  %1179 = vmatprep.subr.bf16.mxu0 0
  %1180 = vmatpush1.bf16.msra.mxu0 %v1061
  %1181 = vmatprep.subr.bf16.mxu0 0
  %1182 = vmatpush1.bf16.msra.mxu0 %v1062
  %1183 = vmatprep.subr.bf16.mxu0 0
  %1184 = vmatpush1.bf16.msra.mxu0 %v1063
  %1185 = vmatprep.subr.bf16.mxu0 0
  %1186 = vmatpush1.bf16.msra.mxu0 %v1064
  %1187 = vmatprep.subr.bf16.mxu0 0
  %1188 = vmatpush1.bf16.msra.mxu0 %v1065
  %1189 = vmatprep.subr.bf16.mxu0 0
  %1190 = vmatpush1.bf16.msra.mxu0 %v1066
  %1191 = vmatprep.subr.bf16.mxu0 0
  %1192 = vmatpush1.bf16.msra.mxu0 %v1067
  %1193 = vmatprep.subr.bf16.mxu0 0
  %1194 = vmatpush1.bf16.msra.mxu0 %v1068
  %1195 = vmatprep.subr.bf16.mxu0 0
  %1196 = vmatpush1.bf16.msra.mxu0 %v1069
  %1197 = vmatprep.subr.bf16.mxu0 0
  %1198 = vmatpush1.bf16.msra.mxu0 %v1070
  %1199 = vmatprep.mubr.bf16.mxu0 %v608
  %1200 = vmatmul.mubr.bf16.gmra.mrb[0].mxu0 %v607
  %v1201 = vpop.f32.mrb[0].mxu0
  %v1202 = vadd.f32 0.0, %v1201
  %v1203 = vpop.f32.mrb[0].mxu0
  %v1204 = vpop.f32.mrb[0].mxu0
  %v1205 = vadd.f32 0.0, %v1204
  %v1206 = vpop.f32.mrb[0].mxu0
  %1207 = vmatprep.mubr.bf16.mxu0 %v615
  %1208 = vmatmul.mubr.bf16.gmra.mrb[0].mxu0 %v614
  %v1209 = vpop.f32.mrb[0].mxu0
  %v1210 = vadd.f32 0.0, %v1209
  %v1211 = vpop.f32.mrb[0].mxu0
  %v1212 = vpop.f32.mrb[0].mxu0
  %v1213 = vadd.f32 0.0, %v1212
  %v1214 = vpop.f32.mrb[0].mxu0
  %1215 = vmatprep.mubr.bf16.mxu0 %v622
  %1216 = vmatmul.mubr.bf16.gmra.mrb[0].mxu0 %v621
  %v1217 = vpop.f32.mrb[0].mxu0
  %v1218 = vadd.f32 0.0, %v1217
  %v1219 = vpop.f32.mrb[0].mxu0
  %v1220 = vpop.f32.mrb[0].mxu0
  %v1221 = vadd.f32 0.0, %v1220
  %v1222 = vpop.f32.mrb[0].mxu0
  %1223 = vmatprep.mubr.bf16.mxu0 %v629
  %1224 = vmatmul.mubr.bf16.gmra.mrb[0].mxu0 %v628
  %v1225 = vpop.f32.mrb[0].mxu0
  %v1226 = vadd.f32 0.0, %v1225
  %v1227 = vpop.f32.mrb[0].mxu0
  %v1228 = vpop.f32.mrb[0].mxu0
  %v1229 = vadd.f32 0.0, %v1228
  %v1230 = vpop.f32.mrb[0].mxu0
  %1231 = vmatprep.mubr.bf16.mxu0 %v636
  %1232 = vmatmul.mubr.bf16.gmra.mrb[0].mxu0 %v635
  %v1233 = vpop.f32.mrb[0].mxu0
  %v1234 = vadd.f32 0.0, %v1233
  %v1235 = vpop.f32.mrb[0].mxu0
  %v1236 = vpop.f32.mrb[0].mxu0
  %v1237 = vadd.f32 0.0, %v1236
  %v1238 = vpop.f32.mrb[0].mxu0
  %1239 = vmatprep.mubr.bf16.mxu0 %v643
  %1240 = vmatmul.mubr.bf16.gmra.mrb[0].mxu0 %v642
  %v1241 = vpop.f32.mrb[0].mxu0
  %v1242 = vadd.f32 0.0, %v1241
  %v1243 = vpop.f32.mrb[0].mxu0
  %v1244 = vpop.f32.mrb[0].mxu0
  %v1245 = vadd.f32 0.0, %v1244
  %v1246 = vpop.f32.mrb[0].mxu0
  %1247 = vmatprep.mubr.bf16.mxu0 %v650
  %1248 = vmatmul.mubr.bf16.gmra.mrb[0].mxu0 %v649
  %v1249 = vpop.f32.mrb[0].mxu0
  %v1250 = vadd.f32 0.0, %v1249
  %v1251 = vpop.f32.mrb[0].mxu0
  %v1252 = vpop.f32.mrb[0].mxu0
  %v1253 = vadd.f32 0.0, %v1252
  %v1254 = vpop.f32.mrb[0].mxu0
  %1255 = vmatprep.mubr.bf16.mxu0 %v657
  %1256 = vmatmul.mubr.bf16.gmra.mrb[0].mxu0 %v656
  %v1257 = vpop.f32.mrb[0].mxu0
  %v1258 = vadd.f32 0.0, %v1257
  %v1259 = vpop.f32.mrb[0].mxu0
  %v1260 = vpop.f32.mrb[0].mxu0
  %v1261 = vadd.f32 0.0, %v1260
  %v1262 = vpop.f32.mrb[0].mxu0
  %1263 = vmatprep.mubr.bf16.mxu0 %v664
  %1264 = vmatmul.mubr.bf16.gmra.mrb[0].mxu0 %v663
  %v1265 = vpop.f32.mrb[0].mxu0
  %v1266 = vadd.f32 0.0, %v1265
  %v1267 = vpop.f32.mrb[0].mxu0
  %v1268 = vpop.f32.mrb[0].mxu0
  %v1269 = vadd.f32 0.0, %v1268
  %v1270 = vpop.f32.mrb[0].mxu0
  %1271 = vmatprep.mubr.bf16.mxu0 %v671
  %1272 = vmatmul.mubr.bf16.gmra.mrb[0].mxu0 %v670
  %v1273 = vpop.f32.mrb[0].mxu0
  %v1274 = vadd.f32 0.0, %v1273
  %v1275 = vpop.f32.mrb[0].mxu0
  %v1276 = vpop.f32.mrb[0].mxu0
  %v1277 = vadd.f32 0.0, %v1276
  %v1278 = vpop.f32.mrb[0].mxu0
  %1279 = vmatprep.mubr.bf16.mxu0 %v678
  %1280 = vmatmul.mubr.bf16.gmra.mrb[0].mxu0 %v677
  %v1281 = vpop.f32.mrb[0].mxu0
  %v1282 = vadd.f32 0.0, %v1281
  %v1283 = vpop.f32.mrb[0].mxu0
  %v1284 = vpop.f32.mrb[0].mxu0
  %v1285 = vadd.f32 0.0, %v1284
  %v1286 = vpop.f32.mrb[0].mxu0
  %1287 = vmatprep.mubr.bf16.mxu0 %v685
  %1288 = vmatmul.mubr.bf16.gmra.mrb[0].mxu0 %v684
  %v1289 = vpop.f32.mrb[0].mxu0
  %v1290 = vadd.f32 0.0, %v1289
  %v1291 = vpop.f32.mrb[0].mxu0
  %v1292 = vpop.f32.mrb[0].mxu0
  %v1293 = vadd.f32 0.0, %v1292
  %v1294 = vpop.f32.mrb[0].mxu0
  %1295 = vmatprep.mubr.bf16.mxu0 %v692
  %1296 = vmatmul.mubr.bf16.gmra.mrb[0].mxu0 %v691
  %v1297 = vpop.f32.mrb[0].mxu0
  %v1298 = vadd.f32 0.0, %v1297
  %v1299 = vpop.f32.mrb[0].mxu0
  %v1300 = vpop.f32.mrb[0].mxu0
  %v1301 = vadd.f32 0.0, %v1300
  %v1302 = vpop.f32.mrb[0].mxu0
  %1303 = vmatprep.mubr.bf16.mxu0 %v699
  %1304 = vmatmul.mubr.bf16.gmra.mrb[0].mxu0 %v698
  %v1305 = vpop.f32.mrb[0].mxu0
  %v1306 = vadd.f32 0.0, %v1305
  %v1307 = vpop.f32.mrb[0].mxu0
  %v1308 = vpop.f32.mrb[0].mxu0
  %v1309 = vadd.f32 0.0, %v1308
  %v1310 = vpop.f32.mrb[0].mxu0
  %1311 = vmatprep.mubr.bf16.mxu0 %v706
  %1312 = vmatmul.mubr.bf16.gmra.mrb[0].mxu0 %v705
  %v1313 = vpop.f32.mrb[0].mxu0
  %v1314 = vadd.f32 0.0, %v1313
  %v1315 = vpop.f32.mrb[0].mxu0
  %v1316 = vpop.f32.mrb[0].mxu0
  %v1317 = vadd.f32 0.0, %v1316
  %v1318 = vpop.f32.mrb[0].mxu0
  %1319 = vmatprep.mubr.bf16.mxu0 %v713
  %1320 = vmatmul.mubr.bf16.gmra.mrb[0].mxu0 %v712
  %v1321 = vpop.f32.mrb[0].mxu0
  %v1322 = vadd.f32 0.0, %v1321
  %v1323 = vpop.f32.mrb[0].mxu0
  %v1324 = vpop.f32.mrb[0].mxu0
  %v1325 = vadd.f32 0.0, %v1324
  %v1326 = vpop.f32.mrb[0].mxu0
  %1327 = vdwg.mxu0
  %1328 = vmatprep.subr.bf16.mxu0 0
  %1329 = vmatpush1.bf16.msra.mxu0 %v1071
  %1330 = vmatprep.subr.bf16.mxu0 0
  %1331 = vmatpush1.bf16.msra.mxu0 %v1072
  %1332 = vmatprep.subr.bf16.mxu0 0
  %1333 = vmatpush1.bf16.msra.mxu0 %v1073
  %1334 = vmatprep.subr.bf16.mxu0 0
  %1335 = vmatpush1.bf16.msra.mxu0 %v1074
  %1336 = vmatprep.subr.bf16.mxu0 0
  %1337 = vmatpush1.bf16.msra.mxu0 %v1075
  %1338 = vmatprep.subr.bf16.mxu0 0
  %1339 = vmatpush1.bf16.msra.mxu0 %v1076
  %1340 = vmatprep.subr.bf16.mxu0 0
  %1341 = vmatpush1.bf16.msra.mxu0 %v1077
  %1342 = vmatprep.subr.bf16.mxu0 0
  %1343 = vmatpush1.bf16.msra.mxu0 %v1078
  %1344 = vmatprep.subr.bf16.mxu0 0
  %1345 = vmatpush1.bf16.msra.mxu0 %v1079
  %1346 = vmatprep.subr.bf16.mxu0 0
  %1347 = vmatpush1.bf16.msra.mxu0 %v1080
  %1348 = vmatprep.subr.bf16.mxu0 0
  %1349 = vmatpush1.bf16.msra.mxu0 %v1081
  %1350 = vmatprep.subr.bf16.mxu0 0
  %1351 = vmatpush1.bf16.msra.mxu0 %v1082
  %1352 = vmatprep.subr.bf16.mxu0 0
  %1353 = vmatpush1.bf16.msra.mxu0 %v1083
  %1354 = vmatprep.subr.bf16.mxu0 0
  %1355 = vmatpush1.bf16.msra.mxu0 %v1084
  %1356 = vmatprep.subr.bf16.mxu0 0
  %1357 = vmatpush1.bf16.msra.mxu0 %v1085
  %1358 = vmatprep.subr.bf16.mxu0 0
  %1359 = vmatpush1.bf16.msra.mxu0 %v1086
  %1360 = vmatprep.mubr.bf16.mxu0 %v610
  %1361 = vmatmul.mubr.bf16.gmra.mrb[0].mxu0 %v609
  %v1362 = vpop.f32.mrb[0].mxu0
  %v1363 = vadd.f32 %v1202, %v1362
  %v1364 = vpop.f32.mrb[0].mxu0
  %v1365 = vpop.f32.mrb[0].mxu0
  %v1366 = vadd.f32 %v1205, %v1365
  %v1367 = vpop.f32.mrb[0].mxu0
  %1368 = vmatprep.mubr.bf16.mxu0 %v617
  %1369 = vmatmul.mubr.bf16.gmra.mrb[0].mxu0 %v616
  %v1370 = vpop.f32.mrb[0].mxu0
  %v1371 = vadd.f32 %v1210, %v1370
  %v1372 = vpop.f32.mrb[0].mxu0
  %v1373 = vpop.f32.mrb[0].mxu0
  %v1374 = vadd.f32 %v1213, %v1373
  %v1375 = vpop.f32.mrb[0].mxu0
  %1376 = vmatprep.mubr.bf16.mxu0 %v624
  %1377 = vmatmul.mubr.bf16.gmra.mrb[0].mxu0 %v623
  %v1378 = vpop.f32.mrb[0].mxu0
  %v1379 = vadd.f32 %v1218, %v1378
  %v1380 = vpop.f32.mrb[0].mxu0
  %v1381 = vpop.f32.mrb[0].mxu0
  %v1382 = vadd.f32 %v1221, %v1381
  %v1383 = vpop.f32.mrb[0].mxu0
  %1384 = vmatprep.mubr.bf16.mxu0 %v631
  %1385 = vmatmul.mubr.bf16.gmra.mrb[0].mxu0 %v630
  %v1386 = vpop.f32.mrb[0].mxu0
  %v1387 = vadd.f32 %v1226, %v1386
  %v1388 = vpop.f32.mrb[0].mxu0
  %v1389 = vpop.f32.mrb[0].mxu0
  %v1390 = vadd.f32 %v1229, %v1389
  %v1391 = vpop.f32.mrb[0].mxu0
  %1392 = vmatprep.mubr.bf16.mxu0 %v638
  %1393 = vmatmul.mubr.bf16.gmra.mrb[0].mxu0 %v637
  %v1394 = vpop.f32.mrb[0].mxu0
  %v1395 = vadd.f32 %v1234, %v1394
  %v1396 = vpop.f32.mrb[0].mxu0
  %v1397 = vpop.f32.mrb[0].mxu0
  %v1398 = vadd.f32 %v1237, %v1397
  %v1399 = vpop.f32.mrb[0].mxu0
  %1400 = vmatprep.mubr.bf16.mxu0 %v645
  %1401 = vmatmul.mubr.bf16.gmra.mrb[0].mxu0 %v644
  %v1402 = vpop.f32.mrb[0].mxu0
  %v1403 = vadd.f32 %v1242, %v1402
  %v1404 = vpop.f32.mrb[0].mxu0
  %v1405 = vpop.f32.mrb[0].mxu0
  %v1406 = vadd.f32 %v1245, %v1405
  %v1407 = vpop.f32.mrb[0].mxu0
  %1408 = vmatprep.mubr.bf16.mxu0 %v652
  %1409 = vmatmul.mubr.bf16.gmra.mrb[0].mxu0 %v651
  %v1410 = vpop.f32.mrb[0].mxu0
  %v1411 = vadd.f32 %v1250, %v1410
  %v1412 = vpop.f32.mrb[0].mxu0
  %v1413 = vpop.f32.mrb[0].mxu0
  %v1414 = vadd.f32 %v1253, %v1413
  %v1415 = vpop.f32.mrb[0].mxu0
  %1416 = vmatprep.mubr.bf16.mxu0 %v659
  %1417 = vmatmul.mubr.bf16.gmra.mrb[0].mxu0 %v658
  %v1418 = vpop.f32.mrb[0].mxu0
  %v1419 = vadd.f32 %v1258, %v1418
  %v1420 = vpop.f32.mrb[0].mxu0
  %v1421 = vpop.f32.mrb[0].mxu0
  %v1422 = vadd.f32 %v1261, %v1421
  %v1423 = vpop.f32.mrb[0].mxu0
  %1424 = vmatprep.mubr.bf16.mxu0 %v666
  %1425 = vmatmul.mubr.bf16.gmra.mrb[0].mxu0 %v665
  %v1426 = vpop.f32.mrb[0].mxu0
  %v1427 = vadd.f32 %v1266, %v1426
  %v1428 = vpop.f32.mrb[0].mxu0
  %v1429 = vpop.f32.mrb[0].mxu0
  %v1430 = vadd.f32 %v1269, %v1429
  %v1431 = vpop.f32.mrb[0].mxu0
  %1432 = vmatprep.mubr.bf16.mxu0 %v673
  %1433 = vmatmul.mubr.bf16.gmra.mrb[0].mxu0 %v672
  %v1434 = vpop.f32.mrb[0].mxu0
  %v1435 = vadd.f32 %v1274, %v1434
  %v1436 = vpop.f32.mrb[0].mxu0
  %v1437 = vpop.f32.mrb[0].mxu0
  %v1438 = vadd.f32 %v1277, %v1437
  %v1439 = vpop.f32.mrb[0].mxu0
  %1440 = vmatprep.mubr.bf16.mxu0 %v680
  %1441 = vmatmul.mubr.bf16.gmra.mrb[0].mxu0 %v679
  %v1442 = vpop.f32.mrb[0].mxu0
  %v1443 = vadd.f32 %v1282, %v1442
  %v1444 = vpop.f32.mrb[0].mxu0
  %v1445 = vpop.f32.mrb[0].mxu0
  %v1446 = vadd.f32 %v1285, %v1445
  %v1447 = vpop.f32.mrb[0].mxu0
  %1448 = vmatprep.mubr.bf16.mxu0 %v687
  %1449 = vmatmul.mubr.bf16.gmra.mrb[0].mxu0 %v686
  %v1450 = vpop.f32.mrb[0].mxu0
  %v1451 = vadd.f32 %v1290, %v1450
  %v1452 = vpop.f32.mrb[0].mxu0
  %v1453 = vpop.f32.mrb[0].mxu0
  %v1454 = vadd.f32 %v1293, %v1453
  %v1455 = vpop.f32.mrb[0].mxu0
  %1456 = vmatprep.mubr.bf16.mxu0 %v694
  %1457 = vmatmul.mubr.bf16.gmra.mrb[0].mxu0 %v693
  %v1458 = vpop.f32.mrb[0].mxu0
  %v1459 = vadd.f32 %v1298, %v1458
  %v1460 = vpop.f32.mrb[0].mxu0
  %v1461 = vpop.f32.mrb[0].mxu0
  %v1462 = vadd.f32 %v1301, %v1461
  %v1463 = vpop.f32.mrb[0].mxu0
  %1464 = vmatprep.mubr.bf16.mxu0 %v701
  %1465 = vmatmul.mubr.bf16.gmra.mrb[0].mxu0 %v700
  %v1466 = vpop.f32.mrb[0].mxu0
  %v1467 = vadd.f32 %v1306, %v1466
  %v1468 = vpop.f32.mrb[0].mxu0
  %v1469 = vpop.f32.mrb[0].mxu0
  %v1470 = vadd.f32 %v1309, %v1469
  %v1471 = vpop.f32.mrb[0].mxu0
  %1472 = vmatprep.mubr.bf16.mxu0 %v708
  %1473 = vmatmul.mubr.bf16.gmra.mrb[0].mxu0 %v707
  %v1474 = vpop.f32.mrb[0].mxu0
  %v1475 = vadd.f32 %v1314, %v1474
  %v1476 = vpop.f32.mrb[0].mxu0
  %v1477 = vpop.f32.mrb[0].mxu0
  %v1478 = vadd.f32 %v1317, %v1477
  %v1479 = vpop.f32.mrb[0].mxu0
  %1480 = vmatprep.mubr.bf16.mxu0 %v715
  %1481 = vmatmul.mubr.bf16.gmra.mrb[0].mxu0 %v714
  %v1482 = vpop.f32.mrb[0].mxu0
  %v1483 = vadd.f32 %v1322, %v1482
  %v1484 = vpop.f32.mrb[0].mxu0
  %v1485 = vpop.f32.mrb[0].mxu0
  %v1486 = vadd.f32 %v1325, %v1485
  %v1487 = vpop.f32.mrb[0].mxu0
  %1488 = vdwg.mxu0
  %1489 = vmatprep.subr.bf16.mxu0 0
  %1490 = vmatpush1.bf16.msra.mxu0 %v1087
  %1491 = vmatprep.subr.bf16.mxu0 0
  %1492 = vmatpush1.bf16.msra.mxu0 %v1088
  %1493 = vmatprep.subr.bf16.mxu0 0
  %1494 = vmatpush1.bf16.msra.mxu0 %v1089
  %1495 = vmatprep.subr.bf16.mxu0 0
  %1496 = vmatpush1.bf16.msra.mxu0 %v1090
  %1497 = vmatprep.subr.bf16.mxu0 0
  %1498 = vmatpush1.bf16.msra.mxu0 %v1091
  %1499 = vmatprep.subr.bf16.mxu0 0
  %1500 = vmatpush1.bf16.msra.mxu0 %v1092
  %1501 = vmatprep.subr.bf16.mxu0 0
  %1502 = vmatpush1.bf16.msra.mxu0 %v1093
  %1503 = vmatprep.subr.bf16.mxu0 0
  %1504 = vmatpush1.bf16.msra.mxu0 %v1094
  %1505 = vmatprep.subr.bf16.mxu0 0
  %1506 = vmatpush1.bf16.msra.mxu0 %v1095
  %1507 = vmatprep.subr.bf16.mxu0 0
  %1508 = vmatpush1.bf16.msra.mxu0 %v1096
  %1509 = vmatprep.subr.bf16.mxu0 0
  %1510 = vmatpush1.bf16.msra.mxu0 %v1097
  %1511 = vmatprep.subr.bf16.mxu0 0
  %1512 = vmatpush1.bf16.msra.mxu0 %v1098
  %1513 = vmatprep.subr.bf16.mxu0 0
  %1514 = vmatpush1.bf16.msra.mxu0 %v1099
  %1515 = vmatprep.subr.bf16.mxu0 0
  %1516 = vmatpush1.bf16.msra.mxu0 %v1100
  %1517 = vmatprep.subr.bf16.mxu0 0
  %1518 = vmatpush1.bf16.msra.mxu0 %v1101
  %1519 = vmatprep.subr.bf16.mxu0 0
  %1520 = vmatpush1.bf16.msra.mxu0 %v1102
  %1521 = vmatprep.mubr.bf16.mxu0 %v612
  %1522 = vmatmul.mubr.bf16.gmra.mrb[0].mxu0 %v611
  %v1523 = vpop.f32.mrb[0].mxu0
  %v1524 = vadd.f32 %v1363, %v1523
  %v1525 = vpop.f32.mrb[0].mxu0
  %v1526 = vpop.f32.mrb[0].mxu0
  %v1527 = vadd.f32 %v1366, %v1526
  %v1528 = vpop.f32.mrb[0].mxu0
  %1529 = vmatprep.mubr.bf16.mxu0 %v619
  %1530 = vmatmul.mubr.bf16.gmra.mrb[0].mxu0 %v618
  %v1531 = vpop.f32.mrb[0].mxu0
  %v1532 = vadd.f32 %v1371, %v1531
  %v1533 = vpop.f32.mrb[0].mxu0
  %v1534 = vpop.f32.mrb[0].mxu0
  %v1535 = vadd.f32 %v1374, %v1534
  %v1536 = vpop.f32.mrb[0].mxu0
  %1537 = vmatprep.mubr.bf16.mxu0 %v626
  %1538 = vmatmul.mubr.bf16.gmra.mrb[0].mxu0 %v625
  %v1539 = vpop.f32.mrb[0].mxu0
  %v1540 = vadd.f32 %v1379, %v1539
  %v1541 = vpop.f32.mrb[0].mxu0
  %v1542 = vpop.f32.mrb[0].mxu0
  %v1543 = vadd.f32 %v1382, %v1542
  %v1544 = vpop.f32.mrb[0].mxu0
  %1545 = vmatprep.mubr.bf16.mxu0 %v633
  %1546 = vmatmul.mubr.bf16.gmra.mrb[0].mxu0 %v632
  %v1547 = vpop.f32.mrb[0].mxu0
  %v1548 = vadd.f32 %v1387, %v1547
  %v1549 = vpop.f32.mrb[0].mxu0
  %v1550 = vpop.f32.mrb[0].mxu0
  %v1551 = vadd.f32 %v1390, %v1550
  %v1552 = vpop.f32.mrb[0].mxu0
  %1553 = vmatprep.mubr.bf16.mxu0 %v640
  %1554 = vmatmul.mubr.bf16.gmra.mrb[0].mxu0 %v639
  %v1555 = vpop.f32.mrb[0].mxu0
  %v1556 = vadd.f32 %v1395, %v1555
  %v1557 = vpop.f32.mrb[0].mxu0
  %v1558 = vpop.f32.mrb[0].mxu0
  %v1559 = vadd.f32 %v1398, %v1558
  %v1560 = vpop.f32.mrb[0].mxu0
  %1561 = vmatprep.mubr.bf16.mxu0 %v647
  %1562 = vmatmul.mubr.bf16.gmra.mrb[0].mxu0 %v646
  %v1563 = vpop.f32.mrb[0].mxu0
  %v1564 = vadd.f32 %v1403, %v1563
  %v1565 = vpop.f32.mrb[0].mxu0
  %v1566 = vpop.f32.mrb[0].mxu0
  %v1567 = vadd.f32 %v1406, %v1566
  %v1568 = vpop.f32.mrb[0].mxu0
  %1569 = vmatprep.mubr.bf16.mxu0 %v654
  %1570 = vmatmul.mubr.bf16.gmra.mrb[0].mxu0 %v653
  %v1571 = vpop.f32.mrb[0].mxu0
  %v1572 = vadd.f32 %v1411, %v1571
  %v1573 = vpop.f32.mrb[0].mxu0
  %v1574 = vpop.f32.mrb[0].mxu0
  %v1575 = vadd.f32 %v1414, %v1574
  %v1576 = vpop.f32.mrb[0].mxu0
  %1577 = vmatprep.mubr.bf16.mxu0 %v661
  %1578 = vmatmul.mubr.bf16.gmra.mrb[0].mxu0 %v660
  %v1579 = vpop.f32.mrb[0].mxu0
  %v1580 = vadd.f32 %v1419, %v1579
  %v1581 = vpop.f32.mrb[0].mxu0
  %v1582 = vpop.f32.mrb[0].mxu0
  %v1583 = vadd.f32 %v1422, %v1582
  %v1584 = vpop.f32.mrb[0].mxu0
  %1585 = vmatprep.mubr.bf16.mxu0 %v668
  %1586 = vmatmul.mubr.bf16.gmra.mrb[0].mxu0 %v667
  %v1587 = vpop.f32.mrb[0].mxu0
  %v1588 = vadd.f32 %v1427, %v1587
  %v1589 = vpop.f32.mrb[0].mxu0
  %v1590 = vpop.f32.mrb[0].mxu0
  %v1591 = vadd.f32 %v1430, %v1590
  %v1592 = vpop.f32.mrb[0].mxu0
  %1593 = vmatprep.mubr.bf16.mxu0 %v675
  %1594 = vmatmul.mubr.bf16.gmra.mrb[0].mxu0 %v674
  %v1595 = vpop.f32.mrb[0].mxu0
  %v1596 = vadd.f32 %v1435, %v1595
  %v1597 = vpop.f32.mrb[0].mxu0
  %v1598 = vpop.f32.mrb[0].mxu0
  %v1599 = vadd.f32 %v1438, %v1598
  %v1600 = vpop.f32.mrb[0].mxu0
  %1601 = vmatprep.mubr.bf16.mxu0 %v682
  %1602 = vmatmul.mubr.bf16.gmra.mrb[0].mxu0 %v681
  %v1603 = vpop.f32.mrb[0].mxu0
  %v1604 = vadd.f32 %v1443, %v1603
  %v1605 = vpop.f32.mrb[0].mxu0
  %v1606 = vpop.f32.mrb[0].mxu0
  %v1607 = vadd.f32 %v1446, %v1606
  %v1608 = vpop.f32.mrb[0].mxu0
  %1609 = vmatprep.mubr.bf16.mxu0 %v689
  %1610 = vmatmul.mubr.bf16.gmra.mrb[0].mxu0 %v688
  %v1611 = vpop.f32.mrb[0].mxu0
  %v1612 = vadd.f32 %v1451, %v1611
  %v1613 = vpop.f32.mrb[0].mxu0
  %v1614 = vpop.f32.mrb[0].mxu0
  %v1615 = vadd.f32 %v1454, %v1614
  %v1616 = vpop.f32.mrb[0].mxu0
  %1617 = vmatprep.mubr.bf16.mxu0 %v696
  %1618 = vmatmul.mubr.bf16.gmra.mrb[0].mxu0 %v695
  %v1619 = vpop.f32.mrb[0].mxu0
  %v1620 = vadd.f32 %v1459, %v1619
  %v1621 = vpop.f32.mrb[0].mxu0
  %v1622 = vpop.f32.mrb[0].mxu0
  %v1623 = vadd.f32 %v1462, %v1622
  %v1624 = vpop.f32.mrb[0].mxu0
  %1625 = vmatprep.mubr.bf16.mxu0 %v703
  %1626 = vmatmul.mubr.bf16.gmra.mrb[0].mxu0 %v702
  %v1627 = vpop.f32.mrb[0].mxu0
  %v1628 = vadd.f32 %v1467, %v1627
  %v1629 = vpop.f32.mrb[0].mxu0
  %v1630 = vpop.f32.mrb[0].mxu0
  %v1631 = vadd.f32 %v1470, %v1630
  %v1632 = vpop.f32.mrb[0].mxu0
  %1633 = vmatprep.mubr.bf16.mxu0 %v710
  %1634 = vmatmul.mubr.bf16.gmra.mrb[0].mxu0 %v709
  %v1635 = vpop.f32.mrb[0].mxu0
  %v1636 = vadd.f32 %v1475, %v1635
  %v1637 = vpop.f32.mrb[0].mxu0
  %v1638 = vpop.f32.mrb[0].mxu0
  %v1639 = vadd.f32 %v1478, %v1638
  %v1640 = vpop.f32.mrb[0].mxu0
  %1641 = vmatprep.mubr.bf16.mxu0 %v717
  %1642 = vmatmul.mubr.bf16.gmra.mrb[0].mxu0 %v716
  %v1643 = vpop.f32.mrb[0].mxu0
  %v1644 = vadd.f32 %v1483, %v1643
  %v1645 = vpop.f32.mrb[0].mxu0
  %v1646 = vpop.f32.mrb[0].mxu0
  %v1647 = vadd.f32 %v1486, %v1646
  %v1648 = vpop.f32.mrb[0].mxu0
  %1649 = vdwg.mxu0
  %1650 = vmatprep.subr.bf16.mxu0 0
  %1651 = vmatpush1.bf16.msra.mxu0 %v1103
  %1652 = vmatprep.subr.bf16.mxu0 0
  %1653 = vmatpush1.bf16.msra.mxu0 %v1104
  %1654 = vmatprep.subr.bf16.mxu0 0
  %1655 = vmatpush1.bf16.msra.mxu0 %v1105
  %1656 = vmatprep.subr.bf16.mxu0 0
  %1657 = vmatpush1.bf16.msra.mxu0 %v1106
  %1658 = vmatprep.subr.bf16.mxu0 0
  %1659 = vmatpush1.bf16.msra.mxu0 %v1107
  %1660 = vmatprep.subr.bf16.mxu0 0
  %1661 = vmatpush1.bf16.msra.mxu0 %v1108
  %1662 = vmatprep.subr.bf16.mxu0 0
  %1663 = vmatpush1.bf16.msra.mxu0 %v1109
  %1664 = vmatprep.subr.bf16.mxu0 0
  %1665 = vmatpush1.bf16.msra.mxu0 %v1110
  %1666 = vmatprep.subr.bf16.mxu0 0
  %1667 = vmatpush1.bf16.msra.mxu0 0
  %1668 = vmatprep.subr.bf16.mxu0 0
  %1669 = vmatpush1.bf16.msra.mxu0 0
  %1670 = vmatprep.subr.bf16.mxu0 0
  %1671 = vmatpush1.bf16.msra.mxu0 0
  %1672 = vmatprep.subr.bf16.mxu0 0
  %1673 = vmatpush1.bf16.msra.mxu0 0
  %1674 = vmatprep.subr.bf16.mxu0 0
  %1675 = vmatpush1.bf16.msra.mxu0 0
  %1676 = vmatprep.subr.bf16.mxu0 0
  %1677 = vmatpush1.bf16.msra.mxu0 0
  %1678 = vmatprep.subr.bf16.mxu0 0
  %1679 = vmatpush1.bf16.msra.mxu0 0
  %1680 = vmatprep.subr.bf16.mxu0 0
  %1681 = vmatpush1.bf16.msra.mxu0 0
  %1682 = vmatprep.mubr.bf16.mxu0 0
  %1683 = vmatmul.mubr.bf16.gmra.mrb[0].mxu0 %v613
  %v1684 = vpop.f32.mrb[0].mxu0
  %v1685 = vadd.f32 %v1524, %v1684
  %v1686 = vpop.f32.mrb[0].mxu0
  %v1687 = vpop.f32.mrb[0].mxu0
  %v1688 = vadd.f32 %v1527, %v1687
  %v1689 = vpop.f32.mrb[0].mxu0
  %1690 = vmatprep.mubr.bf16.mxu0 0
  %1691 = vmatmul.mubr.bf16.gmra.mrb[0].mxu0 %v620
  %v1692 = vpop.f32.mrb[0].mxu0
  %v1693 = vadd.f32 %v1532, %v1692
  %v1694 = vpop.f32.mrb[0].mxu0
  %v1695 = vpop.f32.mrb[0].mxu0
  %v1696 = vadd.f32 %v1535, %v1695
  %v1697 = vpop.f32.mrb[0].mxu0
  %1698 = vmatprep.mubr.bf16.mxu0 0
  %1699 = vmatmul.mubr.bf16.gmra.mrb[0].mxu0 %v627
  %v1700 = vpop.f32.mrb[0].mxu0
  %v1701 = vadd.f32 %v1540, %v1700
  %v1702 = vpop.f32.mrb[0].mxu0
  %v1703 = vpop.f32.mrb[0].mxu0
  %v1704 = vadd.f32 %v1543, %v1703
  %v1705 = vpop.f32.mrb[0].mxu0
  %1706 = vmatprep.mubr.bf16.mxu0 0
  %1707 = vmatmul.mubr.bf16.gmra.mrb[0].mxu0 %v634
  %v1708 = vpop.f32.mrb[0].mxu0
  %v1709 = vadd.f32 %v1548, %v1708
  %v1710 = vpop.f32.mrb[0].mxu0
  %v1711 = vpop.f32.mrb[0].mxu0
  %v1712 = vadd.f32 %v1551, %v1711
  %v1713 = vpop.f32.mrb[0].mxu0
  %1714 = vmatprep.mubr.bf16.mxu0 0
  %1715 = vmatmul.mubr.bf16.gmra.mrb[0].mxu0 %v641
  %v1716 = vpop.f32.mrb[0].mxu0
  %v1717 = vadd.f32 %v1556, %v1716
  %v1718 = vpop.f32.mrb[0].mxu0
  %v1719 = vpop.f32.mrb[0].mxu0
  %v1720 = vadd.f32 %v1559, %v1719
  %v1721 = vpop.f32.mrb[0].mxu0
  %1722 = vmatprep.mubr.bf16.mxu0 0
  %1723 = vmatmul.mubr.bf16.gmra.mrb[0].mxu0 %v648
  %v1724 = vpop.f32.mrb[0].mxu0
  %v1725 = vadd.f32 %v1564, %v1724
  %v1726 = vpop.f32.mrb[0].mxu0
  %v1727 = vpop.f32.mrb[0].mxu0
  %v1728 = vadd.f32 %v1567, %v1727
  %v1729 = vpop.f32.mrb[0].mxu0
  %1730 = vmatprep.mubr.bf16.mxu0 0
  %1731 = vmatmul.mubr.bf16.gmra.mrb[0].mxu0 %v655
  %v1732 = vpop.f32.mrb[0].mxu0
  %v1733 = vadd.f32 %v1572, %v1732
  %v1734 = vpop.f32.mrb[0].mxu0
  %v1735 = vpop.f32.mrb[0].mxu0
  %v1736 = vadd.f32 %v1575, %v1735
  %v1737 = vpop.f32.mrb[0].mxu0
  %1738 = vmatprep.mubr.bf16.mxu0 0
  %1739 = vmatmul.mubr.bf16.gmra.mrb[0].mxu0 %v662
  %v1740 = vpop.f32.mrb[0].mxu0
  %v1741 = vadd.f32 %v1580, %v1740
  %v1742 = vpop.f32.mrb[0].mxu0
  %v1743 = vpop.f32.mrb[0].mxu0
  %v1744 = vadd.f32 %v1583, %v1743
  %v1745 = vpop.f32.mrb[0].mxu0
  %1746 = vmatprep.mubr.bf16.mxu0 0
  %1747 = vmatmul.mubr.bf16.gmra.mrb[0].mxu0 %v669
  %v1748 = vpop.f32.mrb[0].mxu0
  %v1749 = vadd.f32 %v1588, %v1748
  %v1750 = vpop.f32.mrb[0].mxu0
  %v1751 = vpop.f32.mrb[0].mxu0
  %v1752 = vadd.f32 %v1591, %v1751
  %v1753 = vpop.f32.mrb[0].mxu0
  %1754 = vmatprep.mubr.bf16.mxu0 0
  %1755 = vmatmul.mubr.bf16.gmra.mrb[0].mxu0 %v676
  %v1756 = vpop.f32.mrb[0].mxu0
  %v1757 = vadd.f32 %v1596, %v1756
  %v1758 = vpop.f32.mrb[0].mxu0
  %v1759 = vpop.f32.mrb[0].mxu0
  %v1760 = vadd.f32 %v1599, %v1759
  %v1761 = vpop.f32.mrb[0].mxu0
  %1762 = vmatprep.mubr.bf16.mxu0 0
  %1763 = vmatmul.mubr.bf16.gmra.mrb[0].mxu0 %v683
  %v1764 = vpop.f32.mrb[0].mxu0
  %v1765 = vadd.f32 %v1604, %v1764
  %v1766 = vpop.f32.mrb[0].mxu0
  %v1767 = vpop.f32.mrb[0].mxu0
  %v1768 = vadd.f32 %v1607, %v1767
  %v1769 = vpop.f32.mrb[0].mxu0
  %1770 = vmatprep.mubr.bf16.mxu0 0
  %1771 = vmatmul.mubr.bf16.gmra.mrb[0].mxu0 %v690
  %v1772 = vpop.f32.mrb[0].mxu0
  %v1773 = vadd.f32 %v1612, %v1772
  %v1774 = vpop.f32.mrb[0].mxu0
  %v1775 = vpop.f32.mrb[0].mxu0
  %v1776 = vadd.f32 %v1615, %v1775
  %v1777 = vpop.f32.mrb[0].mxu0
  %1778 = vmatprep.mubr.bf16.mxu0 0
  %1779 = vmatmul.mubr.bf16.gmra.mrb[0].mxu0 %v697
  %v1780 = vpop.f32.mrb[0].mxu0
  %v1781 = vadd.f32 %v1620, %v1780
  %v1782 = vpop.f32.mrb[0].mxu0
  %v1783 = vpop.f32.mrb[0].mxu0
  %v1784 = vadd.f32 %v1623, %v1783
  %v1785 = vpop.f32.mrb[0].mxu0
  %1786 = vmatprep.mubr.bf16.mxu0 0
  %1787 = vmatmul.mubr.bf16.gmra.mrb[0].mxu0 %v704
  %v1788 = vpop.f32.mrb[0].mxu0
  %v1789 = vadd.f32 %v1628, %v1788
  %v1790 = vpop.f32.mrb[0].mxu0
  %v1791 = vpop.f32.mrb[0].mxu0
  %v1792 = vadd.f32 %v1631, %v1791
  %v1793 = vpop.f32.mrb[0].mxu0
  %1794 = vmatprep.mubr.bf16.mxu0 0
  %1795 = vmatmul.mubr.bf16.gmra.mrb[0].mxu0 %v711
  %v1796 = vpop.f32.mrb[0].mxu0
  %v1797 = vadd.f32 %v1636, %v1796
  %v1798 = vpop.f32.mrb[0].mxu0
  %v1799 = vpop.f32.mrb[0].mxu0
  %v1800 = vadd.f32 %v1639, %v1799
  %v1801 = vpop.f32.mrb[0].mxu0
  %1802 = vmatprep.mubr.bf16.mxu0 0
  %1803 = vmatmul.mubr.bf16.gmra.mrb[0].mxu0 %v718
  %v1804 = vpop.f32.mrb[0].mxu0
  %v1805 = vadd.f32 %v1644, %v1804
  %v1806 = vpop.f32.mrb[0].mxu0
  %v1807 = vpop.f32.mrb[0].mxu0
  %v1808 = vadd.f32 %v1647, %v1807
  %v1809 = vpop.f32.mrb[0].mxu0
  %1810 = vdwg.mxu0
  %v1811 = vpack.c.bf16 %v1688, %v1685
  %v1812 = vpack.c.bf16 %v1696, %v1693
  %v1813 = vpack.c.bf16 %v1704, %v1701
  %v1814 = vpack.c.bf16 %v1712, %v1709
  %v1815 = vpack.c.bf16 %v1720, %v1717
  %v1816 = vpack.c.bf16 %v1728, %v1725
  %v1817 = vpack.c.bf16 %v1736, %v1733
  %v1818 = vpack.c.bf16 %v1744, %v1741
  %v1819 = vpack.c.bf16 %v1752, %v1749
  %v1820 = vpack.c.bf16 %v1760, %v1757
  %v1821 = vpack.c.bf16 %v1768, %v1765
  %v1822 = vpack.c.bf16 %v1776, %v1773
  %v1823 = vpack.c.bf16 %v1784, %v1781
  %v1824 = vpack.c.bf16 %v1792, %v1789
  %v1825 = vpack.c.bf16 %v1800, %v1797
  %v1826 = vpack.c.bf16 %v1808, %v1805
  %v1843 = vunpack.c.l.b16 %v1811
  %v1844 = vunpack.c.h.b16 %v1811
  %v1845 = vunpack.c.l.b16 %v1812
  %v1846 = vunpack.c.h.b16 %v1812
  %v1847 = vunpack.c.l.b16 %v1813
  %v1848 = vunpack.c.h.b16 %v1813
  %v1849 = vunpack.c.l.b16 %v1814
  %v1850 = vunpack.c.h.b16 %v1814
  %v1851 = vunpack.c.l.b16 %v1815
  %v1852 = vunpack.c.h.b16 %v1815
  %v1853 = vunpack.c.l.b16 %v1816
  %v1854 = vunpack.c.h.b16 %v1816
  %v1855 = vunpack.c.l.b16 %v1817
  %v1856 = vunpack.c.h.b16 %v1817
  %v1857 = vunpack.c.l.b16 %v1818
  %v1858 = vunpack.c.h.b16 %v1818
  %v1859 = vunpack.c.l.b16 %v1819
  %v1860 = vunpack.c.h.b16 %v1819
  %v1861 = vunpack.c.l.b16 %v1820
  %v1862 = vunpack.c.h.b16 %v1820
  %v1863 = vunpack.c.l.b16 %v1821
  %v1864 = vunpack.c.h.b16 %v1821
  %v1865 = vunpack.c.l.b16 %v1822
  %v1866 = vunpack.c.h.b16 %v1822
  %v1867 = vunpack.c.l.b16 %v1823
  %v1868 = vunpack.c.h.b16 %v1823
  %v1869 = vunpack.c.l.b16 %v1824
  %v1870 = vunpack.c.h.b16 %v1824
  %v1871 = vunpack.c.l.b16 %v1825
  %v1872 = vunpack.c.h.b16 %v1825
  %v1873 = vunpack.c.l.b16 %v1826
  %v1874 = vunpack.c.h.b16 %v1826
  %v1875 = vpack.c.b16 %v1843, %v1843
  %v1876 = vpack.c.b16 %v1844, %v1844
  %v1877 = vpack.c.b16 %v1845, %v1845
  %v1878 = vpack.c.b16 %v1846, %v1846
  %v1879 = vpack.c.b16 %v1847, %v1847
  %v1880 = vpack.c.b16 %v1848, %v1848
  %v1881 = vpack.c.b16 %v1849, %v1849
  %v1882 = vpack.c.b16 %v1850, %v1850
  %v1883 = vpack.c.b16 %v1851, %v1851
  %v1884 = vpack.c.b16 %v1852, %v1852
  %v1885 = vpack.c.b16 %v1853, %v1853
  %v1886 = vpack.c.b16 %v1854, %v1854
  %v1887 = vpack.c.b16 %v1855, %v1855
  %v1888 = vpack.c.b16 %v1856, %v1856
  %v1889 = vpack.c.b16 %v1857, %v1857
  %v1890 = vpack.c.b16 %v1858, %v1858
  %v1891 = vpack.c.b16 %v1859, %v1859
  %v1892 = vpack.c.b16 %v1860, %v1860
  %v1893 = vpack.c.b16 %v1861, %v1861
  %v1894 = vpack.c.b16 %v1862, %v1862
  %v1895 = vpack.c.b16 %v1863, %v1863
  %v1896 = vpack.c.b16 %v1864, %v1864
  %v1897 = vpack.c.b16 %v1865, %v1865
  %v1898 = vpack.c.b16 %v1866, %v1866
  %v1899 = vpack.c.b16 %v1867, %v1867
  %v1900 = vpack.c.b16 %v1868, %v1868
  %v1901 = vpack.c.b16 %v1869, %v1869
  %v1902 = vpack.c.b16 %v1870, %v1870
  %v1903 = vpack.c.b16 %v1871, %v1871
  %v1904 = vpack.c.b16 %v1872, %v1872
  %v1905 = vpack.c.b16 %v1873, %v1873
  %v1906 = vpack.c.b16 %v1874, %v1874
  %vm1939 = vcmask 257024
  %1940 = vst.msk [vmem:[%s2] sm:$0xf] %vm1939, %v1875
  %1941 = vst.msk [vmem:[%s2 + $0x4] sm:$0xf] %vm1939, %v1876
  %1942 = vst.msk [vmem:[%s2 + $0x8] sm:$0xf] %vm1939, %v1877
  %1943 = vst.msk [vmem:[%s2 + $0xc] sm:$0xf] %vm1939, %v1878
  %1944 = vst.msk [vmem:[%s2 + $0x10] sm:$0xf] %vm1939, %v1879
  %1945 = vst.msk [vmem:[%s2 + $0x14] sm:$0xf] %vm1939, %v1880
  %1946 = vst.msk [vmem:[%s2 + $0x18] sm:$0xf] %vm1939, %v1881
  %1947 = vst.msk [vmem:[%s2 + $0x1c] sm:$0xf] %vm1939, %v1882
  %1948 = vst.msk [vmem:[%s2 + $0x20] sm:$0xf] %vm1939, %v1883
  %1949 = vst.msk [vmem:[%s2 + $0x24] sm:$0xf] %vm1939, %v1884
  %1950 = vst.msk [vmem:[%s2 + $0x28] sm:$0xf] %vm1939, %v1885
  %1951 = vst.msk [vmem:[%s2 + $0x2c] sm:$0xf] %vm1939, %v1886
  %1952 = vst.msk [vmem:[%s2 + $0x30] sm:$0xf] %vm1939, %v1887
  %1953 = vst.msk [vmem:[%s2 + $0x34] sm:$0xf] %vm1939, %v1888
  %1954 = vst.msk [vmem:[%s2 + $0x38] sm:$0xf] %vm1939, %v1889
  %1955 = vst.msk [vmem:[%s2 + $0x3c] sm:$0xf] %vm1939, %v1890
  %1956 = vst.msk [vmem:[%s2 + $0x40] sm:$0xf] %vm1939, %v1891
  %1957 = vst.msk [vmem:[%s2 + $0x44] sm:$0xf] %vm1939, %v1892
  %1958 = vst.msk [vmem:[%s2 + $0x48] sm:$0xf] %vm1939, %v1893
  %1959 = vst.msk [vmem:[%s2 + $0x4c] sm:$0xf] %vm1939, %v1894
  %1960 = vst.msk [vmem:[%s2 + $0x50] sm:$0xf] %vm1939, %v1895
  %1961 = vst.msk [vmem:[%s2 + $0x54] sm:$0xf] %vm1939, %v1896
  %1962 = vst.msk [vmem:[%s2 + $0x58] sm:$0xf] %vm1939, %v1897
  %1963 = vst.msk [vmem:[%s2 + $0x5c] sm:$0xf] %vm1939, %v1898
  %1964 = vst.msk [vmem:[%s2 + $0x60] sm:$0xf] %vm1939, %v1899
  %1965 = vst.msk [vmem:[%s2 + $0x64] sm:$0xf] %vm1939, %v1900
  %1966 = vst.msk [vmem:[%s2 + $0x68] sm:$0xf] %vm1939, %v1901
  %1967 = vst.msk [vmem:[%s2 + $0x6c] sm:$0xf] %vm1939, %v1902
  %1968 = vst.msk [vmem:[%s2 + $0x70] sm:$0xf] %vm1939, %v1903
  %1969 = vst.msk [vmem:[%s2 + $0x74] sm:$0xf] %vm1939, %v1904
  %1970 = vst.msk [vmem:[%s2 + $0x78] sm:$0xf] %vm1939, %v1905
  %1971 = vst.msk [vmem:[%s2 + $0x7c] sm:$0xf] %vm1939, %v1906
  %vm1972 = vcmask 261120
  %v1973 = vsel %vm1972, %v1685, 0.0
  %v1974 = vsel %vm1972, %v1688, 0.0
  %v1975 = vadd.f32 %v1973, %v1974
  %v1976 = vsel %vm1972, %v1693, 0.0
  %v1977 = vadd.f32 %v1975, %v1976
  %v1978 = vsel %vm1972, %v1696, 0.0
  %v1979 = vadd.f32 %v1977, %v1978
  %v1980 = vsel %vm1972, %v1701, 0.0
  %v1981 = vadd.f32 %v1979, %v1980
  %v1982 = vsel %vm1972, %v1704, 0.0
  %v1983 = vadd.f32 %v1981, %v1982
  %v1984 = vsel %vm1972, %v1709, 0.0
  %v1985 = vadd.f32 %v1983, %v1984
  %v1986 = vsel %vm1972, %v1712, 0.0
  %v1987 = vadd.f32 %v1985, %v1986
  %v1988 = vsel %vm1972, %v1717, 0.0
  %v1989 = vadd.f32 %v1987, %v1988
  %v1990 = vsel %vm1972, %v1720, 0.0
  %v1991 = vadd.f32 %v1989, %v1990
  %v1992 = vsel %vm1972, %v1725, 0.0
  %v1993 = vadd.f32 %v1991, %v1992
  %v1994 = vsel %vm1972, %v1728, 0.0
  %v1995 = vadd.f32 %v1993, %v1994
  %v1996 = vsel %vm1972, %v1733, 0.0
  %v1997 = vadd.f32 %v1995, %v1996
  %v1998 = vsel %vm1972, %v1736, 0.0
  %v1999 = vadd.f32 %v1997, %v1998
  %v2000 = vsel %vm1972, %v1741, 0.0
  %v2001 = vadd.f32 %v1999, %v2000
  %v2002 = vsel %vm1972, %v1744, 0.0
  %v2003 = vadd.f32 %v2001, %v2002
  %v2004 = vsel %vm1972, %v1749, 0.0
  %v2005 = vadd.f32 %v2003, %v2004
  %v2006 = vsel %vm1972, %v1752, 0.0
  %v2007 = vadd.f32 %v2005, %v2006
  %v2008 = vsel %vm1972, %v1757, 0.0
  %v2009 = vadd.f32 %v2007, %v2008
  %v2010 = vsel %vm1972, %v1760, 0.0
  %v2011 = vadd.f32 %v2009, %v2010
  %v2012 = vsel %vm1972, %v1765, 0.0
  %v2013 = vadd.f32 %v2011, %v2012
  %v2014 = vsel %vm1972, %v1768, 0.0
  %v2015 = vadd.f32 %v2013, %v2014
  %v2016 = vsel %vm1972, %v1773, 0.0
  %v2017 = vadd.f32 %v2015, %v2016
  %v2018 = vsel %vm1972, %v1776, 0.0
  %v2019 = vadd.f32 %v2017, %v2018
  %v2020 = vsel %vm1972, %v1781, 0.0
  %v2021 = vadd.f32 %v2019, %v2020
  %v2022 = vsel %vm1972, %v1784, 0.0
  %v2023 = vadd.f32 %v2021, %v2022
  %v2024 = vsel %vm1972, %v1789, 0.0
  %v2025 = vadd.f32 %v2023, %v2024
  %v2026 = vsel %vm1972, %v1792, 0.0
  %v2027 = vadd.f32 %v2025, %v2026
  %v2028 = vsel %vm1972, %v1797, 0.0
  %v2029 = vadd.f32 %v2027, %v2028
  %v2030 = vsel %vm1972, %v1800, 0.0
  %v2031 = vadd.f32 %v2029, %v2030
  %v2032 = vsel %vm1972, %v1805, 0.0
  %v2033 = vadd.f32 %v2031, %v2032
  %v2034 = vsel %vm1972, %v1808, 0.0
  %v2035 = vadd.f32 %v2033, %v2034
  %v2036 = vrot.slane %v2035, 4
  %v2037 = vadd.f32 %v2035, %v2036
  %v2038 = vrot.slane %v2037, 2
  %v2039 = vadd.f32 %v2037, %v2038
  %v2040 = vrot.slane %v2039, 1
  %v2041 = vadd.f32 %v2039, %v2040
  %vm2042 = vcmask 253952
  %2043 = vst.msk [vmem:[%s3] sm:$0x1] %vm2042, %v2041
  %v2044 = vmul.f32 %v1685, %v1685
  %v2045 = vmul.f32 %v1688, %v1688
  %v2046 = vmul.f32 %v1693, %v1693
  %v2047 = vmul.f32 %v1696, %v1696
  %v2048 = vmul.f32 %v1701, %v1701
  %v2049 = vmul.f32 %v1704, %v1704
  %v2050 = vmul.f32 %v1709, %v1709
  %v2051 = vmul.f32 %v1712, %v1712
  %v2052 = vmul.f32 %v1717, %v1717
  %v2053 = vmul.f32 %v1720, %v1720
  %v2054 = vmul.f32 %v1725, %v1725
  %v2055 = vmul.f32 %v1728, %v1728
  %v2056 = vmul.f32 %v1733, %v1733
  %v2057 = vmul.f32 %v1736, %v1736
  %v2058 = vmul.f32 %v1741, %v1741
  %v2059 = vmul.f32 %v1744, %v1744
  %v2060 = vmul.f32 %v1749, %v1749
  %v2061 = vmul.f32 %v1752, %v1752
  %v2062 = vmul.f32 %v1757, %v1757
  %v2063 = vmul.f32 %v1760, %v1760
  %v2064 = vmul.f32 %v1765, %v1765
  %v2065 = vmul.f32 %v1768, %v1768
  %v2066 = vmul.f32 %v1773, %v1773
  %v2067 = vmul.f32 %v1776, %v1776
  %v2068 = vmul.f32 %v1781, %v1781
  %v2069 = vmul.f32 %v1784, %v1784
  %v2070 = vmul.f32 %v1789, %v1789
  %v2071 = vmul.f32 %v1792, %v1792
  %v2072 = vmul.f32 %v1797, %v1797
  %v2073 = vmul.f32 %v1800, %v1800
  %v2074 = vmul.f32 %v1805, %v1805
  %v2075 = vmul.f32 %v1808, %v1808
  %v2076 = vsel %vm1972, %v2044, 0.0
  %v2077 = vsel %vm1972, %v2045, 0.0
  %v2078 = vadd.f32 %v2076, %v2077
  %v2079 = vsel %vm1972, %v2046, 0.0
  %v2080 = vadd.f32 %v2078, %v2079
  %v2081 = vsel %vm1972, %v2047, 0.0
  %v2082 = vadd.f32 %v2080, %v2081
  %v2083 = vsel %vm1972, %v2048, 0.0
  %v2084 = vadd.f32 %v2082, %v2083
  %v2085 = vsel %vm1972, %v2049, 0.0
  %v2086 = vadd.f32 %v2084, %v2085
  %v2087 = vsel %vm1972, %v2050, 0.0
  %v2088 = vadd.f32 %v2086, %v2087
  %v2089 = vsel %vm1972, %v2051, 0.0
  %v2090 = vadd.f32 %v2088, %v2089
  %v2091 = vsel %vm1972, %v2052, 0.0
  %v2092 = vadd.f32 %v2090, %v2091
  %v2093 = vsel %vm1972, %v2053, 0.0
  %v2094 = vadd.f32 %v2092, %v2093
  %v2095 = vsel %vm1972, %v2054, 0.0
  %v2096 = vadd.f32 %v2094, %v2095
  %v2097 = vsel %vm1972, %v2055, 0.0
  %v2098 = vadd.f32 %v2096, %v2097
  %v2099 = vsel %vm1972, %v2056, 0.0
  %v2100 = vadd.f32 %v2098, %v2099
  %v2101 = vsel %vm1972, %v2057, 0.0
  %v2102 = vadd.f32 %v2100, %v2101
  %v2103 = vsel %vm1972, %v2058, 0.0
  %v2104 = vadd.f32 %v2102, %v2103
  %v2105 = vsel %vm1972, %v2059, 0.0
  %v2106 = vadd.f32 %v2104, %v2105
  %v2107 = vsel %vm1972, %v2060, 0.0
  %v2108 = vadd.f32 %v2106, %v2107
  %v2109 = vsel %vm1972, %v2061, 0.0
  %v2110 = vadd.f32 %v2108, %v2109
  %v2111 = vsel %vm1972, %v2062, 0.0
  %v2112 = vadd.f32 %v2110, %v2111
  %v2113 = vsel %vm1972, %v2063, 0.0
  %v2114 = vadd.f32 %v2112, %v2113
  %v2115 = vsel %vm1972, %v2064, 0.0
  %v2116 = vadd.f32 %v2114, %v2115
  %v2117 = vsel %vm1972, %v2065, 0.0
  %v2118 = vadd.f32 %v2116, %v2117
  %v2119 = vsel %vm1972, %v2066, 0.0
  %v2120 = vadd.f32 %v2118, %v2119
  %v2121 = vsel %vm1972, %v2067, 0.0
  %v2122 = vadd.f32 %v2120, %v2121
  %v2123 = vsel %vm1972, %v2068, 0.0
  %v2124 = vadd.f32 %v2122, %v2123
  %v2125 = vsel %vm1972, %v2069, 0.0
  %v2126 = vadd.f32 %v2124, %v2125
  %v2127 = vsel %vm1972, %v2070, 0.0
  %v2128 = vadd.f32 %v2126, %v2127
  %v2129 = vsel %vm1972, %v2071, 0.0
  %v2130 = vadd.f32 %v2128, %v2129
  %v2131 = vsel %vm1972, %v2072, 0.0
  %v2132 = vadd.f32 %v2130, %v2131
  %v2133 = vsel %vm1972, %v2073, 0.0
  %v2134 = vadd.f32 %v2132, %v2133
  %v2135 = vsel %vm1972, %v2074, 0.0
  %v2136 = vadd.f32 %v2134, %v2135
  %v2137 = vsel %vm1972, %v2075, 0.0
  %v2138 = vadd.f32 %v2136, %v2137
  %v2139 = vrot.slane %v2138, 4
  %v2140 = vadd.f32 %v2138, %v2139
  %v2141 = vrot.slane %v2140, 2
  %v2142 = vadd.f32 %v2140, %v2141
  %v2143 = vrot.slane %v2142, 1
  %v2144 = vadd.f32 %v2142, %v2143
  %2145 = vst.msk [vmem:[%s4] sm:$0x1] %vm2042, %v2144
  // Predicated region
  $region10: #{_lambda_.6} parent=0 // pred_check
    _
  $region11: #{_lambda_.6} parent=0 // pred_check_branch
    %2147 = sbr.rel (0) target = $region13
  $region12: #{_lambda_.6} parent=0 // pred_region
    _
  $region13: #{_lambda_.6} parent=0 // pred_fallthru
    _
  // Predicated region
  $region14: #{_lambda_.6} parent=0 // pred_check
    _
  $region15: #{_lambda_.6} parent=0 // pred_check_branch
    %2149 = sbr.rel (0) target = $region17
  $region16: #{_lambda_.6} parent=0 // pred_region
    _
  $region17: #{_lambda_.6} parent=0 // pred_fallthru
    _
  // Predicated region
  $region18: #{_lambda_.6} parent=0 // pred_check
    _
  $region19: #{_lambda_.6} parent=0 // pred_check_branch
    %2151 = sbr.rel (0) target = $region21
  $region20: #{_lambda_.6} parent=0 // pred_region
    _
  $region21: #{_lambda_.6} parent=0 // pred_fallthru
    _
  // Predicated region
  $region22: #{_lambda_.6} parent=0 // pred_check
    _
  $region23: #{_lambda_.6} parent=0 // pred_check_branch
    %2153 = sbr.rel (0) target = $region25
  $region24: #{_lambda_.6} parent=0 // pred_region
    _
  $region25: #{_lambda_.6} parent=0 // pred_fallthru
    _
  // Predicated region
  $region26: #{_lambda_.6} parent=0 // pred_check
    _
  $region27: #{_lambda_.6} parent=0 // pred_check_branch
    %2155 = sbr.rel (0) target = $region29
  $region28: #{_lambda_.6} parent=0 // pred_region
    _
  $region29: #{_lambda_.6} parent=0 // pred_fallthru
    _
  // Predicated region
  $region30: #{_lambda_.6} parent=0 // pred_check
    _
  $region31: #{_lambda_.6} parent=0 // pred_check_branch
    %2157 = sbr.rel (0) target = $region33
  $region32: #{_lambda_.6} parent=0 // pred_region
    _
  $region33: #{_lambda_.6} parent=0 // pred_fallthru
    _

</llo_original>
